<compile_context>
chip_gen: v5e
topology: v5e:2x2
jax: 0.10.0
libtpu: 0.0.40
codegen_flags: <defaults>
</compile_context>

<pallas_src>
import math

import jax
import jax.numpy as jnp
from jax import lax
from jax.experimental import pallas as pl
from jax.experimental.pallas import tpu as pltpu

EPS = 1e-3          # BatchNorm eps from the module (nn.BatchNorm2d(..., eps=0.001))
EXPANSION = 4       # Bottleneck.expansion


# ----------------------------------------------------------------------------
# Kernel
# ----------------------------------------------------------------------------
def bottleneck_kernel(x_ref, w1_ref, b1_ref, w2_ref, b2_ref, w3_ref, b3_ref,
                      out_ref, pad_ref, col_ref):
    H, W, cin = x_ref.shape[1], x_ref.shape[2], x_ref.shape[3]
    cmid = w1_ref.shape[1]
    c3 = w3_ref.shape[1]
    zdt = pad_ref.dtype

    x = x_ref[0]                               # (H, W, Cin) bf16
    x2d = x.reshape(H * W, cin)                # channels stay on lanes

    # conv1 (1x1, BN1 scale folded into w1) + bias + ReLU  -> (H*W, Cm) f32
    a1 = jnp.dot(x2d, w1_ref[...], preferred_element_type=jnp.float32) + b1_ref[...]
    a1 = jnp.maximum(a1, 0.0)

    # conv2 (3x3, padding='same', BN2 scale folded) via im2col + ONE matmul.
    # Zero only the 1-element halo frame (interior is overwritten every step).
    pad_ref[pl.ds(0, 1), pl.ds(0, W + 2), :] = jnp.zeros((1, W + 2, cmid), zdt)
    pad_ref[pl.ds(H + 1, 1), pl.ds(0, W + 2), :] = jnp.zeros((1, W + 2, cmid), zdt)
    pad_ref[pl.ds(1, H), pl.ds(0, 1), :] = jnp.zeros((H, 1, cmid), zdt)
    pad_ref[pl.ds(1, H), pl.ds(W + 1, 1), :] = jnp.zeros((H, 1, cmid), zdt)
    pad_ref[pl.ds(1, H), pl.ds(1, W), :] = a1.reshape(H, W, cmid).astype(zdt)

    # Build im2col scratch: col[h, w, t*Cm + c] = pad[h+dy, w+dx, c], t = dy*3+dx.
    for dy in range(3):
        for dx in range(3):
            t = dy * 3 + dx
            col_ref[:, :, pl.ds(t * cmid, cmid)] = pad_ref[pl.ds(dy, H), pl.ds(dx, W), :]

    col = col_ref[...].reshape(H * W, 9 * cmid)            # free leading-dim merge
    a2 = jnp.dot(col, w2_ref[...], preferred_element_type=jnp.float32) + b2_ref[...]
    a2 = jnp.maximum(a2, 0.0)

    # conv3 (1x1, BN3 scale folded) + bias, residual add in f32, final ReLU
    a3 = jnp.dot(a2.astype(jnp.bfloat16), w3_ref[...],
                 preferred_element_type=jnp.float32) + b3_ref[...]
    y = jnp.maximum(a3 + x2d.astype(jnp.float32), 0.0)      # identity path (stride=1)
    out_ref[0] = y.reshape(H, W, c3).astype(out_ref.dtype)


# ----------------------------------------------------------------------------
# Wrapper (NHWC in, NHWC bf16 out — no layout transposes around the kernel)
# ----------------------------------------------------------------------------
def bottleneck_forward(x_nhwc, kparams):
    """x_nhwc: (N, H, W, C) float; returns (N, H, W, C) bfloat16."""
    N, H, W, cin = x_nhwc.shape
    cmid = kparams["w1"].shape[1]
    c3 = kparams["w3"].shape[1]
    assert cin == c3, "identity residual requires in_channels == out_channels * expansion"

    x = x_nhwc.astype(jnp.bfloat16)            # bf16 activation I/O

    flops = 2 * N * H * W * (cin * cmid + 9 * cmid * cmid + cmid * c3)
    bytes_accessed = (
        N * H * W * (cin + c3) * 2                                           # bf16 act I/O
        + (kparams["w1"].size + kparams["w2"].size + kparams["w3"].size) * 2  # bf16 weights
        + (kparams["b1"].size + kparams["b2"].size + kparams["b3"].size) * 4  # f32 biases
    )

    out = pl.pallas_call(
        bottleneck_kernel,
        out_shape=jax.ShapeDtypeStruct((N, H, W, c3), jnp.bfloat16),
        grid_spec=pltpu.PrefetchScalarGridSpec(
            num_scalar_prefetch=0,
            grid=(N,),
            in_specs=[
                pl.BlockSpec((1, H, W, cin), lambda n: (n, 0, 0, 0)),   # x tile (pipelined)
                pl.BlockSpec((cin, cmid), lambda n: (0, 0)),            # w1 (resident)
                pl.BlockSpec((1, cmid), lambda n: (0, 0)),              # b1
                pl.BlockSpec((9 * cmid, cmid), lambda n: (0, 0)),       # w2 (im2col K-major)
                pl.BlockSpec((1, cmid), lambda n: (0, 0)),              # b2
                pl.BlockSpec((cmid, c3), lambda n: (0, 0)),             # w3
                pl.BlockSpec((1, c3), lambda n: (0, 0)),                # b3
            ],
            out_specs=pl.BlockSpec((1, H, W, c3), lambda n: (n, 0, 0, 0)),
            scratch_shapes=[
                pltpu.VMEM((H + 2, W + 2, cmid), jnp.bfloat16),         # padded a1
                pltpu.VMEM((H, W, 9 * cmid), jnp.bfloat16),             # im2col
            ],
        ),
        compiler_params=pltpu.CompilerParams(
            dimension_semantics=("parallel",)),   # batch tiles -> both v7x TCs
        cost_estimate=pl.CostEstimate(flops=flops, transcendentals=0,
                                      bytes_accessed=bytes_accessed),
    )(x,
      kparams["w1"], kparams["b1"],
      kparams["w2"], kparams["b2"],
      kparams["w3"], kparams["b3"])

    return out


# ----------------------------------------------------------------------------
# Parameter construction (PyTorch layout) + BN folding into kernel layout
# ----------------------------------------------------------------------------
def init_raw_params(key, cin, cmid, expansion=EXPANSION):
    c3 = cmid * expansion
    ks = jax.random.split(key, 6)

    def u(k, shape, fan_in):
        bound = 1.0 / math.sqrt(fan_in)
        return jax.random.uniform(k, shape, jnp.float32, -bound, bound)

    def bn_params(k, c):
        k0, k1, k2, k3 = jax.random.split(k, 4)
        gamma = 1.0 + 0.1 * jax.random.normal(k0, (c,), jnp.float32)
        beta = 0.1 * jax.random.normal(k1, (c,), jnp.float32)
        mean = 0.1 * jax.random.normal(k2, (c,), jnp.float32)
        var = jax.random.uniform(k3, (c,), jnp.float32, 0.5, 1.5)
        return (gamma, beta, mean, var)

    return {
        "w1": u(ks[0], (cmid, cin, 1, 1), cin),          # OIHW, bias=False
        "w2": u(ks[1], (cmid, cmid, 3, 3), cmid * 9),
        "w3": u(ks[2], (c3, cmid, 1, 1), cmid),
        "bn1": bn_params(ks[3], cmid),
        "bn2": bn_params(ks[4], cmid),
        "bn3": bn_params(ks[5], c3),
    }


def fold_params(raw):
    """Fold eval-mode BN into conv weights (scale) + per-channel bias; bf16 weights."""
    w1, w2, w3 = raw["w1"], raw["w2"], raw["w3"]
    cmid = w1.shape[0]

    def fold(bn):
        gamma, beta, mean, var = bn
        scale = gamma / jnp.sqrt(var + EPS)
        bias = beta - mean * scale
        return scale, bias

    s1, b1 = fold(raw["bn1"])
    s2, b2 = fold(raw["bn2"])
    s3, b3 = fold(raw["bn3"])

    # conv1: OIHW (Cm, Cin, 1, 1) -> (Cin, Cm), scale on the output channel
    w1k = (w1[:, :, 0, 0].T * s1[None, :]).astype(jnp.bfloat16)
    # conv2: OIHW (Cm, Cm, 3, 3) -> (kh, kw, Cin, Cout) -> (9*Cm, Cm) (tap-major K)
    w2k = (jnp.transpose(w2, (2, 3, 1, 0)) * s2[None, None, None, :])
    w2k = w2k.reshape(9 * cmid, cmid).astype(jnp.bfloat16)
    # conv3: (C3, Cm, 1, 1) -> (Cm, C3)
    w3k = (w3[:, :, 0, 0].T * s3[None, :]).astype(jnp.bfloat16)

    return {
        "w1": w1k, "b1": b1[None, :].astype(jnp.float32),
        "w2": w2k, "b2": b2[None, :].astype(jnp.float32),
        "w3": w3k, "b3": b3[None, :].astype(jnp.float32),
    }


# ----------------------------------------------------------------------------
# Pure-JAX reference of the exact PyTorch forward (eval-mode BN), f32, NHWC
# ----------------------------------------------------------------------------
def _reference_forward(x, raw):
    def bn(y, p):
        g, b, m, v = p
        inv = g / jnp.sqrt(v + EPS)
        return (y - m) * inv + b                          # channels on last axis

    def hwio(w):
        return jnp.transpose(w, (2, 3, 1, 0))

    dn = ("NHWC", "HWIO", "NHWC")
    y = lax.conv_general_dilated(x, hwio(raw["w1"]), (1, 1), "VALID", dimension_numbers=dn)
    y = jax.nn.relu(bn(y, raw["bn1"]))
    y = lax.conv_general_dilated(y, hwio(raw["w2"]), (1, 1), "SAME", dimension_numbers=dn)
    y = jax.nn.relu(bn(y, raw["bn2"]))
    y = lax.conv_general_dilated(y, hwio(raw["w3"]), (1, 1), "VALID", dimension_numbers=dn)
    y = bn(y, raw["bn3"])
    return jax.nn.relu(y + x)                             # identity residual


if __name__ == "__main__":
    key = jax.random.PRNGKey(0)
    kx, kp = jax.random.split(key)

    # Small, lane-friendly shapes: Cmid=64 (so conv2 K=9*64=576), Cin = 4*Cmid = 256.
    N, H, W = 2, 16, 16
    CMID = 64
    CIN = CMID * EXPANSION            # identity residual requires Cin == Cmid*expansion

    x_f32 = jax.random.normal(kx, (N, H, W, CIN), jnp.float32)
    x_bf16 = x_f32.astype(jnp.bfloat16)                   # bf16 activations end-to-end

    raw = init_raw_params(kp, CIN, CMID)
    kparams = fold_params(raw)

    out = jax.block_until_ready(bottleneck_forward(x_bf16, kparams))
    ref = jax.block_until_ready(_reference_forward(x_bf16.astype(jnp.float32), raw))

    assert out.shape == (N, H, W, CIN)
    out_f32 = out.astype(jnp.float32)
    assert bool(jnp.all(out_f32 >= 0.0))                  # final ReLU
    max_err = float(jnp.max(jnp.abs(out_f32 - ref)))
    assert jnp.allclose(out_f32, ref, atol=3e-2, rtol=3e-2), max_err
    print("KERNEL_OK")
</pallas_src>

<mosaic_0001>
module attributes {stable_mosaic.version = 11 : i64} {
  func.func @bottleneck_kernel(%arg0: i32, %arg1: memref<1x16x16x256xbf16, #tpu.memory_space<vmem>>, %arg2: memref<256x64xbf16, #tpu.memory_space<vmem>>, %arg3: memref<1x64xf32, #tpu.memory_space<vmem>>, %arg4: memref<576x64xbf16, #tpu.memory_space<vmem>>, %arg5: memref<1x64xf32, #tpu.memory_space<vmem>>, %arg6: memref<64x256xbf16, #tpu.memory_space<vmem>>, %arg7: memref<1x256xf32, #tpu.memory_space<vmem>>, %arg8: memref<1x16x16x256xbf16, #tpu.memory_space<vmem>>, %arg9: memref<18x18x64xbf16, #tpu.memory_space<vmem>>, %arg10: memref<16x16x576xbf16, #tpu.memory_space<vmem>>) attributes {dimension_semantics = [#tpu.dimension_semantics<parallel>], iteration_bounds = array<i64: 2>, scalar_prefetch = 0 : i64, scratch_operands = 2 : i64, tpu.core_type = #tpu.core_type<tc>, window_params = [{transform_indices = @transform_0, window_bounds = array<i64: 1, 16, 16, 256>}, {pipeline_mode = #tpu.pipeline_mode<synchronous>, transform_indices = @transform_1, window_bounds = array<i64: 256, 64>}, {pipeline_mode = #tpu.pipeline_mode<synchronous>, transform_indices = @transform_2, window_bounds = array<i64: 1, 64>}, {pipeline_mode = #tpu.pipeline_mode<synchronous>, transform_indices = @transform_3, window_bounds = array<i64: 576, 64>}, {pipeline_mode = #tpu.pipeline_mode<synchronous>, transform_indices = @transform_4, window_bounds = array<i64: 1, 64>}, {pipeline_mode = #tpu.pipeline_mode<synchronous>, transform_indices = @transform_5, window_bounds = array<i64: 64, 256>}, {pipeline_mode = #tpu.pipeline_mode<synchronous>, transform_indices = @transform_6, window_bounds = array<i64: 1, 256>}, {transform_indices = @transform_7, window_bounds = array<i64: 1, 16, 16, 256>}]} {
    %c0 = arith.constant 0 : index
    %c0_0 = arith.constant 0 : index
    %c0_1 = arith.constant 0 : index
    %c0_2 = arith.constant 0 : index
    %0 = vector.load %arg1[%c0, %c0_0, %c0_1, %c0_2] : memref<1x16x16x256xbf16, #tpu.memory_space<vmem>>, vector<1x16x16x256xbf16>
    %1 = vector.shape_cast %0 : vector<1x16x16x256xbf16> to vector<16x16x256xbf16>
    %2 = vector.shape_cast %1 : vector<16x16x256xbf16> to vector<256x256xbf16>
    %c0_3 = arith.constant 0 : index
    %c0_4 = arith.constant 0 : index
    %3 = vector.load %arg2[%c0_3, %c0_4] : memref<256x64xbf16, #tpu.memory_space<vmem>>, vector<256x64xbf16>
    %cst = arith.constant dense<0.000000e+00> : vector<256x64xf32>
    %4 = tpu.matmul %2, %3, %cst {dimension_numbers = #tpu.dot_dimension_numbers<[1], [0], [0], [1], [0, 0, 1, 1], [], []>} : vector<256x256xbf16>, vector<256x64xbf16>, vector<256x64xf32> -> vector<256x64xf32>
    %c0_5 = arith.constant 0 : index
    %c0_6 = arith.constant 0 : index
    %5 = vector.load %arg3[%c0_5, %c0_6] : memref<1x64xf32, #tpu.memory_space<vmem>>, vector<1x64xf32>
    %6 = vector.broadcast %5 : vector<1x64xf32> to vector<256x64xf32>
    %7 = arith.addf %4, %6 : vector<256x64xf32>
    %cst_7 = arith.constant 0.000000e+00 : f32
    %8 = vector.broadcast %cst_7 : f32 to vector<256x64xf32>
    %9 = arith.maximumf %7, %8 : vector<256x64xf32>
    %cst_8 = arith.constant 0.000000e+00 : bf16
    %10 = vector.broadcast %cst_8 : bf16 to vector<1x18x64xbf16>
    %c0_9 = arith.constant 0 : index
    %c0_10 = arith.constant 0 : index
    %c0_11 = arith.constant 0 : index
    %11 = vector.load %arg9[%c0_9, %c0_10, %c0_11] : memref<18x18x64xbf16, #tpu.memory_space<vmem>>, vector<1x18x64xbf16>
    tpu.vector_store %arg9[%c0_9, %c0_10, %c0_11], %10 {strides = array<i32>} : memref<18x18x64xbf16, #tpu.memory_space<vmem>>, vector<1x18x64xbf16>,
    %cst_12 = arith.constant 0.000000e+00 : bf16
    %12 = vector.broadcast %cst_12 : bf16 to vector<1x18x64xbf16>
    %c17 = arith.constant 17 : index
    %c0_13 = arith.constant 0 : index
    %c0_14 = arith.constant 0 : index
    %13 = vector.load %arg9[%c17, %c0_13, %c0_14] : memref<18x18x64xbf16, #tpu.memory_space<vmem>>, vector<1x18x64xbf16>
    tpu.vector_store %arg9[%c17, %c0_13, %c0_14], %12 {strides = array<i32>} : memref<18x18x64xbf16, #tpu.memory_space<vmem>>, vector<1x18x64xbf16>,
    %cst_15 = arith.constant 0.000000e+00 : bf16
    %14 = vector.broadcast %cst_15 : bf16 to vector<16x1x64xbf16>
    %c1 = arith.constant 1 : index
    %c0_16 = arith.constant 0 : index
    %c0_17 = arith.constant 0 : index
    %15 = vector.load %arg9[%c1, %c0_16, %c0_17] : memref<18x18x64xbf16, #tpu.memory_space<vmem>>, vector<16x1x64xbf16>
    tpu.vector_store %arg9[%c1, %c0_16, %c0_17], %14 {strides = array<i32>} : memref<18x18x64xbf16, #tpu.memory_space<vmem>>, vector<16x1x64xbf16>,
    %cst_18 = arith.constant 0.000000e+00 : bf16
    %16 = vector.broadcast %cst_18 : bf16 to vector<16x1x64xbf16>
    %c1_19 = arith.constant 1 : index
    %c17_20 = arith.constant 17 : index
    %c0_21 = arith.constant 0 : index
    %17 = vector.load %arg9[%c1_19, %c17_20, %c0_21] : memref<18x18x64xbf16, #tpu.memory_space<vmem>>, vector<16x1x64xbf16>
    tpu.vector_store %arg9[%c1_19, %c17_20, %c0_21], %16 {strides = array<i32>} : memref<18x18x64xbf16, #tpu.memory_space<vmem>>, vector<16x1x64xbf16>,
    %18 = vector.shape_cast %9 : vector<256x64xf32> to vector<16x16x64xf32>
    %19 = arith.truncf %18 : vector<16x16x64xf32> to vector<16x16x64xbf16>
    %c1_22 = arith.constant 1 : index
    %c1_23 = arith.constant 1 : index
    %c0_24 = arith.constant 0 : index
    %20 = vector.load %arg9[%c1_22, %c1_23, %c0_24] : memref<18x18x64xbf16, #tpu.memory_space<vmem>>, vector<16x16x64xbf16>
    tpu.vector_store %arg9[%c1_22, %c1_23, %c0_24], %19 {strides = array<i32>} : memref<18x18x64xbf16, #tpu.memory_space<vmem>>, vector<16x16x64xbf16>,
    %c0_25 = arith.constant 0 : index
    %c0_26 = arith.constant 0 : index
    %c0_27 = arith.constant 0 : index
    %21 = vector.load %arg9[%c0_25, %c0_26, %c0_27] : memref<18x18x64xbf16, #tpu.memory_space<vmem>>, vector<16x16x64xbf16>
    %c0_28 = arith.constant 0 : index
    %c0_29 = arith.constant 0 : index
    %c0_30 = arith.constant 0 : index
    %22 = vector.load %arg10[%c0_28, %c0_29, %c0_30] : memref<16x16x576xbf16, #tpu.memory_space<vmem>>, vector<16x16x64xbf16>
    tpu.vector_store %arg10[%c0_28, %c0_29, %c0_30], %21 {strides = array<i32>} : memref<16x16x576xbf16, #tpu.memory_space<vmem>>, vector<16x16x64xbf16>,
    %c0_31 = arith.constant 0 : index
    %c1_32 = arith.constant 1 : index
    %c0_33 = arith.constant 0 : index
    %23 = vector.load %arg9[%c0_31, %c1_32, %c0_33] : memref<18x18x64xbf16, #tpu.memory_space<vmem>>, vector<16x16x64xbf16>
    %c0_34 = arith.constant 0 : index
    %c0_35 = arith.constant 0 : index
    %c64 = arith.constant 64 : index
    %24 = vector.load %arg10[%c0_34, %c0_35, %c64] : memref<16x16x576xbf16, #tpu.memory_space<vmem>>, vector<16x16x64xbf16>
    tpu.vector_store %arg10[%c0_34, %c0_35, %c64], %23 {strides = array<i32>} : memref<16x16x576xbf16, #tpu.memory_space<vmem>>, vector<16x16x64xbf16>,
    %c0_36 = arith.constant 0 : index
    %c2 = arith.constant 2 : index
    %c0_37 = arith.constant 0 : index
    %25 = vector.load %arg9[%c0_36, %c2, %c0_37] : memref<18x18x64xbf16, #tpu.memory_space<vmem>>, vector<16x16x64xbf16>
    %c0_38 = arith.constant 0 : index
    %c0_39 = arith.constant 0 : index
    %c128 = arith.constant 128 : index
    %26 = vector.load %arg10[%c0_38, %c0_39, %c128] : memref<16x16x576xbf16, #tpu.memory_space<vmem>>, vector<16x16x64xbf16>
    tpu.vector_store %arg10[%c0_38, %c0_39, %c128], %25 {strides = array<i32>} : memref<16x16x576xbf16, #tpu.memory_space<vmem>>, vector<16x16x64xbf16>,
    %c1_40 = arith.constant 1 : index
    %c0_41 = arith.constant 0 : index
    %c0_42 = arith.constant 0 : index
    %27 = vector.load %arg9[%c1_40, %c0_41, %c0_42] : memref<18x18x64xbf16, #tpu.memory_space<vmem>>, vector<16x16x64xbf16>
    %c0_43 = arith.constant 0 : index
    %c0_44 = arith.constant 0 : index
    %c192 = arith.constant 192 : index
    %28 = vector.load %arg10[%c0_43, %c0_44, %c192] : memref<16x16x576xbf16, #tpu.memory_space<vmem>>, vector<16x16x64xbf16>
    tpu.vector_store %arg10[%c0_43, %c0_44, %c192], %27 {strides = array<i32>} : memref<16x16x576xbf16, #tpu.memory_space<vmem>>, vector<16x16x64xbf16>,
    %c1_45 = arith.constant 1 : index
    %c1_46 = arith.constant 1 : index
    %c0_47 = arith.constant 0 : index
    %29 = vector.load %arg9[%c1_45, %c1_46, %c0_47] : memref<18x18x64xbf16, #tpu.memory_space<vmem>>, vector<16x16x64xbf16>
    %c0_48 = arith.constant 0 : index
    %c0_49 = arith.constant 0 : index
    %c256 = arith.constant 256 : index
    %30 = vector.load %arg10[%c0_48, %c0_49, %c256] : memref<16x16x576xbf16, #tpu.memory_space<vmem>>, vector<16x16x64xbf16>
    tpu.vector_store %arg10[%c0_48, %c0_49, %c256], %29 {strides = array<i32>} : memref<16x16x576xbf16, #tpu.memory_space<vmem>>, vector<16x16x64xbf16>,
    %c1_50 = arith.constant 1 : index
    %c2_51 = arith.constant 2 : index
    %c0_52 = arith.constant 0 : index
    %31 = vector.load %arg9[%c1_50, %c2_51, %c0_52] : memref<18x18x64xbf16, #tpu.memory_space<vmem>>, vector<16x16x64xbf16>
    %c0_53 = arith.constant 0 : index
    %c0_54 = arith.constant 0 : index
    %c320 = arith.constant 320 : index
    %32 = vector.load %arg10[%c0_53, %c0_54, %c320] : memref<16x16x576xbf16, #tpu.memory_space<vmem>>, vector<16x16x64xbf16>
    tpu.vector_store %arg10[%c0_53, %c0_54, %c320], %31 {strides = array<i32>} : memref<16x16x576xbf16, #tpu.memory_space<vmem>>, vector<16x16x64xbf16>,
    %c2_55 = arith.constant 2 : index
    %c0_56 = arith.constant 0 : index
    %c0_57 = arith.constant 0 : index
    %33 = vector.load %arg9[%c2_55, %c0_56, %c0_57] : memref<18x18x64xbf16, #tpu.memory_space<vmem>>, vector<16x16x64xbf16>
    %c0_58 = arith.constant 0 : index
    %c0_59 = arith.constant 0 : index
    %c384 = arith.constant 384 : index
    %34 = vector.load %arg10[%c0_58, %c0_59, %c384] : memref<16x16x576xbf16, #tpu.memory_space<vmem>>, vector<16x16x64xbf16>
    tpu.vector_store %arg10[%c0_58, %c0_59, %c384], %33 {strides = array<i32>} : memref<16x16x576xbf16, #tpu.memory_space<vmem>>, vector<16x16x64xbf16>,
    %c2_60 = arith.constant 2 : index
    %c1_61 = arith.constant 1 : index
    %c0_62 = arith.constant 0 : index
    %35 = vector.load %arg9[%c2_60, %c1_61, %c0_62] : memref<18x18x64xbf16, #tpu.memory_space<vmem>>, vector<16x16x64xbf16>
    %c0_63 = arith.constant 0 : index
    %c0_64 = arith.constant 0 : index
    %c448 = arith.constant 448 : index
    %36 = vector.load %arg10[%c0_63, %c0_64, %c448] : memref<16x16x576xbf16, #tpu.memory_space<vmem>>, vector<16x16x64xbf16>
    tpu.vector_store %arg10[%c0_63, %c0_64, %c448], %35 {strides = array<i32>} : memref<16x16x576xbf16, #tpu.memory_space<vmem>>, vector<16x16x64xbf16>,
    %c2_65 = arith.constant 2 : index
    %c2_66 = arith.constant 2 : index
    %c0_67 = arith.constant 0 : index
    %37 = vector.load %arg9[%c2_65, %c2_66, %c0_67] : memref<18x18x64xbf16, #tpu.memory_space<vmem>>, vector<16x16x64xbf16>
    %c0_68 = arith.constant 0 : index
    %c0_69 = arith.constant 0 : index
    %c512 = arith.constant 512 : index
    %38 = vector.load %arg10[%c0_68, %c0_69, %c512] : memref<16x16x576xbf16, #tpu.memory_space<vmem>>, vector<16x16x64xbf16>
    tpu.vector_store %arg10[%c0_68, %c0_69, %c512], %37 {strides = array<i32>} : memref<16x16x576xbf16, #tpu.memory_space<vmem>>, vector<16x16x64xbf16>,
    %c0_70 = arith.constant 0 : index
    %c0_71 = arith.constant 0 : index
    %c0_72 = arith.constant 0 : index
    %39 = vector.load %arg10[%c0_70, %c0_71, %c0_72] : memref<16x16x576xbf16, #tpu.memory_space<vmem>>, vector<16x16x576xbf16>
    %40 = vector.shape_cast %39 : vector<16x16x576xbf16> to vector<256x576xbf16>
    %c0_73 = arith.constant 0 : index
    %c0_74 = arith.constant 0 : index
    %41 = vector.load %arg4[%c0_73, %c0_74] : memref<576x64xbf16, #tpu.memory_space<vmem>>, vector<576x64xbf16>
    %cst_75 = arith.constant dense<0.000000e+00> : vector<256x64xf32>
    %42 = tpu.matmul %40, %41, %cst_75 {dimension_numbers = #tpu.dot_dimension_numbers<[1], [0], [0], [1], [0, 0, 1, 1], [], []>} : vector<256x576xbf16>, vector<576x64xbf16>, vector<256x64xf32> -> vector<256x64xf32>
    %c0_76 = arith.constant 0 : index
    %c0_77 = arith.constant 0 : index
    %43 = vector.load %arg5[%c0_76, %c0_77] : memref<1x64xf32, #tpu.memory_space<vmem>>, vector<1x64xf32>
    %44 = vector.broadcast %43 : vector<1x64xf32> to vector<256x64xf32>
    %45 = arith.addf %42, %44 : vector<256x64xf32>
    %cst_78 = arith.constant 0.000000e+00 : f32
    %46 = vector.broadcast %cst_78 : f32 to vector<256x64xf32>
    %47 = arith.maximumf %45, %46 : vector<256x64xf32>
    %48 = arith.truncf %47 : vector<256x64xf32> to vector<256x64xbf16>
    %c0_79 = arith.constant 0 : index
    %c0_80 = arith.constant 0 : index
    %49 = vector.load %arg6[%c0_79, %c0_80] : memref<64x256xbf16, #tpu.memory_space<vmem>>, vector<64x256xbf16>
    %cst_81 = arith.constant dense<0.000000e+00> : vector<256x256xf32>
    %50 = tpu.matmul %48, %49, %cst_81 {dimension_numbers = #tpu.dot_dimension_numbers<[1], [0], [0], [1], [0, 0, 1, 1], [], []>} : vector<256x64xbf16>, vector<64x256xbf16>, vector<256x256xf32> -> vector<256x256xf32>
    %c0_82 = arith.constant 0 : index
    %c0_83 = arith.constant 0 : index
    %51 = vector.load %arg7[%c0_82, %c0_83] : memref<1x256xf32, #tpu.memory_space<vmem>>, vector<1x256xf32>
    %52 = vector.broadcast %51 : vector<1x256xf32> to vector<256x256xf32>
    %53 = arith.addf %50, %52 : vector<256x256xf32>
    %54 = arith.extf %2 : vector<256x256xbf16> to vector<256x256xf32>
    %55 = arith.addf %53, %54 : vector<256x256xf32>
    %cst_84 = arith.constant 0.000000e+00 : f32
    %56 = vector.broadcast %cst_84 : f32 to vector<256x256xf32>
    %57 = arith.maximumf %55, %56 : vector<256x256xf32>
    %58 = vector.shape_cast %57 : vector<256x256xf32> to vector<16x16x256xf32>
    %59 = arith.truncf %58 : vector<16x16x256xf32> to vector<16x16x256xbf16>
    %c0_85 = arith.constant 0 : index
    %c0_86 = arith.constant 0 : index
    %c0_87 = arith.constant 0 : index
    %c0_88 = arith.constant 0 : index
    %60 = vector.load %arg8[%c0_85, %c0_86, %c0_87, %c0_88] : memref<1x16x16x256xbf16, #tpu.memory_space<vmem>>, vector<1x16x16x256xbf16>
    %61 = vector.shape_cast %60 : vector<1x16x16x256xbf16> to vector<16x16x256xbf16>
    %62 = vector.shape_cast %59 : vector<16x16x256xbf16> to vector<1x16x16x256xbf16>
    tpu.vector_store %arg8[%c0_85, %c0_86, %c0_87, %c0_88], %62 {strides = array<i32>} : memref<1x16x16x256xbf16, #tpu.memory_space<vmem>>, vector<1x16x16x256xbf16>,
    return
  }
  func.func @transform_0(%arg0: i32) -> (i32, i32, i32, i32) {
    %c0_i32 = arith.constant 0 : i32
    %c0_i32_0 = arith.constant 0 : i32
    %c0_i32_1 = arith.constant 0 : i32
    %c0_i32_2 = arith.constant 0 : i32
    return %arg0, %c0_i32, %c0_i32_0, %c0_i32_1 : i32, i32, i32, i32
  }
  func.func @transform_1(%arg0: i32) -> (i32, i32) {
    %c0_i32 = arith.constant 0 : i32
    %c0_i32_0 = arith.constant 0 : i32
    %c0_i32_1 = arith.constant 0 : i32
    return %c0_i32, %c0_i32_0 : i32, i32
  }
  func.func @transform_2(%arg0: i32) -> (i32, i32) {
    %c0_i32 = arith.constant 0 : i32
    %c0_i32_0 = arith.constant 0 : i32
    %c0_i32_1 = arith.constant 0 : i32
    return %c0_i32, %c0_i32_0 : i32, i32
  }
  func.func @transform_3(%arg0: i32) -> (i32, i32) {
    %c0_i32 = arith.constant 0 : i32
    %c0_i32_0 = arith.constant 0 : i32
    %c0_i32_1 = arith.constant 0 : i32
    return %c0_i32, %c0_i32_0 : i32, i32
  }
  func.func @transform_4(%arg0: i32) -> (i32, i32) {
    %c0_i32 = arith.constant 0 : i32
    %c0_i32_0 = arith.constant 0 : i32
    %c0_i32_1 = arith.constant 0 : i32
    return %c0_i32, %c0_i32_0 : i32, i32
  }
  func.func @transform_5(%arg0: i32) -> (i32, i32) {
    %c0_i32 = arith.constant 0 : i32
    %c0_i32_0 = arith.constant 0 : i32
    %c0_i32_1 = arith.constant 0 : i32
    return %c0_i32, %c0_i32_0 : i32, i32
  }
  func.func @transform_6(%arg0: i32) -> (i32, i32) {
    %c0_i32 = arith.constant 0 : i32
    %c0_i32_0 = arith.constant 0 : i32
    %c0_i32_1 = arith.constant 0 : i32
    return %c0_i32, %c0_i32_0 : i32, i32
  }
  func.func @transform_7(%arg0: i32) -> (i32, i32, i32, i32) {
    %c0_i32 = arith.constant 0 : i32
    %c0_i32_0 = arith.constant 0 : i32
    %c0_i32_1 = arith.constant 0 : i32
    %c0_i32_2 = arith.constant 0 : i32
    return %arg0, %c0_i32, %c0_i32_0, %c0_i32_1 : i32, i32, i32, i32
  }
}

</mosaic_0001>

<llo_original>
// kernel: tpu_custom_call.1
$region0: #{tpu_custom_call.1}
  #allocation0 [shape = 'u32[]', space=smem, size = 0x4, offset = 0x4, fixed_abs, tag = 'smem constant byte address 0x4 - core index']
  #allocation1 [shape = 'u32[72,128]{1,0:T(1,128)}', space=vmem, size = 0x9000, scoped, tag = 'internal scratch']
  #allocation2 [shape = 'bf16[18,18,64]{2,1,0:T(8,128)(2,1)}', space=vmem, size = 0x1b000, scoped, tag = 'scratch operand']
  #allocation3 [shape = 'bf16[16,16,576]{2,1,0:T(8,128)(2,1)}', space=vmem, size = 0x50000, scoped, tag = 'scratch operand']
  %s0 = inlined_call_operand.vmem [shape: bf16[2,16,16,256], index: 0, kind: input, shape index: {}]
  %s1 = inlined_call_operand.vmem [shape: bf16[256,64], index: 1, kind: input, shape index: {}]
  %s2 = inlined_call_operand.vmem [shape: f32[1,64], index: 2, kind: input, shape index: {}]
  %s3 = inlined_call_operand.vmem [shape: bf16[576,64], index: 3, kind: input, shape index: {}]
  %s4 = inlined_call_operand.vmem [shape: f32[1,64], index: 4, kind: input, shape index: {}]
  %s5 = inlined_call_operand.vmem [shape: bf16[64,256], index: 5, kind: input, shape index: {}]
  %s6 = inlined_call_operand.vmem [shape: f32[1,256], index: 6, kind: input, shape index: {}]
  %s7 = inlined_call_operand.hbm [shape: bf16[2,16,16,256], index: 7, kind: output, shape index: {}]
  %s8 = sld [smem:[#allocation0]]
  $region61: #{tpu_custom_call.1} parent=0
    _
  %s10 = ssub.s32 1, %s8
  %s11 = scalar_select 0, %s10, %s8
  $region1: #{tpu_custom_call.1} parent=0
    #allocation4 [shape = 'u8[262144]{0}', space=vmem, size = 0x40000, scoped, tag = 'output window, operand 0']
    #allocation5 [shape = 's32[2]{0}', space=sflag, size = 0x8, scoped, tag = 'scoped memory for tpu_custom_call.1']
    %12 = vsyncpa [#allocation5], 0
    %s13 = scalar_lea.sflag [#allocation5], 1
    %14 = vsyncpa %s13, 0
    loop: start=0, step=1, limit=4
    $region2: #{tpu_custom_call.1} parent=1 // loop_pre_header
      _
    $region3: #{tpu_custom_call.1} parent=1 // loop_header
      %s16 = sphi 0, %s20
      %p17 = scmp.ge.s32.totalorder %s16, 4
      %s26 = sphi 0, %s28
      %s29 = sphi 0, %s26
      %s30 = sphi 0, %s29
      %s46 = sphi 0, %s30
      %s50 = sphi 0, %s50
      %s52 = sphi 0, %s50
      %s53 = sphi 0, %s52
      %s67 = sphi 0, %s53
      %s71 = sphi 0, %s71
      %s73 = sphi 0, %s71
      %s74 = sphi 0, %s73
      %s88 = sphi 0, %s74
      %s92 = sphi 0, %s92
      %s94 = sphi 0, %s92
      %s95 = sphi 0, %s94
      %s109 = sphi 0, %s95
      %s113 = sphi 0, %s113
      %s115 = sphi 0, %s113
      %s116 = sphi 0, %s115
      %s130 = sphi 0, %s116
      %s134 = sphi 0, %s134
      %s136 = sphi 0, %s134
      %s137 = sphi 0, %s136
      %s151 = sphi 0, %s137
      %s155 = sphi 0, %s155
      %s157 = sphi 0, %s155
      %s158 = sphi 0, %s157
      %s172 = sphi 0, %s158
      %s178 = sphi 0, %s180
      %s181 = sphi 0, %s178
      %s182 = sphi 0, %s181
      %s198 = sphi 0, %s182
    $region4: #{tpu_custom_call.1} parent=1 // loop_header_branch
      %19 = sbr.rel (%p17) target = $region8
    $region5: #{tpu_custom_call.1} parent=1 // loop_body
      %s21 = ssub.s32 %s16, 1
      %s22 = ssub.s32 %s16, 2
      %s23 = sadd.s32 %s16, 1
      %s24 = ssub.s32 %s16, %s23
      %p25 = scmp.eq.s32.totalorder %s24, 0
      %s27 = sadd.s32 %s26, 1
      %s28 = scalar_select %p25, %s26, %s27
      %p31 = pneg %p25
      %p32 = scmp.eq.s32.totalorder %s16, 1
      %p33 = por %p31, %p32
      %p34 = scmp.ne.s32.totalorder %s26, %s29
      %p35 = scmp.eq.s32.totalorder %s16, 0
      %p36 = por %p34, %p35
      %p37 = scmp.ne.s32.totalorder %s26, %s29
      %p38 = scmp.eq.s32.totalorder %s21, 1
      %p39 = por %p37, %p38
      %p40 = scmp.ne.s32.totalorder %s29, %s30
      %p41 = scmp.eq.s32.totalorder %s21, 0
      %p42 = por %p40, %p41
      %p43 = scmp.ne.s32.totalorder %s29, %s30
      %p44 = scmp.eq.s32.totalorder %s22, 1
      %p45 = por %p43, %p44
      %p47 = scmp.ne.s32.totalorder %s30, %s46
      %p48 = scmp.eq.s32.totalorder %s22, 0
      %p49 = por %p47, %p48
      %s51 = sadd.s32 %s50, 1
      %p54 = scmp.eq.s32.totalorder %s16, 1
      %p55 = scmp.ne.s32.totalorder %s50, %s52
      %p56 = scmp.eq.s32.totalorder %s16, 0
      %p57 = por %p55, %p56
      %p58 = scmp.ne.s32.totalorder %s50, %s52
      %p59 = scmp.eq.s32.totalorder %s21, 1
      %p60 = por %p58, %p59
      %p61 = scmp.ne.s32.totalorder %s52, %s53
      %p62 = scmp.eq.s32.totalorder %s21, 0
      %p63 = por %p61, %p62
      %p64 = scmp.ne.s32.totalorder %s52, %s53
      %p65 = scmp.eq.s32.totalorder %s22, 1
      %p66 = por %p64, %p65
      %p68 = scmp.ne.s32.totalorder %s53, %s67
      %p69 = scmp.eq.s32.totalorder %s22, 0
      %p70 = por %p68, %p69
      %s72 = sadd.s32 %s71, 1
      %p75 = scmp.eq.s32.totalorder %s16, 1
      %p76 = scmp.ne.s32.totalorder %s71, %s73
      %p77 = scmp.eq.s32.totalorder %s16, 0
      %p78 = por %p76, %p77
      %p79 = scmp.ne.s32.totalorder %s71, %s73
      %p80 = scmp.eq.s32.totalorder %s21, 1
      %p81 = por %p79, %p80
      %p82 = scmp.ne.s32.totalorder %s73, %s74
      %p83 = scmp.eq.s32.totalorder %s21, 0
      %p84 = por %p82, %p83
      %p85 = scmp.ne.s32.totalorder %s73, %s74
      %p86 = scmp.eq.s32.totalorder %s22, 1
      %p87 = por %p85, %p86
      %p89 = scmp.ne.s32.totalorder %s74, %s88
      %p90 = scmp.eq.s32.totalorder %s22, 0
      %p91 = por %p89, %p90
      %s93 = sadd.s32 %s92, 1
      %p96 = scmp.eq.s32.totalorder %s16, 1
      %p97 = scmp.ne.s32.totalorder %s92, %s94
      %p98 = scmp.eq.s32.totalorder %s16, 0
      %p99 = por %p97, %p98
      %p100 = scmp.ne.s32.totalorder %s92, %s94
      %p101 = scmp.eq.s32.totalorder %s21, 1
      %p102 = por %p100, %p101
      %p103 = scmp.ne.s32.totalorder %s94, %s95
      %p104 = scmp.eq.s32.totalorder %s21, 0
      %p105 = por %p103, %p104
      %p106 = scmp.ne.s32.totalorder %s94, %s95
      %p107 = scmp.eq.s32.totalorder %s22, 1
      %p108 = por %p106, %p107
      %p110 = scmp.ne.s32.totalorder %s95, %s109
      %p111 = scmp.eq.s32.totalorder %s22, 0
      %p112 = por %p110, %p111
      %s114 = sadd.s32 %s113, 1
      %p117 = scmp.eq.s32.totalorder %s16, 1
      %p118 = scmp.ne.s32.totalorder %s113, %s115
      %p119 = scmp.eq.s32.totalorder %s16, 0
      %p120 = por %p118, %p119
      %p121 = scmp.ne.s32.totalorder %s113, %s115
      %p122 = scmp.eq.s32.totalorder %s21, 1
      %p123 = por %p121, %p122
      %p124 = scmp.ne.s32.totalorder %s115, %s116
      %p125 = scmp.eq.s32.totalorder %s21, 0
      %p126 = por %p124, %p125
      %p127 = scmp.ne.s32.totalorder %s115, %s116
      %p128 = scmp.eq.s32.totalorder %s22, 1
      %p129 = por %p127, %p128
      %p131 = scmp.ne.s32.totalorder %s116, %s130
      %p132 = scmp.eq.s32.totalorder %s22, 0
      %p133 = por %p131, %p132
      %s135 = sadd.s32 %s134, 1
      %p138 = scmp.eq.s32.totalorder %s16, 1
      %p139 = scmp.ne.s32.totalorder %s134, %s136
      %p140 = scmp.eq.s32.totalorder %s16, 0
      %p141 = por %p139, %p140
      %p142 = scmp.ne.s32.totalorder %s134, %s136
      %p143 = scmp.eq.s32.totalorder %s21, 1
      %p144 = por %p142, %p143
      %p145 = scmp.ne.s32.totalorder %s136, %s137
      %p146 = scmp.eq.s32.totalorder %s21, 0
      %p147 = por %p145, %p146
      %p148 = scmp.ne.s32.totalorder %s136, %s137
      %p149 = scmp.eq.s32.totalorder %s22, 1
      %p150 = por %p148, %p149
      %p152 = scmp.ne.s32.totalorder %s137, %s151
      %p153 = scmp.eq.s32.totalorder %s22, 0
      %p154 = por %p152, %p153
      %s156 = sadd.s32 %s155, 1
      %p159 = scmp.eq.s32.totalorder %s16, 1
      %p160 = scmp.ne.s32.totalorder %s155, %s157
      %p161 = scmp.eq.s32.totalorder %s16, 0
      %p162 = por %p160, %p161
      %p163 = scmp.ne.s32.totalorder %s155, %s157
      %p164 = scmp.eq.s32.totalorder %s21, 1
      %p165 = por %p163, %p164
      %p166 = scmp.ne.s32.totalorder %s157, %s158
      %p167 = scmp.eq.s32.totalorder %s21, 0
      %p168 = por %p166, %p167
      %p169 = scmp.ne.s32.totalorder %s157, %s158
      %p170 = scmp.eq.s32.totalorder %s22, 1
      %p171 = por %p169, %p170
      %p173 = scmp.ne.s32.totalorder %s158, %s172
      %p174 = scmp.eq.s32.totalorder %s22, 0
      %p175 = por %p173, %p174
      %s176 = ssub.s32 %s16, %s23
      %p177 = scmp.eq.s32.totalorder %s176, 0
      %s179 = sadd.s32 %s178, 1
      %s180 = scalar_select %p177, %s178, %s179
      %p183 = pneg %p177
      %p184 = scmp.eq.s32.totalorder %s16, 1
      %p185 = por %p183, %p184
      %p186 = scmp.ne.s32.totalorder %s178, %s181
      %p187 = scmp.eq.s32.totalorder %s16, 0
      %p188 = por %p186, %p187
      %p189 = scmp.ne.s32.totalorder %s178, %s181
      %p190 = scmp.eq.s32.totalorder %s21, 1
      %p191 = por %p189, %p190
      %p192 = scmp.ne.s32.totalorder %s181, %s182
      %p193 = scmp.eq.s32.totalorder %s21, 0
      %p194 = por %p192, %p193
      %p195 = scmp.ne.s32.totalorder %s181, %s182
      %p196 = scmp.eq.s32.totalorder %s22, 1
      %p197 = por %p195, %p196
      %p199 = scmp.ne.s32.totalorder %s182, %s198
      %p200 = scmp.eq.s32.totalorder %s22, 0
      %p201 = por %p199, %p200
      %p202 = scmp.le.s32.totalorder 1, %s16
      %p203 = scmp.lt.s32.totalorder %s16, 3
      %p204 = pnand %p202, %p203
      %p205 = pneg %p204
      // Predicated region
      $region9: #{tpu_custom_call.1} parent=5 // pred_check
        _
      $region10: #{tpu_custom_call.1} parent=5 // pred_check_branch
        %207 = sbr.rel (%p204) target = $region12
      $region11: #{tpu_custom_call.1} parent=5 // pred_region
        %s208 = ssub.s32 %s16, 1
        // Predicated region
        $region13: #{tpu_custom_call.1} parent=11 // pred_check
          %p209 = pneg %p63
        $region14: #{tpu_custom_call.1} parent=11 // pred_check_branch
          %211 = sbr.rel (%p209) target = $region16
        $region15: #{tpu_custom_call.1} parent=11 // pred_region
          _
        $region16: #{tpu_custom_call.1} parent=11 // pred_fallthru
          _
        // Predicated region
        $region17: #{tpu_custom_call.1} parent=11 // pred_check
          %p212 = pneg %p84
        $region18: #{tpu_custom_call.1} parent=11 // pred_check_branch
          %214 = sbr.rel (%p212) target = $region20
        $region19: #{tpu_custom_call.1} parent=11 // pred_region
          _
        $region20: #{tpu_custom_call.1} parent=11 // pred_fallthru
          _
        // Predicated region
        $region21: #{tpu_custom_call.1} parent=11 // pred_check
          %p215 = pneg %p105
        $region22: #{tpu_custom_call.1} parent=11 // pred_check_branch
          %217 = sbr.rel (%p215) target = $region24
        $region23: #{tpu_custom_call.1} parent=11 // pred_region
          _
        $region24: #{tpu_custom_call.1} parent=11 // pred_fallthru
          _
        // Predicated region
        $region25: #{tpu_custom_call.1} parent=11 // pred_check
          %p218 = pneg %p126
        $region26: #{tpu_custom_call.1} parent=11 // pred_check_branch
          %220 = sbr.rel (%p218) target = $region28
        $region27: #{tpu_custom_call.1} parent=11 // pred_region
          _
        $region28: #{tpu_custom_call.1} parent=11 // pred_fallthru
          _
        // Predicated region
        $region29: #{tpu_custom_call.1} parent=11 // pred_check
          %p221 = pneg %p147
        $region30: #{tpu_custom_call.1} parent=11 // pred_check_branch
          %223 = sbr.rel (%p221) target = $region32
        $region31: #{tpu_custom_call.1} parent=11 // pred_region
          _
        $region32: #{tpu_custom_call.1} parent=11 // pred_fallthru
          _
        // Predicated region
        $region33: #{tpu_custom_call.1} parent=11 // pred_check
          %p224 = pneg %p168
        $region34: #{tpu_custom_call.1} parent=11 // pred_check_branch
          %226 = sbr.rel (%p224) target = $region36
        $region35: #{tpu_custom_call.1} parent=11 // pred_region
          _
        $region36: #{tpu_custom_call.1} parent=11 // pred_fallthru
          _
      $region12: #{tpu_custom_call.1} parent=5 // pred_fallthru
        _
      %p227 = scmp.lt.s32.totalorder %s16, 2
      // Predicated region
      $region37: #{tpu_custom_call.1} parent=5 // pred_check
        %p228 = pneg %p227
      $region38: #{tpu_custom_call.1} parent=5 // pred_check_branch
        %230 = sbr.rel (%p228) target = $region40
      $region39: #{tpu_custom_call.1} parent=5 // pred_region
        // Predicated region
        $region41: #{tpu_custom_call.1} parent=39 // pred_check
          %p231 = pneg %p36
        $region42: #{tpu_custom_call.1} parent=39 // pred_check_branch
          %233 = sbr.rel (%p231) target = $region44
        $region43: #{tpu_custom_call.1} parent=39 // pred_region
          %p234 = scmp.lt.s32.totalorder %s16, 1
          %s235 = scalar_select %p234, %s16, 1
          %s236 = smul.addr %s235, 64
          %s237 = smul.addr %s236, 4
          %s238 = scalar_lea.vmem %s0, %s237
        $region44: #{tpu_custom_call.1} parent=39 // pred_fallthru
          _
      $region40: #{tpu_custom_call.1} parent=5 // pred_fallthru
        _
      %p239 = scmp.le.s32.totalorder 1, %s16
      %p240 = scmp.lt.s32.totalorder %s16, 3
      %p241 = pnand %p239, %p240
      %p242 = pneg %p241
      // Predicated region
      $region45: #{tpu_custom_call.1} parent=5 // pred_check
        _
      $region46: #{tpu_custom_call.1} parent=5 // pred_check_branch
        %244 = sbr.rel (%p241) target = $region48
      $region47: #{tpu_custom_call.1} parent=5 // pred_region
        %s245 = ssub.s32 %s16, 1
        %p246 = scmp.lt.s32.totalorder %s21, 1
        %s247 = scalar_select %p246, %s21, 1
        %s248 = smul.addr %s247, 64
        %s249 = smul.addr %s248, 4
        %s250 = scalar_lea.vmem %s0, %s249
        %p251 = pneg %p42
        %p252 = pneg %p39
        %p253 = pneg %p63
        %p254 = pneg %p60
        %p255 = pneg %p84
        %p256 = pneg %p81
        %p257 = pneg %p105
        %p258 = pneg %p102
        %p259 = pneg %p126
        %p260 = pneg %p123
        %p261 = pneg %p147
        %p262 = pneg %p144
        %p263 = pneg %p168
        %p264 = pneg %p165
        %p265 = pneg %p194
        %p266 = pneg %p191
        %s267 = sand.u32 %s181, 1
        %s268 = scalar_lea.sflag [#allocation5], %s267
        %s269 = sand.u32 %s181, 1
        %s270 = smul.addr %s269, 256
        %s271 = scalar_lea.vmem [#allocation4], %s270
        %p272 = scmp.lt.s32.totalorder %s21, 1
        %s273 = scalar_select %p272, %s21, 1
        %s274 = smul.addr %s273, 64
        %s275 = smul.addr %s274, 4
        %s276 = scalar_lea.vmem %s0, %s275
        %v278 = vld [vmem:[%s276] sm:$0xff]
        %v279 = vld [vmem:[%s276 + $0x8] sm:$0xff]
        %v280 = vld [vmem:[%s276 + $0x10] sm:$0xff]
        %v281 = vld [vmem:[%s276 + $0x18] sm:$0xff]
        %v282 = vld [vmem:[%s276 + $0x20] sm:$0xff]
        %v283 = vld [vmem:[%s276 + $0x28] sm:$0xff]
        %v284 = vld [vmem:[%s276 + $0x30] sm:$0xff]
        %v285 = vld [vmem:[%s276 + $0x38] sm:$0xff]
        %v286 = vld [vmem:[%s276 + $0x40] sm:$0xff]
        %v287 = vld [vmem:[%s276 + $0x48] sm:$0xff]
        %v288 = vld [vmem:[%s276 + $0x50] sm:$0xff]
        %v289 = vld [vmem:[%s276 + $0x58] sm:$0xff]
        %v290 = vld [vmem:[%s276 + $0x60] sm:$0xff]
        %v291 = vld [vmem:[%s276 + $0x68] sm:$0xff]
        %v292 = vld [vmem:[%s276 + $0x70] sm:$0xff]
        %v293 = vld [vmem:[%s276 + $0x78] sm:$0xff]
        %v294 = vld [vmem:[%s276 + $0x80] sm:$0xff]
        %v295 = vld [vmem:[%s276 + $0x88] sm:$0xff]
        %v296 = vld [vmem:[%s276 + $0x90] sm:$0xff]
        %v297 = vld [vmem:[%s276 + $0x98] sm:$0xff]
        %v298 = vld [vmem:[%s276 + $0xa0] sm:$0xff]
        %v299 = vld [vmem:[%s276 + $0xa8] sm:$0xff]
        %v300 = vld [vmem:[%s276 + $0xb0] sm:$0xff]
        %v301 = vld [vmem:[%s276 + $0xb8] sm:$0xff]
        %v302 = vld [vmem:[%s276 + $0xc0] sm:$0xff]
        %v303 = vld [vmem:[%s276 + $0xc8] sm:$0xff]
        %v304 = vld [vmem:[%s276 + $0xd0] sm:$0xff]
        %v305 = vld [vmem:[%s276 + $0xd8] sm:$0xff]
        %v306 = vld [vmem:[%s276 + $0xe0] sm:$0xff]
        %v307 = vld [vmem:[%s276 + $0xe8] sm:$0xff]
        %v308 = vld [vmem:[%s276 + $0xf0] sm:$0xff]
        %v309 = vld [vmem:[%s276 + $0xf8] sm:$0xff]
        %v310 = vld [vmem:[%s1] sm:$0xf]
        %v311 = vld [vmem:[%s1 + $0x4] sm:$0xf]
        %v312 = vld [vmem:[%s1 + $0x8] sm:$0xf]
        %v313 = vld [vmem:[%s1 + $0xc] sm:$0xf]
        %v314 = vld [vmem:[%s1 + $0x10] sm:$0xf]
        %v315 = vld [vmem:[%s1 + $0x14] sm:$0xf]
        %v316 = vld [vmem:[%s1 + $0x18] sm:$0xf]
        %v317 = vld [vmem:[%s1 + $0x1c] sm:$0xf]
        %v318 = vld [vmem:[%s1 + $0x20] sm:$0xf]
        %v319 = vld [vmem:[%s1 + $0x24] sm:$0xf]
        %v320 = vld [vmem:[%s1 + $0x28] sm:$0xf]
        %v321 = vld [vmem:[%s1 + $0x2c] sm:$0xf]
        %v322 = vld [vmem:[%s1 + $0x30] sm:$0xf]
        %v323 = vld [vmem:[%s1 + $0x34] sm:$0xf]
        %v324 = vld [vmem:[%s1 + $0x38] sm:$0xf]
        %v325 = vld [vmem:[%s1 + $0x3c] sm:$0xf]
        %v326 = vld [vmem:[%s1 + $0x40] sm:$0xf]
        %v327 = vld [vmem:[%s1 + $0x44] sm:$0xf]
        %v328 = vld [vmem:[%s1 + $0x48] sm:$0xf]
        %v329 = vld [vmem:[%s1 + $0x4c] sm:$0xf]
        %v330 = vld [vmem:[%s1 + $0x50] sm:$0xf]
        %v331 = vld [vmem:[%s1 + $0x54] sm:$0xf]
        %v332 = vld [vmem:[%s1 + $0x58] sm:$0xf]
        %v333 = vld [vmem:[%s1 + $0x5c] sm:$0xf]
        %v334 = vld [vmem:[%s1 + $0x60] sm:$0xf]
        %v335 = vld [vmem:[%s1 + $0x64] sm:$0xf]
        %v336 = vld [vmem:[%s1 + $0x68] sm:$0xf]
        %v337 = vld [vmem:[%s1 + $0x6c] sm:$0xf]
        %v338 = vld [vmem:[%s1 + $0x70] sm:$0xf]
        %v339 = vld [vmem:[%s1 + $0x74] sm:$0xf]
        %v340 = vld [vmem:[%s1 + $0x78] sm:$0xf]
        %v341 = vld [vmem:[%s1 + $0x7c] sm:$0xf]
        %v342 = vld [vmem:[%s2] sm:$0x1]
        %v344 = vperm.slane %v342, 0
        %v378 = vunpack.c.l.b16 %v278
        %v379 = vunpack.c.h.b16 %v278
        %v380 = vunpack.c.l.b16 %v279
        %v381 = vunpack.c.h.b16 %v279
        %v382 = vunpack.c.l.b16 %v280
        %v383 = vunpack.c.h.b16 %v280
        %v384 = vunpack.c.l.b16 %v281
        %v385 = vunpack.c.h.b16 %v281
        %v386 = vunpack.c.l.b16 %v282
        %v387 = vunpack.c.h.b16 %v282
        %v388 = vunpack.c.l.b16 %v283
        %v389 = vunpack.c.h.b16 %v283
        %v390 = vunpack.c.l.b16 %v284
        %v391 = vunpack.c.h.b16 %v284
        %v392 = vunpack.c.l.b16 %v285
        %v393 = vunpack.c.h.b16 %v285
        %v394 = vunpack.c.l.b16 %v286
        %v395 = vunpack.c.h.b16 %v286
        %v396 = vunpack.c.l.b16 %v287
        %v397 = vunpack.c.h.b16 %v287
        %v398 = vunpack.c.l.b16 %v288
        %v399 = vunpack.c.h.b16 %v288
        %v400 = vunpack.c.l.b16 %v289
        %v401 = vunpack.c.h.b16 %v289
        %v402 = vunpack.c.l.b16 %v290
        %v403 = vunpack.c.h.b16 %v290
        %v404 = vunpack.c.l.b16 %v291
        %v405 = vunpack.c.h.b16 %v291
        %v406 = vunpack.c.l.b16 %v292
        %v407 = vunpack.c.h.b16 %v292
        %v408 = vunpack.c.l.b16 %v293
        %v409 = vunpack.c.h.b16 %v293
        %v410 = vunpack.c.l.b16 %v294
        %v411 = vunpack.c.h.b16 %v294
        %v412 = vunpack.c.l.b16 %v295
        %v413 = vunpack.c.h.b16 %v295
        %v414 = vunpack.c.l.b16 %v296
        %v415 = vunpack.c.h.b16 %v296
        %v416 = vunpack.c.l.b16 %v297
        %v417 = vunpack.c.h.b16 %v297
        %v418 = vunpack.c.l.b16 %v298
        %v419 = vunpack.c.h.b16 %v298
        %v420 = vunpack.c.l.b16 %v299
        %v421 = vunpack.c.h.b16 %v299
        %v422 = vunpack.c.l.b16 %v300
        %v423 = vunpack.c.h.b16 %v300
        %v424 = vunpack.c.l.b16 %v301
        %v425 = vunpack.c.h.b16 %v301
        %v426 = vunpack.c.l.b16 %v302
        %v427 = vunpack.c.h.b16 %v302
        %v428 = vunpack.c.l.b16 %v303
        %v429 = vunpack.c.h.b16 %v303
        %v430 = vunpack.c.l.b16 %v304
        %v431 = vunpack.c.h.b16 %v304
        %v432 = vunpack.c.l.b16 %v305
        %v433 = vunpack.c.h.b16 %v305
        %v434 = vunpack.c.l.b16 %v306
        %v435 = vunpack.c.h.b16 %v306
        %v436 = vunpack.c.l.b16 %v307
        %v437 = vunpack.c.h.b16 %v307
        %v438 = vunpack.c.l.b16 %v308
        %v439 = vunpack.c.h.b16 %v308
        %v440 = vunpack.c.l.b16 %v309
        %v441 = vunpack.c.h.b16 %v309
        %v442 = vpack.c.b16 %v380, %v378
        %v443 = vpack.c.b16 %v381, %v379
        %v444 = vpack.c.b16 %v384, %v382
        %v445 = vpack.c.b16 %v385, %v383
        %v446 = vpack.c.b16 %v388, %v386
        %v447 = vpack.c.b16 %v389, %v387
        %v448 = vpack.c.b16 %v392, %v390
        %v449 = vpack.c.b16 %v393, %v391
        %v450 = vpack.c.b16 %v396, %v394
        %v451 = vpack.c.b16 %v397, %v395
        %v452 = vpack.c.b16 %v400, %v398
        %v453 = vpack.c.b16 %v401, %v399
        %v454 = vpack.c.b16 %v404, %v402
        %v455 = vpack.c.b16 %v405, %v403
        %v456 = vpack.c.b16 %v408, %v406
        %v457 = vpack.c.b16 %v409, %v407
        %v458 = vpack.c.b16 %v412, %v410
        %v459 = vpack.c.b16 %v413, %v411
        %v460 = vpack.c.b16 %v416, %v414
        %v461 = vpack.c.b16 %v417, %v415
        %v462 = vpack.c.b16 %v420, %v418
        %v463 = vpack.c.b16 %v421, %v419
        %v464 = vpack.c.b16 %v424, %v422
        %v465 = vpack.c.b16 %v425, %v423
        %v466 = vpack.c.b16 %v428, %v426
        %v467 = vpack.c.b16 %v429, %v427
        %v468 = vpack.c.b16 %v432, %v430
        %v469 = vpack.c.b16 %v433, %v431
        %v470 = vpack.c.b16 %v436, %v434
        %v471 = vpack.c.b16 %v437, %v435
        %v472 = vpack.c.b16 %v440, %v438
        %v473 = vpack.c.b16 %v441, %v439
        %v538 = vunpack.c.l.b16 %v310
        %v539 = vunpack.c.l.b16 %v311
        %v540 = vunpack.c.l.b16 %v312
        %v541 = vunpack.c.l.b16 %v313
        %v542 = vunpack.c.l.b16 %v314
        %v543 = vunpack.c.l.b16 %v315
        %v544 = vunpack.c.l.b16 %v316
        %v545 = vunpack.c.l.b16 %v317
        %v546 = vunpack.c.l.b16 %v318
        %v547 = vunpack.c.l.b16 %v319
        %v548 = vunpack.c.l.b16 %v320
        %v549 = vunpack.c.l.b16 %v321
        %v550 = vunpack.c.l.b16 %v322
        %v551 = vunpack.c.l.b16 %v323
        %v552 = vunpack.c.l.b16 %v324
        %v553 = vunpack.c.l.b16 %v325
        %v554 = vunpack.c.l.b16 %v326
        %v555 = vunpack.c.l.b16 %v327
        %v556 = vunpack.c.l.b16 %v328
        %v557 = vunpack.c.l.b16 %v329
        %v558 = vunpack.c.l.b16 %v330
        %v559 = vunpack.c.l.b16 %v331
        %v560 = vunpack.c.l.b16 %v332
        %v561 = vunpack.c.l.b16 %v333
        %v562 = vunpack.c.l.b16 %v334
        %v563 = vunpack.c.l.b16 %v335
        %v564 = vunpack.c.l.b16 %v336
        %v565 = vunpack.c.l.b16 %v337
        %v566 = vunpack.c.l.b16 %v338
        %v567 = vunpack.c.l.b16 %v339
        %v568 = vunpack.c.l.b16 %v340
        %v569 = vunpack.c.l.b16 %v341
        %v570 = vpack.c.b16 %v539, %v538
        %v571 = vpack.c.b16 %v541, %v540
        %v572 = vpack.c.b16 %v543, %v542
        %v573 = vpack.c.b16 %v545, %v544
        %v574 = vpack.c.b16 %v547, %v546
        %v575 = vpack.c.b16 %v549, %v548
        %v576 = vpack.c.b16 %v551, %v550
        %v577 = vpack.c.b16 %v553, %v552
        %v578 = vpack.c.b16 %v555, %v554
        %v579 = vpack.c.b16 %v557, %v556
        %v580 = vpack.c.b16 %v559, %v558
        %v581 = vpack.c.b16 %v561, %v560
        %v582 = vpack.c.b16 %v563, %v562
        %v583 = vpack.c.b16 %v565, %v564
        %v584 = vpack.c.b16 %v567, %v566
        %v585 = vpack.c.b16 %v569, %v568
        %602 = vmatpush.bf16.msra.mxu0 %v577
        %603 = vmatpush.bf16.msra.mxu0 %v576
        %604 = vmatpush.bf16.msra.mxu0 %v575
        %605 = vmatpush.bf16.msra.mxu0 %v574
        %606 = vmatpush.bf16.msra.mxu0 %v573
        %607 = vmatpush.bf16.msra.mxu0 %v572
        %608 = vmatpush.bf16.msra.mxu0 %v571
        %609 = vmatpush.bf16.msra.mxu0 %v570
        %610 = vmatmul.bf16.gmra.mxu0 %v442
        %v611 = vpop.f32.mrf.mxu0
        %v612 = vadd.f32 %v344, %v611
        %v613 = vpop.f32.mrf.mxu0
        %v614 = vadd.f32 %v344, %v613
        %615 = vmatmul.bf16.gmra.mxu0 %v444
        %v616 = vpop.f32.mrf.mxu0
        %v617 = vadd.f32 %v344, %v616
        %v618 = vpop.f32.mrf.mxu0
        %v619 = vadd.f32 %v344, %v618
        %620 = vmatmul.bf16.gmra.mxu0 %v446
        %v621 = vpop.f32.mrf.mxu0
        %v622 = vadd.f32 %v344, %v621
        %v623 = vpop.f32.mrf.mxu0
        %v624 = vadd.f32 %v344, %v623
        %625 = vmatmul.bf16.gmra.mxu0 %v448
        %v626 = vpop.f32.mrf.mxu0
        %v627 = vadd.f32 %v344, %v626
        %v628 = vpop.f32.mrf.mxu0
        %v629 = vadd.f32 %v344, %v628
        %630 = vmatmul.bf16.gmra.mxu0 %v450
        %v631 = vpop.f32.mrf.mxu0
        %v632 = vadd.f32 %v344, %v631
        %v633 = vpop.f32.mrf.mxu0
        %v634 = vadd.f32 %v344, %v633
        %635 = vmatmul.bf16.gmra.mxu0 %v452
        %v636 = vpop.f32.mrf.mxu0
        %v637 = vadd.f32 %v344, %v636
        %v638 = vpop.f32.mrf.mxu0
        %v639 = vadd.f32 %v344, %v638
        %640 = vmatmul.bf16.gmra.mxu0 %v454
        %v641 = vpop.f32.mrf.mxu0
        %v642 = vadd.f32 %v344, %v641
        %v643 = vpop.f32.mrf.mxu0
        %v644 = vadd.f32 %v344, %v643
        %645 = vmatmul.bf16.gmra.mxu0 %v456
        %v646 = vpop.f32.mrf.mxu0
        %v647 = vadd.f32 %v344, %v646
        %v648 = vpop.f32.mrf.mxu0
        %v649 = vadd.f32 %v344, %v648
        %650 = vmatmul.bf16.gmra.mxu0 %v458
        %v651 = vpop.f32.mrf.mxu0
        %v652 = vadd.f32 %v344, %v651
        %v653 = vpop.f32.mrf.mxu0
        %v654 = vadd.f32 %v344, %v653
        %655 = vmatmul.bf16.gmra.mxu0 %v460
        %v656 = vpop.f32.mrf.mxu0
        %v657 = vadd.f32 %v344, %v656
        %v658 = vpop.f32.mrf.mxu0
        %v659 = vadd.f32 %v344, %v658
        %660 = vmatmul.bf16.gmra.mxu0 %v462
        %v661 = vpop.f32.mrf.mxu0
        %v662 = vadd.f32 %v344, %v661
        %v663 = vpop.f32.mrf.mxu0
        %v664 = vadd.f32 %v344, %v663
        %665 = vmatmul.bf16.gmra.mxu0 %v464
        %v666 = vpop.f32.mrf.mxu0
        %v667 = vadd.f32 %v344, %v666
        %v668 = vpop.f32.mrf.mxu0
        %v669 = vadd.f32 %v344, %v668
        %670 = vmatmul.bf16.gmra.mxu0 %v466
        %v671 = vpop.f32.mrf.mxu0
        %v672 = vadd.f32 %v344, %v671
        %v673 = vpop.f32.mrf.mxu0
        %v674 = vadd.f32 %v344, %v673
        %675 = vmatmul.bf16.gmra.mxu0 %v468
        %v676 = vpop.f32.mrf.mxu0
        %v677 = vadd.f32 %v344, %v676
        %v678 = vpop.f32.mrf.mxu0
        %v679 = vadd.f32 %v344, %v678
        %680 = vmatmul.bf16.gmra.mxu0 %v470
        %v681 = vpop.f32.mrf.mxu0
        %v682 = vadd.f32 %v344, %v681
        %v683 = vpop.f32.mrf.mxu0
        %v684 = vadd.f32 %v344, %v683
        %685 = vmatmul.bf16.gmra.mxu0 %v472
        %v686 = vpop.f32.mrf.mxu0
        %v687 = vadd.f32 %v344, %v686
        %v688 = vpop.f32.mrf.mxu0
        %v689 = vadd.f32 %v344, %v688
        %690 = vdwg.mxu0
        %691 = vmatpush.bf16.msra.mxu0 %v585
        %692 = vmatpush.bf16.msra.mxu0 %v584
        %693 = vmatpush.bf16.msra.mxu0 %v583
        %694 = vmatpush.bf16.msra.mxu0 %v582
        %695 = vmatpush.bf16.msra.mxu0 %v581
        %696 = vmatpush.bf16.msra.mxu0 %v580
        %697 = vmatpush.bf16.msra.mxu0 %v579
        %698 = vmatpush.bf16.msra.mxu0 %v578
        %699 = vmatmul.bf16.gmra.mxu0 %v443
        %v700 = vpop.f32.mrf.mxu0
        %v701 = vadd.f32 %v612, %v700
        %v702 = vpop.f32.mrf.mxu0
        %v703 = vadd.f32 %v614, %v702
        %704 = vmatmul.bf16.gmra.mxu0 %v445
        %v705 = vpop.f32.mrf.mxu0
        %v706 = vadd.f32 %v617, %v705
        %v707 = vpop.f32.mrf.mxu0
        %v708 = vadd.f32 %v619, %v707
        %709 = vmatmul.bf16.gmra.mxu0 %v447
        %v710 = vpop.f32.mrf.mxu0
        %v711 = vadd.f32 %v622, %v710
        %v712 = vpop.f32.mrf.mxu0
        %v713 = vadd.f32 %v624, %v712
        %714 = vmatmul.bf16.gmra.mxu0 %v449
        %v715 = vpop.f32.mrf.mxu0
        %v716 = vadd.f32 %v627, %v715
        %v717 = vpop.f32.mrf.mxu0
        %v718 = vadd.f32 %v629, %v717
        %719 = vmatmul.bf16.gmra.mxu0 %v451
        %v720 = vpop.f32.mrf.mxu0
        %v721 = vadd.f32 %v632, %v720
        %v722 = vpop.f32.mrf.mxu0
        %v723 = vadd.f32 %v634, %v722
        %724 = vmatmul.bf16.gmra.mxu0 %v453
        %v725 = vpop.f32.mrf.mxu0
        %v726 = vadd.f32 %v637, %v725
        %v727 = vpop.f32.mrf.mxu0
        %v728 = vadd.f32 %v639, %v727
        %729 = vmatmul.bf16.gmra.mxu0 %v455
        %v730 = vpop.f32.mrf.mxu0
        %v731 = vadd.f32 %v642, %v730
        %v732 = vpop.f32.mrf.mxu0
        %v733 = vadd.f32 %v644, %v732
        %734 = vmatmul.bf16.gmra.mxu0 %v457
        %v735 = vpop.f32.mrf.mxu0
        %v736 = vadd.f32 %v647, %v735
        %v737 = vpop.f32.mrf.mxu0
        %v738 = vadd.f32 %v649, %v737
        %739 = vmatmul.bf16.gmra.mxu0 %v459
        %v740 = vpop.f32.mrf.mxu0
        %v741 = vadd.f32 %v652, %v740
        %v742 = vpop.f32.mrf.mxu0
        %v743 = vadd.f32 %v654, %v742
        %744 = vmatmul.bf16.gmra.mxu0 %v461
        %v745 = vpop.f32.mrf.mxu0
        %v746 = vadd.f32 %v657, %v745
        %v747 = vpop.f32.mrf.mxu0
        %v748 = vadd.f32 %v659, %v747
        %749 = vmatmul.bf16.gmra.mxu0 %v463
        %v750 = vpop.f32.mrf.mxu0
        %v751 = vadd.f32 %v662, %v750
        %v752 = vpop.f32.mrf.mxu0
        %v753 = vadd.f32 %v664, %v752
        %754 = vmatmul.bf16.gmra.mxu0 %v465
        %v755 = vpop.f32.mrf.mxu0
        %v756 = vadd.f32 %v667, %v755
        %v757 = vpop.f32.mrf.mxu0
        %v758 = vadd.f32 %v669, %v757
        %759 = vmatmul.bf16.gmra.mxu0 %v467
        %v760 = vpop.f32.mrf.mxu0
        %v761 = vadd.f32 %v672, %v760
        %v762 = vpop.f32.mrf.mxu0
        %v763 = vadd.f32 %v674, %v762
        %764 = vmatmul.bf16.gmra.mxu0 %v469
        %v765 = vpop.f32.mrf.mxu0
        %v766 = vadd.f32 %v677, %v765
        %v767 = vpop.f32.mrf.mxu0
        %v768 = vadd.f32 %v679, %v767
        %769 = vmatmul.bf16.gmra.mxu0 %v471
        %v770 = vpop.f32.mrf.mxu0
        %v771 = vadd.f32 %v682, %v770
        %v772 = vpop.f32.mrf.mxu0
        %v773 = vadd.f32 %v684, %v772
        %774 = vmatmul.bf16.gmra.mxu0 %v473
        %v775 = vpop.f32.mrf.mxu0
        %v776 = vadd.f32 %v687, %v775
        %v777 = vpop.f32.mrf.mxu0
        %v778 = vadd.f32 %v689, %v777
        %779 = vdwg.mxu0
        %v780 = vmax.f32 %v701, 0.0
        %v781 = vmax.f32 %v703, 0.0
        %v782 = vmax.f32 %v706, 0.0
        %v783 = vmax.f32 %v708, 0.0
        %v784 = vmax.f32 %v711, 0.0
        %v785 = vmax.f32 %v713, 0.0
        %v786 = vmax.f32 %v716, 0.0
        %v787 = vmax.f32 %v718, 0.0
        %v788 = vmax.f32 %v721, 0.0
        %v789 = vmax.f32 %v723, 0.0
        %v790 = vmax.f32 %v726, 0.0
        %v791 = vmax.f32 %v728, 0.0
        %v792 = vmax.f32 %v731, 0.0
        %v793 = vmax.f32 %v733, 0.0
        %v794 = vmax.f32 %v736, 0.0
        %v795 = vmax.f32 %v738, 0.0
        %v796 = vmax.f32 %v741, 0.0
        %v797 = vmax.f32 %v743, 0.0
        %v798 = vmax.f32 %v746, 0.0
        %v799 = vmax.f32 %v748, 0.0
        %v800 = vmax.f32 %v751, 0.0
        %v801 = vmax.f32 %v753, 0.0
        %v802 = vmax.f32 %v756, 0.0
        %v803 = vmax.f32 %v758, 0.0
        %v804 = vmax.f32 %v761, 0.0
        %v805 = vmax.f32 %v763, 0.0
        %v806 = vmax.f32 %v766, 0.0
        %v807 = vmax.f32 %v768, 0.0
        %v808 = vmax.f32 %v771, 0.0
        %v809 = vmax.f32 %v773, 0.0
        %v810 = vmax.f32 %v776, 0.0
        %v811 = vmax.f32 %v778, 0.0
        %vm812 = vcmask 519168
        %813 = vst.msk [vmem:[#allocation2] sm:$0xf] %vm812, 0
        %814 = vst.msk [vmem:[#allocation2 + $0x4] sm:$0xf] %vm812, 0
        %vm815 = vcmask 516096
        %816 = vst.msk [vmem:[#allocation2 + $0x8] sm:$0x1] %vm815, 0
        %s817 = scalar_lea.vmem [#allocation2], 204
        %818 = vst.msk [vmem:[%s817] sm:$0xf] %vm812, 0
        %819 = vst.msk [vmem:[%s817 + $0x4] sm:$0xf] %vm812, 0
        %820 = vst.msk [vmem:[%s817 + $0x8] sm:$0x1] %vm815, 0
        %s821 = scalar_lea.vmem [#allocation2], 12
        %vm822 = vcmask 516096
        %vm823 = vsmask.f32 256
        %vm824 = vmand %vm822, %vm823
        %v825 = vld [vmem:[%s821] sm:$0x1]
        %v826 = vsel %vm824, 0, %v825
        %827 = vst [vmem:[%s821] sm:$0x1] %v826
        %v828 = vld [vmem:[%s821 + $0xc] sm:$0x1]
        %v829 = vsel %vm824, 0, %v828
        %830 = vst [vmem:[%s821 + $0xc] sm:$0x1] %v829
        %v831 = vld [vmem:[%s821 + $0x18] sm:$0x1]
        %v832 = vsel %vm824, 0, %v831
        %833 = vst [vmem:[%s821 + $0x18] sm:$0x1] %v832
        %v834 = vld [vmem:[%s821 + $0x24] sm:$0x1]
        %v835 = vsel %vm824, 0, %v834
        %836 = vst [vmem:[%s821 + $0x24] sm:$0x1] %v835
        %v837 = vld [vmem:[%s821 + $0x30] sm:$0x1]
        %v838 = vsel %vm824, 0, %v837
        %839 = vst [vmem:[%s821 + $0x30] sm:$0x1] %v838
        %v840 = vld [vmem:[%s821 + $0x3c] sm:$0x1]
        %v841 = vsel %vm824, 0, %v840
        %842 = vst [vmem:[%s821 + $0x3c] sm:$0x1] %v841
        %v843 = vld [vmem:[%s821 + $0x48] sm:$0x1]
        %v844 = vsel %vm824, 0, %v843
        %845 = vst [vmem:[%s821 + $0x48] sm:$0x1] %v844
        %v846 = vld [vmem:[%s821 + $0x54] sm:$0x1]
        %v847 = vsel %vm824, 0, %v846
        %848 = vst [vmem:[%s821 + $0x54] sm:$0x1] %v847
        %v849 = vld [vmem:[%s821 + $0x60] sm:$0x1]
        %v850 = vsel %vm824, 0, %v849
        %851 = vst [vmem:[%s821 + $0x60] sm:$0x1] %v850
        %v852 = vld [vmem:[%s821 + $0x6c] sm:$0x1]
        %v853 = vsel %vm824, 0, %v852
        %854 = vst [vmem:[%s821 + $0x6c] sm:$0x1] %v853
        %v855 = vld [vmem:[%s821 + $0x78] sm:$0x1]
        %v856 = vsel %vm824, 0, %v855
        %857 = vst [vmem:[%s821 + $0x78] sm:$0x1] %v856
        %v858 = vld [vmem:[%s821 + $0x84] sm:$0x1]
        %v859 = vsel %vm824, 0, %v858
        %860 = vst [vmem:[%s821 + $0x84] sm:$0x1] %v859
        %v861 = vld [vmem:[%s821 + $0x90] sm:$0x1]
        %v862 = vsel %vm824, 0, %v861
        %863 = vst [vmem:[%s821 + $0x90] sm:$0x1] %v862
        %v864 = vld [vmem:[%s821 + $0x9c] sm:$0x1]
        %v865 = vsel %vm824, 0, %v864
        %866 = vst [vmem:[%s821 + $0x9c] sm:$0x1] %v865
        %v867 = vld [vmem:[%s821 + $0xa8] sm:$0x1]
        %v868 = vsel %vm824, 0, %v867
        %869 = vst [vmem:[%s821 + $0xa8] sm:$0x1] %v868
        %v870 = vld [vmem:[%s821 + $0xb4] sm:$0x1]
        %v871 = vsel %vm824, 0, %v870
        %872 = vst [vmem:[%s821 + $0xb4] sm:$0x1] %v871
        %vm873 = vsmask.f32 7938
        %vm874 = vmand %vm822, %vm873
        %v875 = vld [vmem:[%s821 + $0x8] sm:$0x1]
        %v876 = vsel %vm874, 0, %v875
        %877 = vst [vmem:[%s821 + $0x8] sm:$0x1] %v876
        %v878 = vld [vmem:[%s821 + $0x14] sm:$0x1]
        %v879 = vsel %vm874, 0, %v878
        %880 = vst [vmem:[%s821 + $0x14] sm:$0x1] %v879
        %v881 = vld [vmem:[%s821 + $0x20] sm:$0x1]
        %v882 = vsel %vm874, 0, %v881
        %883 = vst [vmem:[%s821 + $0x20] sm:$0x1] %v882
        %v884 = vld [vmem:[%s821 + $0x2c] sm:$0x1]
        %v885 = vsel %vm874, 0, %v884
        %886 = vst [vmem:[%s821 + $0x2c] sm:$0x1] %v885
        %v887 = vld [vmem:[%s821 + $0x38] sm:$0x1]
        %v888 = vsel %vm874, 0, %v887
        %889 = vst [vmem:[%s821 + $0x38] sm:$0x1] %v888
        %v890 = vld [vmem:[%s821 + $0x44] sm:$0x1]
        %v891 = vsel %vm874, 0, %v890
        %892 = vst [vmem:[%s821 + $0x44] sm:$0x1] %v891
        %v893 = vld [vmem:[%s821 + $0x50] sm:$0x1]
        %v894 = vsel %vm874, 0, %v893
        %895 = vst [vmem:[%s821 + $0x50] sm:$0x1] %v894
        %v896 = vld [vmem:[%s821 + $0x5c] sm:$0x1]
        %v897 = vsel %vm874, 0, %v896
        %898 = vst [vmem:[%s821 + $0x5c] sm:$0x1] %v897
        %v899 = vld [vmem:[%s821 + $0x68] sm:$0x1]
        %v900 = vsel %vm874, 0, %v899
        %901 = vst [vmem:[%s821 + $0x68] sm:$0x1] %v900
        %v902 = vld [vmem:[%s821 + $0x74] sm:$0x1]
        %v903 = vsel %vm874, 0, %v902
        %904 = vst [vmem:[%s821 + $0x74] sm:$0x1] %v903
        %v905 = vld [vmem:[%s821 + $0x80] sm:$0x1]
        %v906 = vsel %vm874, 0, %v905
        %907 = vst [vmem:[%s821 + $0x80] sm:$0x1] %v906
        %v908 = vld [vmem:[%s821 + $0x8c] sm:$0x1]
        %v909 = vsel %vm874, 0, %v908
        %910 = vst [vmem:[%s821 + $0x8c] sm:$0x1] %v909
        %v911 = vld [vmem:[%s821 + $0x98] sm:$0x1]
        %v912 = vsel %vm874, 0, %v911
        %913 = vst [vmem:[%s821 + $0x98] sm:$0x1] %v912
        %v914 = vld [vmem:[%s821 + $0xa4] sm:$0x1]
        %v915 = vsel %vm874, 0, %v914
        %916 = vst [vmem:[%s821 + $0xa4] sm:$0x1] %v915
        %v917 = vld [vmem:[%s821 + $0xb0] sm:$0x1]
        %v918 = vsel %vm874, 0, %v917
        %919 = vst [vmem:[%s821 + $0xb0] sm:$0x1] %v918
        %v920 = vld [vmem:[%s821 + $0xbc] sm:$0x1]
        %v921 = vsel %vm874, 0, %v920
        %922 = vst [vmem:[%s821 + $0xbc] sm:$0x1] %v921
        %v923 = vpack.c.bf16 %v780, %v780
        %v924 = vpack.c.bf16 %v781, %v781
        %v925 = vpack.c.bf16 %v782, %v782
        %v926 = vpack.c.bf16 %v783, %v783
        %v927 = vpack.c.bf16 %v784, %v784
        %v928 = vpack.c.bf16 %v785, %v785
        %v929 = vpack.c.bf16 %v786, %v786
        %v930 = vpack.c.bf16 %v787, %v787
        %v931 = vpack.c.bf16 %v788, %v788
        %v932 = vpack.c.bf16 %v789, %v789
        %v933 = vpack.c.bf16 %v790, %v790
        %v934 = vpack.c.bf16 %v791, %v791
        %v935 = vpack.c.bf16 %v792, %v792
        %v936 = vpack.c.bf16 %v793, %v793
        %v937 = vpack.c.bf16 %v794, %v794
        %v938 = vpack.c.bf16 %v795, %v795
        %v939 = vpack.c.bf16 %v796, %v796
        %v940 = vpack.c.bf16 %v797, %v797
        %v941 = vpack.c.bf16 %v798, %v798
        %v942 = vpack.c.bf16 %v799, %v799
        %v943 = vpack.c.bf16 %v800, %v800
        %v944 = vpack.c.bf16 %v801, %v801
        %v945 = vpack.c.bf16 %v802, %v802
        %v946 = vpack.c.bf16 %v803, %v803
        %v947 = vpack.c.bf16 %v804, %v804
        %v948 = vpack.c.bf16 %v805, %v805
        %v949 = vpack.c.bf16 %v806, %v806
        %v950 = vpack.c.bf16 %v807, %v807
        %v951 = vpack.c.bf16 %v808, %v808
        %v952 = vpack.c.bf16 %v809, %v809
        %v953 = vpack.c.bf16 %v810, %v810
        %v954 = vpack.c.bf16 %v811, %v811
        %vm955 = vsmask.f32 4368
        %vm956 = vmor %vm823, %vm955
        %v958 = vshrl.u32 %v923, 16
        %v960 = vrot.slane %v958, 7
        %v961 = vshll.u32 %v923, 16
        %v963 = vor.u32 %v960, %v961
        %v964 = vrot.slane %v960, 4
        %v966 = vshrl.u32 %v924, 16
        %v968 = vrot.slane %v966, 7
        %v969 = vshll.u32 %v924, 16
        %v971 = vor.u32 %v968, %v969
        %v972 = vsel %vm956, %v964, %v971
        %v973 = vrot.slane %v968, 4
        %v975 = vshrl.u32 %v925, 16
        %v977 = vrot.slane %v975, 7
        %v978 = vshll.u32 %v925, 16
        %v980 = vor.u32 %v977, %v978
        %v981 = vrot.slane %v977, 4
        %v983 = vshrl.u32 %v926, 16
        %v985 = vrot.slane %v983, 7
        %v986 = vshll.u32 %v926, 16
        %v988 = vor.u32 %v985, %v986
        %v989 = vsel %vm956, %v981, %v988
        %v990 = vrot.slane %v985, 4
        %v992 = vshrl.u32 %v927, 16
        %v994 = vrot.slane %v992, 7
        %v995 = vshll.u32 %v927, 16
        %v997 = vor.u32 %v994, %v995
        %v998 = vrot.slane %v994, 4
        %v1000 = vshrl.u32 %v928, 16
        %v1002 = vrot.slane %v1000, 7
        %v1003 = vshll.u32 %v928, 16
        %v1005 = vor.u32 %v1002, %v1003
        %v1006 = vsel %vm956, %v998, %v1005
        %v1007 = vrot.slane %v1002, 4
        %v1009 = vshrl.u32 %v929, 16
        %v1011 = vrot.slane %v1009, 7
        %v1012 = vshll.u32 %v929, 16
        %v1014 = vor.u32 %v1011, %v1012
        %v1015 = vrot.slane %v1011, 4
        %v1017 = vshrl.u32 %v930, 16
        %v1019 = vrot.slane %v1017, 7
        %v1020 = vshll.u32 %v930, 16
        %v1022 = vor.u32 %v1019, %v1020
        %v1023 = vsel %vm956, %v1015, %v1022
        %v1024 = vrot.slane %v1019, 4
        %v1026 = vshrl.u32 %v931, 16
        %v1028 = vrot.slane %v1026, 7
        %v1029 = vshll.u32 %v931, 16
        %v1031 = vor.u32 %v1028, %v1029
        %v1032 = vrot.slane %v1028, 4
        %v1034 = vshrl.u32 %v932, 16
        %v1036 = vrot.slane %v1034, 7
        %v1037 = vshll.u32 %v932, 16
        %v1039 = vor.u32 %v1036, %v1037
        %v1040 = vsel %vm956, %v1032, %v1039
        %v1041 = vrot.slane %v1036, 4
        %v1043 = vshrl.u32 %v933, 16
        %v1045 = vrot.slane %v1043, 7
        %v1046 = vshll.u32 %v933, 16
        %v1048 = vor.u32 %v1045, %v1046
        %v1049 = vrot.slane %v1045, 4
        %v1051 = vshrl.u32 %v934, 16
        %v1053 = vrot.slane %v1051, 7
        %v1054 = vshll.u32 %v934, 16
        %v1056 = vor.u32 %v1053, %v1054
        %v1057 = vsel %vm956, %v1049, %v1056
        %v1058 = vrot.slane %v1053, 4
        %v1060 = vshrl.u32 %v935, 16
        %v1062 = vrot.slane %v1060, 7
        %v1063 = vshll.u32 %v935, 16
        %v1065 = vor.u32 %v1062, %v1063
        %v1066 = vrot.slane %v1062, 4
        %v1068 = vshrl.u32 %v936, 16
        %v1070 = vrot.slane %v1068, 7
        %v1071 = vshll.u32 %v936, 16
        %v1073 = vor.u32 %v1070, %v1071
        %v1074 = vsel %vm956, %v1066, %v1073
        %v1075 = vrot.slane %v1070, 4
        %v1077 = vshrl.u32 %v937, 16
        %v1079 = vrot.slane %v1077, 7
        %v1080 = vshll.u32 %v937, 16
        %v1082 = vor.u32 %v1079, %v1080
        %v1083 = vrot.slane %v1079, 4
        %v1085 = vshrl.u32 %v938, 16
        %v1087 = vrot.slane %v1085, 7
        %v1088 = vshll.u32 %v938, 16
        %v1090 = vor.u32 %v1087, %v1088
        %v1091 = vsel %vm956, %v1083, %v1090
        %v1092 = vrot.slane %v1087, 4
        %v1094 = vshrl.u32 %v939, 16
        %v1096 = vrot.slane %v1094, 7
        %v1097 = vshll.u32 %v939, 16
        %v1099 = vor.u32 %v1096, %v1097
        %v1100 = vrot.slane %v1096, 4
        %v1102 = vshrl.u32 %v940, 16
        %v1104 = vrot.slane %v1102, 7
        %v1105 = vshll.u32 %v940, 16
        %v1107 = vor.u32 %v1104, %v1105
        %v1108 = vsel %vm956, %v1100, %v1107
        %v1109 = vrot.slane %v1104, 4
        %v1111 = vshrl.u32 %v941, 16
        %v1113 = vrot.slane %v1111, 7
        %v1114 = vshll.u32 %v941, 16
        %v1116 = vor.u32 %v1113, %v1114
        %v1117 = vrot.slane %v1113, 4
        %v1119 = vshrl.u32 %v942, 16
        %v1121 = vrot.slane %v1119, 7
        %v1122 = vshll.u32 %v942, 16
        %v1124 = vor.u32 %v1121, %v1122
        %v1125 = vsel %vm956, %v1117, %v1124
        %v1126 = vrot.slane %v1121, 4
        %v1128 = vshrl.u32 %v943, 16
        %v1130 = vrot.slane %v1128, 7
        %v1131 = vshll.u32 %v943, 16
        %v1133 = vor.u32 %v1130, %v1131
        %v1134 = vrot.slane %v1130, 4
        %v1136 = vshrl.u32 %v944, 16
        %v1138 = vrot.slane %v1136, 7
        %v1139 = vshll.u32 %v944, 16
        %v1141 = vor.u32 %v1138, %v1139
        %v1142 = vsel %vm956, %v1134, %v1141
        %v1143 = vrot.slane %v1138, 4
        %v1145 = vshrl.u32 %v945, 16
        %v1147 = vrot.slane %v1145, 7
        %v1148 = vshll.u32 %v945, 16
        %v1150 = vor.u32 %v1147, %v1148
        %v1151 = vrot.slane %v1147, 4
        %v1153 = vshrl.u32 %v946, 16
        %v1155 = vrot.slane %v1153, 7
        %v1156 = vshll.u32 %v946, 16
        %v1158 = vor.u32 %v1155, %v1156
        %v1159 = vsel %vm956, %v1151, %v1158
        %v1160 = vrot.slane %v1155, 4
        %v1162 = vshrl.u32 %v947, 16
        %v1164 = vrot.slane %v1162, 7
        %v1165 = vshll.u32 %v947, 16
        %v1167 = vor.u32 %v1164, %v1165
        %v1168 = vrot.slane %v1164, 4
        %v1170 = vshrl.u32 %v948, 16
        %v1172 = vrot.slane %v1170, 7
        %v1173 = vshll.u32 %v948, 16
        %v1175 = vor.u32 %v1172, %v1173
        %v1176 = vsel %vm956, %v1168, %v1175
        %v1177 = vrot.slane %v1172, 4
        %v1179 = vshrl.u32 %v949, 16
        %v1181 = vrot.slane %v1179, 7
        %v1182 = vshll.u32 %v949, 16
        %v1184 = vor.u32 %v1181, %v1182
        %v1185 = vrot.slane %v1181, 4
        %v1187 = vshrl.u32 %v950, 16
        %v1189 = vrot.slane %v1187, 7
        %v1190 = vshll.u32 %v950, 16
        %v1192 = vor.u32 %v1189, %v1190
        %v1193 = vsel %vm956, %v1185, %v1192
        %v1194 = vrot.slane %v1189, 4
        %v1196 = vshrl.u32 %v951, 16
        %v1198 = vrot.slane %v1196, 7
        %v1199 = vshll.u32 %v951, 16
        %v1201 = vor.u32 %v1198, %v1199
        %v1202 = vrot.slane %v1198, 4
        %v1204 = vshrl.u32 %v952, 16
        %v1206 = vrot.slane %v1204, 7
        %v1207 = vshll.u32 %v952, 16
        %v1209 = vor.u32 %v1206, %v1207
        %v1210 = vsel %vm956, %v1202, %v1209
        %v1211 = vrot.slane %v1206, 4
        %v1213 = vshrl.u32 %v953, 16
        %v1215 = vrot.slane %v1213, 7
        %v1216 = vshll.u32 %v953, 16
        %v1218 = vor.u32 %v1215, %v1216
        %v1219 = vrot.slane %v1215, 4
        %v1221 = vshrl.u32 %v954, 16
        %v1223 = vrot.slane %v1221, 7
        %v1224 = vshll.u32 %v954, 16
        %v1226 = vor.u32 %v1223, %v1224
        %v1227 = vsel %vm956, %v1219, %v1226
        %v1228 = vrot.slane %v1223, 4
        %vm1277 = vcmask 519168
        %vm1278 = vmand %vm1277, %vm873
        %v1279 = vld [vmem:[%s821] sm:$0xf]
        %v1280 = vsel %vm1278, %v963, %v1279
        %1281 = vst [vmem:[%s821] sm:$0xf] %v1280
        %1282 = vst.msk [vmem:[%s821 + $0x4] sm:$0xf] %vm812, %v972
        %v1283 = vld [vmem:[%s821 + $0x8] sm:$0x1]
        %v1284 = vsel %vm824, %v973, %v1283
        %1285 = vst [vmem:[%s821 + $0x8] sm:$0x1] %v1284
        %v1286 = vld [vmem:[%s821 + $0xc] sm:$0xf]
        %v1287 = vsel %vm1278, %v980, %v1286
        %1288 = vst [vmem:[%s821 + $0xc] sm:$0xf] %v1287
        %1289 = vst.msk [vmem:[%s821 + $0x10] sm:$0xf] %vm812, %v989
        %v1290 = vld [vmem:[%s821 + $0x14] sm:$0x1]
        %v1291 = vsel %vm824, %v990, %v1290
        %1292 = vst [vmem:[%s821 + $0x14] sm:$0x1] %v1291
        %v1293 = vld [vmem:[%s821 + $0x18] sm:$0xf]
        %v1294 = vsel %vm1278, %v997, %v1293
        %1295 = vst [vmem:[%s821 + $0x18] sm:$0xf] %v1294
        %1296 = vst.msk [vmem:[%s821 + $0x1c] sm:$0xf] %vm812, %v1006
        %v1297 = vld [vmem:[%s821 + $0x20] sm:$0x1]
        %v1298 = vsel %vm824, %v1007, %v1297
        %1299 = vst [vmem:[%s821 + $0x20] sm:$0x1] %v1298
        %v1300 = vld [vmem:[%s821 + $0x24] sm:$0xf]
        %v1301 = vsel %vm1278, %v1014, %v1300
        %1302 = vst [vmem:[%s821 + $0x24] sm:$0xf] %v1301
        %1303 = vst.msk [vmem:[%s821 + $0x28] sm:$0xf] %vm812, %v1023
        %v1304 = vld [vmem:[%s821 + $0x2c] sm:$0x1]
        %v1305 = vsel %vm824, %v1024, %v1304
        %1306 = vst [vmem:[%s821 + $0x2c] sm:$0x1] %v1305
        %v1307 = vld [vmem:[%s821 + $0x30] sm:$0xf]
        %v1308 = vsel %vm1278, %v1031, %v1307
        %1309 = vst [vmem:[%s821 + $0x30] sm:$0xf] %v1308
        %1310 = vst.msk [vmem:[%s821 + $0x34] sm:$0xf] %vm812, %v1040
        %v1311 = vld [vmem:[%s821 + $0x38] sm:$0x1]
        %v1312 = vsel %vm824, %v1041, %v1311
        %1313 = vst [vmem:[%s821 + $0x38] sm:$0x1] %v1312
        %v1314 = vld [vmem:[%s821 + $0x3c] sm:$0xf]
        %v1315 = vsel %vm1278, %v1048, %v1314
        %1316 = vst [vmem:[%s821 + $0x3c] sm:$0xf] %v1315
        %1317 = vst.msk [vmem:[%s821 + $0x40] sm:$0xf] %vm812, %v1057
        %v1318 = vld [vmem:[%s821 + $0x44] sm:$0x1]
        %v1319 = vsel %vm824, %v1058, %v1318
        %1320 = vst [vmem:[%s821 + $0x44] sm:$0x1] %v1319
        %v1321 = vld [vmem:[%s821 + $0x48] sm:$0xf]
        %v1322 = vsel %vm1278, %v1065, %v1321
        %1323 = vst [vmem:[%s821 + $0x48] sm:$0xf] %v1322
        %1324 = vst.msk [vmem:[%s821 + $0x4c] sm:$0xf] %vm812, %v1074
        %v1325 = vld [vmem:[%s821 + $0x50] sm:$0x1]
        %v1326 = vsel %vm824, %v1075, %v1325
        %1327 = vst [vmem:[%s821 + $0x50] sm:$0x1] %v1326
        %v1328 = vld [vmem:[%s821 + $0x54] sm:$0xf]
        %v1329 = vsel %vm1278, %v1082, %v1328
        %1330 = vst [vmem:[%s821 + $0x54] sm:$0xf] %v1329
        %1331 = vst.msk [vmem:[%s821 + $0x58] sm:$0xf] %vm812, %v1091
        %v1332 = vld [vmem:[%s821 + $0x5c] sm:$0x1]
        %v1333 = vsel %vm824, %v1092, %v1332
        %1334 = vst [vmem:[%s821 + $0x5c] sm:$0x1] %v1333
        %v1335 = vld [vmem:[%s821 + $0x60] sm:$0xf]
        %v1336 = vsel %vm1278, %v1099, %v1335
        %1337 = vst [vmem:[%s821 + $0x60] sm:$0xf] %v1336
        %1338 = vst.msk [vmem:[%s821 + $0x64] sm:$0xf] %vm812, %v1108
        %v1339 = vld [vmem:[%s821 + $0x68] sm:$0x1]
        %v1340 = vsel %vm824, %v1109, %v1339
        %1341 = vst [vmem:[%s821 + $0x68] sm:$0x1] %v1340
        %v1342 = vld [vmem:[%s821 + $0x6c] sm:$0xf]
        %v1343 = vsel %vm1278, %v1116, %v1342
        %1344 = vst [vmem:[%s821 + $0x6c] sm:$0xf] %v1343
        %1345 = vst.msk [vmem:[%s821 + $0x70] sm:$0xf] %vm812, %v1125
        %v1346 = vld [vmem:[%s821 + $0x74] sm:$0x1]
        %v1347 = vsel %vm824, %v1126, %v1346
        %1348 = vst [vmem:[%s821 + $0x74] sm:$0x1] %v1347
        %v1349 = vld [vmem:[%s821 + $0x78] sm:$0xf]
        %v1350 = vsel %vm1278, %v1133, %v1349
        %1351 = vst [vmem:[%s821 + $0x78] sm:$0xf] %v1350
        %1352 = vst.msk [vmem:[%s821 + $0x7c] sm:$0xf] %vm812, %v1142
        %v1353 = vld [vmem:[%s821 + $0x80] sm:$0x1]
        %v1354 = vsel %vm824, %v1143, %v1353
        %1355 = vst [vmem:[%s821 + $0x80] sm:$0x1] %v1354
        %v1356 = vld [vmem:[%s821 + $0x84] sm:$0xf]
        %v1357 = vsel %vm1278, %v1150, %v1356
        %1358 = vst [vmem:[%s821 + $0x84] sm:$0xf] %v1357
        %1359 = vst.msk [vmem:[%s821 + $0x88] sm:$0xf] %vm812, %v1159
        %v1360 = vld [vmem:[%s821 + $0x8c] sm:$0x1]
        %v1361 = vsel %vm824, %v1160, %v1360
        %1362 = vst [vmem:[%s821 + $0x8c] sm:$0x1] %v1361
        %v1363 = vld [vmem:[%s821 + $0x90] sm:$0xf]
        %v1364 = vsel %vm1278, %v1167, %v1363
        %1365 = vst [vmem:[%s821 + $0x90] sm:$0xf] %v1364
        %1366 = vst.msk [vmem:[%s821 + $0x94] sm:$0xf] %vm812, %v1176
        %v1367 = vld [vmem:[%s821 + $0x98] sm:$0x1]
        %v1368 = vsel %vm824, %v1177, %v1367
        %1369 = vst [vmem:[%s821 + $0x98] sm:$0x1] %v1368
        %v1370 = vld [vmem:[%s821 + $0x9c] sm:$0xf]
        %v1371 = vsel %vm1278, %v1184, %v1370
        %1372 = vst [vmem:[%s821 + $0x9c] sm:$0xf] %v1371
        %1373 = vst.msk [vmem:[%s821 + $0xa0] sm:$0xf] %vm812, %v1193
        %v1374 = vld [vmem:[%s821 + $0xa4] sm:$0x1]
        %v1375 = vsel %vm824, %v1194, %v1374
        %1376 = vst [vmem:[%s821 + $0xa4] sm:$0x1] %v1375
        %v1377 = vld [vmem:[%s821 + $0xa8] sm:$0xf]
        %v1378 = vsel %vm1278, %v1201, %v1377
        %1379 = vst [vmem:[%s821 + $0xa8] sm:$0xf] %v1378
        %1380 = vst.msk [vmem:[%s821 + $0xac] sm:$0xf] %vm812, %v1210
        %v1381 = vld [vmem:[%s821 + $0xb0] sm:$0x1]
        %v1382 = vsel %vm824, %v1211, %v1381
        %1383 = vst [vmem:[%s821 + $0xb0] sm:$0x1] %v1382
        %v1384 = vld [vmem:[%s821 + $0xb4] sm:$0xf]
        %v1385 = vsel %vm1278, %v1218, %v1384
        %1386 = vst [vmem:[%s821 + $0xb4] sm:$0xf] %v1385
        %1387 = vst.msk [vmem:[%s821 + $0xb8] sm:$0xf] %vm812, %v1227
        %v1388 = vld [vmem:[%s821 + $0xbc] sm:$0x1]
        %v1389 = vsel %vm824, %v1228, %v1388
        %1390 = vst [vmem:[%s821 + $0xbc] sm:$0x1] %v1389
        %v1391 = vld [vmem:[#allocation2] sm:$0xf]
        %v1392 = vld [vmem:[#allocation2 + $0x4] sm:$0xf]
        %v1393 = vld [vmem:[#allocation2 + $0xc] sm:$0xf]
        %v1394 = vld [vmem:[#allocation2 + $0x10] sm:$0xf]
        %v1395 = vld [vmem:[#allocation2 + $0x18] sm:$0xf]
        %v1396 = vld [vmem:[#allocation2 + $0x1c] sm:$0xf]
        %v1397 = vld [vmem:[#allocation2 + $0x24] sm:$0xf]
        %v1398 = vld [vmem:[#allocation2 + $0x28] sm:$0xf]
        %v1399 = vld [vmem:[#allocation2 + $0x30] sm:$0xf]
        %v1400 = vld [vmem:[#allocation2 + $0x34] sm:$0xf]
        %v1401 = vld [vmem:[#allocation2 + $0x3c] sm:$0xf]
        %v1402 = vld [vmem:[#allocation2 + $0x40] sm:$0xf]
        %v1403 = vld [vmem:[#allocation2 + $0x48] sm:$0xf]
        %v1404 = vld [vmem:[#allocation2 + $0x4c] sm:$0xf]
        %v1405 = vld [vmem:[#allocation2 + $0x54] sm:$0xf]
        %v1406 = vld [vmem:[#allocation2 + $0x58] sm:$0xf]
        %v1407 = vld [vmem:[#allocation2 + $0x60] sm:$0xf]
        %v1408 = vld [vmem:[#allocation2 + $0x64] sm:$0xf]
        %v1409 = vld [vmem:[#allocation2 + $0x6c] sm:$0xf]
        %v1410 = vld [vmem:[#allocation2 + $0x70] sm:$0xf]
        %v1411 = vld [vmem:[#allocation2 + $0x78] sm:$0xf]
        %v1412 = vld [vmem:[#allocation2 + $0x7c] sm:$0xf]
        %v1413 = vld [vmem:[#allocation2 + $0x84] sm:$0xf]
        %v1414 = vld [vmem:[#allocation2 + $0x88] sm:$0xf]
        %v1415 = vld [vmem:[#allocation2 + $0x90] sm:$0xf]
        %v1416 = vld [vmem:[#allocation2 + $0x94] sm:$0xf]
        %v1417 = vld [vmem:[#allocation2 + $0x9c] sm:$0xf]
        %v1418 = vld [vmem:[#allocation2 + $0xa0] sm:$0xf]
        %v1419 = vld [vmem:[#allocation2 + $0xa8] sm:$0xf]
        %v1420 = vld [vmem:[#allocation2 + $0xac] sm:$0xf]
        %v1421 = vld [vmem:[#allocation2 + $0xb4] sm:$0xf]
        %v1422 = vld [vmem:[#allocation2 + $0xb8] sm:$0xf]
        %1423 = vst.msk [vmem:[#allocation3] sm:$0xf] %vm812, %v1391
        %1424 = vst.msk [vmem:[#allocation3 + $0x14] sm:$0xf] %vm812, %v1392
        %1425 = vst.msk [vmem:[#allocation3 + $0x28] sm:$0xf] %vm812, %v1393
        %1426 = vst.msk [vmem:[#allocation3 + $0x3c] sm:$0xf] %vm812, %v1394
        %1427 = vst.msk [vmem:[#allocation3 + $0x50] sm:$0xf] %vm812, %v1395
        %1428 = vst.msk [vmem:[#allocation3 + $0x64] sm:$0xf] %vm812, %v1396
        %1429 = vst.msk [vmem:[#allocation3 + $0x78] sm:$0xf] %vm812, %v1397
        %1430 = vst.msk [vmem:[#allocation3 + $0x8c] sm:$0xf] %vm812, %v1398
        %1431 = vst.msk [vmem:[#allocation3 + $0xa0] sm:$0xf] %vm812, %v1399
        %1432 = vst.msk [vmem:[#allocation3 + $0xb4] sm:$0xf] %vm812, %v1400
        %1433 = vst.msk [vmem:[#allocation3 + $0xc8] sm:$0xf] %vm812, %v1401
        %1434 = vst.msk [vmem:[#allocation3 + $0xdc] sm:$0xf] %vm812, %v1402
        %1435 = vst.msk [vmem:[#allocation3 + $0xf0] sm:$0xf] %vm812, %v1403
        %1436 = vst.msk [vmem:[#allocation3 + $0x104] sm:$0xf] %vm812, %v1404
        %1437 = vst.msk [vmem:[#allocation3 + $0x118] sm:$0xf] %vm812, %v1405
        %1438 = vst.msk [vmem:[#allocation3 + $0x12c] sm:$0xf] %vm812, %v1406
        %1439 = vst.msk [vmem:[#allocation3 + $0x140] sm:$0xf] %vm812, %v1407
        %1440 = vst.msk [vmem:[#allocation3 + $0x154] sm:$0xf] %vm812, %v1408
        %1441 = vst.msk [vmem:[#allocation3 + $0x168] sm:$0xf] %vm812, %v1409
        %1442 = vst.msk [vmem:[#allocation3 + $0x17c] sm:$0xf] %vm812, %v1410
        %1443 = vst.msk [vmem:[#allocation3 + $0x190] sm:$0xf] %vm812, %v1411
        %1444 = vst.msk [vmem:[#allocation3 + $0x1a4] sm:$0xf] %vm812, %v1412
        %1445 = vst.msk [vmem:[#allocation3 + $0x1b8] sm:$0xf] %vm812, %v1413
        %1446 = vst.msk [vmem:[#allocation3 + $0x1cc] sm:$0xf] %vm812, %v1414
        %1447 = vst.msk [vmem:[#allocation3 + $0x1e0] sm:$0xf] %vm812, %v1415
        %1448 = vst.msk [vmem:[#allocation3 + $0x1f4] sm:$0xf] %vm812, %v1416
        %1449 = vst.msk [vmem:[#allocation3 + $0x208] sm:$0xf] %vm812, %v1417
        %1450 = vst.msk [vmem:[#allocation3 + $0x21c] sm:$0xf] %vm812, %v1418
        %1451 = vst.msk [vmem:[#allocation3 + $0x230] sm:$0xf] %vm812, %v1419
        %1452 = vst.msk [vmem:[#allocation3 + $0x244] sm:$0xf] %vm812, %v1420
        %1453 = vst.msk [vmem:[#allocation3 + $0x258] sm:$0xf] %vm812, %v1421
        %1454 = vst.msk [vmem:[#allocation3 + $0x26c] sm:$0xf] %vm812, %v1422
        %v1455 = vld [vmem:[#allocation2] sm:$0xf]
        %v1456 = vld [vmem:[#allocation2 + $0x4] sm:$0xf]
        %v1457 = vld [vmem:[#allocation2 + $0x8] sm:$0x1]
        %v1458 = vld [vmem:[#allocation2 + $0xc] sm:$0xf]
        %v1459 = vld [vmem:[#allocation2 + $0x10] sm:$0xf]
        %v1460 = vld [vmem:[#allocation2 + $0x14] sm:$0x1]
        %v1461 = vld [vmem:[#allocation2 + $0x18] sm:$0xf]
        %v1462 = vld [vmem:[#allocation2 + $0x1c] sm:$0xf]
        %v1463 = vld [vmem:[#allocation2 + $0x20] sm:$0x1]
        %v1464 = vld [vmem:[#allocation2 + $0x24] sm:$0xf]
        %v1465 = vld [vmem:[#allocation2 + $0x28] sm:$0xf]
        %v1466 = vld [vmem:[#allocation2 + $0x2c] sm:$0x1]
        %v1467 = vld [vmem:[#allocation2 + $0x30] sm:$0xf]
        %v1468 = vld [vmem:[#allocation2 + $0x34] sm:$0xf]
        %v1469 = vld [vmem:[#allocation2 + $0x38] sm:$0x1]
        %v1470 = vld [vmem:[#allocation2 + $0x3c] sm:$0xf]
        %v1471 = vld [vmem:[#allocation2 + $0x40] sm:$0xf]
        %v1472 = vld [vmem:[#allocation2 + $0x44] sm:$0x1]
        %v1473 = vld [vmem:[#allocation2 + $0x48] sm:$0xf]
        %v1474 = vld [vmem:[#allocation2 + $0x4c] sm:$0xf]
        %v1475 = vld [vmem:[#allocation2 + $0x50] sm:$0x1]
        %v1476 = vld [vmem:[#allocation2 + $0x54] sm:$0xf]
        %v1477 = vld [vmem:[#allocation2 + $0x58] sm:$0xf]
        %v1478 = vld [vmem:[#allocation2 + $0x5c] sm:$0x1]
        %v1479 = vld [vmem:[#allocation2 + $0x60] sm:$0xf]
        %v1480 = vld [vmem:[#allocation2 + $0x64] sm:$0xf]
        %v1481 = vld [vmem:[#allocation2 + $0x68] sm:$0x1]
        %v1482 = vld [vmem:[#allocation2 + $0x6c] sm:$0xf]
        %v1483 = vld [vmem:[#allocation2 + $0x70] sm:$0xf]
        %v1484 = vld [vmem:[#allocation2 + $0x74] sm:$0x1]
        %v1485 = vld [vmem:[#allocation2 + $0x78] sm:$0xf]
        %v1486 = vld [vmem:[#allocation2 + $0x7c] sm:$0xf]
        %v1487 = vld [vmem:[#allocation2 + $0x80] sm:$0x1]
        %v1488 = vld [vmem:[#allocation2 + $0x84] sm:$0xf]
        %v1489 = vld [vmem:[#allocation2 + $0x88] sm:$0xf]
        %v1490 = vld [vmem:[#allocation2 + $0x8c] sm:$0x1]
        %v1491 = vld [vmem:[#allocation2 + $0x90] sm:$0xf]
        %v1492 = vld [vmem:[#allocation2 + $0x94] sm:$0xf]
        %v1493 = vld [vmem:[#allocation2 + $0x98] sm:$0x1]
        %v1494 = vld [vmem:[#allocation2 + $0x9c] sm:$0xf]
        %v1495 = vld [vmem:[#allocation2 + $0xa0] sm:$0xf]
        %v1496 = vld [vmem:[#allocation2 + $0xa4] sm:$0x1]
        %v1497 = vld [vmem:[#allocation2 + $0xa8] sm:$0xf]
        %v1498 = vld [vmem:[#allocation2 + $0xac] sm:$0xf]
        %v1499 = vld [vmem:[#allocation2 + $0xb0] sm:$0x1]
        %v1500 = vld [vmem:[#allocation2 + $0xb4] sm:$0xf]
        %v1501 = vld [vmem:[#allocation2 + $0xb8] sm:$0xf]
        %v1502 = vld [vmem:[#allocation2 + $0xbc] sm:$0x1]
        %vm1503 = vsmask.f32 3328
        %vm1504 = vsmask.f32 7440
        %vm1505 = vmor %vm1503, %vm1504
        %v1507 = vshrl.u32 %v1455, 16
        %v1509 = vrot.slane %v1507, 4
        %v1510 = vshll.u32 %v1455, 16
        %v1512 = vrot.slane %v1510, 5
        %v1513 = vor.u32 %v1509, %v1512
        %v1514 = vrot.slane %v1513, 4
        %v1516 = vshll.u32 %v1456, 16
        %v1518 = vrot.slane %v1516, 5
        %v1519 = vsel %vm1505, %v1514, %v1518
        %v1520 = vshrl.u32 %v1456, 16
        %v1522 = vrot.slane %v1520, 4
        %v1523 = vor.u32 %v1522, %v1518
        %v1524 = vrot.slane %v1523, 4
        %v1526 = vshll.u32 %v1457, 16
        %v1528 = vrot.slane %v1526, 5
        %v1529 = vsel %vm1505, %v1524, %v1528
        %v1531 = vshrl.u32 %v1458, 16
        %v1533 = vrot.slane %v1531, 4
        %v1534 = vshll.u32 %v1458, 16
        %v1536 = vrot.slane %v1534, 5
        %v1537 = vor.u32 %v1533, %v1536
        %v1538 = vrot.slane %v1537, 4
        %v1540 = vshll.u32 %v1459, 16
        %v1542 = vrot.slane %v1540, 5
        %v1543 = vsel %vm1505, %v1538, %v1542
        %v1544 = vshrl.u32 %v1459, 16
        %v1546 = vrot.slane %v1544, 4
        %v1547 = vor.u32 %v1546, %v1542
        %v1548 = vrot.slane %v1547, 4
        %v1550 = vshll.u32 %v1460, 16
        %v1552 = vrot.slane %v1550, 5
        %v1553 = vsel %vm1505, %v1548, %v1552
        %v1555 = vshrl.u32 %v1461, 16
        %v1557 = vrot.slane %v1555, 4
        %v1558 = vshll.u32 %v1461, 16
        %v1560 = vrot.slane %v1558, 5
        %v1561 = vor.u32 %v1557, %v1560
        %v1562 = vrot.slane %v1561, 4
        %v1564 = vshll.u32 %v1462, 16
        %v1566 = vrot.slane %v1564, 5
        %v1567 = vsel %vm1505, %v1562, %v1566
        %v1568 = vshrl.u32 %v1462, 16
        %v1570 = vrot.slane %v1568, 4
        %v1571 = vor.u32 %v1570, %v1566
        %v1572 = vrot.slane %v1571, 4
        %v1574 = vshll.u32 %v1463, 16
        %v1576 = vrot.slane %v1574, 5
        %v1577 = vsel %vm1505, %v1572, %v1576
        %v1579 = vshrl.u32 %v1464, 16
        %v1581 = vrot.slane %v1579, 4
        %v1582 = vshll.u32 %v1464, 16
        %v1584 = vrot.slane %v1582, 5
        %v1585 = vor.u32 %v1581, %v1584
        %v1586 = vrot.slane %v1585, 4
        %v1588 = vshll.u32 %v1465, 16
        %v1590 = vrot.slane %v1588, 5
        %v1591 = vsel %vm1505, %v1586, %v1590
        %v1592 = vshrl.u32 %v1465, 16
        %v1594 = vrot.slane %v1592, 4
        %v1595 = vor.u32 %v1594, %v1590
        %v1596 = vrot.slane %v1595, 4
        %v1598 = vshll.u32 %v1466, 16
        %v1600 = vrot.slane %v1598, 5
        %v1601 = vsel %vm1505, %v1596, %v1600
        %v1603 = vshrl.u32 %v1467, 16
        %v1605 = vrot.slane %v1603, 4
        %v1606 = vshll.u32 %v1467, 16
        %v1608 = vrot.slane %v1606, 5
        %v1609 = vor.u32 %v1605, %v1608
        %v1610 = vrot.slane %v1609, 4
        %v1612 = vshll.u32 %v1468, 16
        %v1614 = vrot.slane %v1612, 5
        %v1615 = vsel %vm1505, %v1610, %v1614
        %v1616 = vshrl.u32 %v1468, 16
        %v1618 = vrot.slane %v1616, 4
        %v1619 = vor.u32 %v1618, %v1614
        %v1620 = vrot.slane %v1619, 4
        %v1622 = vshll.u32 %v1469, 16
        %v1624 = vrot.slane %v1622, 5
        %v1625 = vsel %vm1505, %v1620, %v1624
        %v1627 = vshrl.u32 %v1470, 16
        %v1629 = vrot.slane %v1627, 4
        %v1630 = vshll.u32 %v1470, 16
        %v1632 = vrot.slane %v1630, 5
        %v1633 = vor.u32 %v1629, %v1632
        %v1634 = vrot.slane %v1633, 4
        %v1636 = vshll.u32 %v1471, 16
        %v1638 = vrot.slane %v1636, 5
        %v1639 = vsel %vm1505, %v1634, %v1638
        %v1640 = vshrl.u32 %v1471, 16
        %v1642 = vrot.slane %v1640, 4
        %v1643 = vor.u32 %v1642, %v1638
        %v1644 = vrot.slane %v1643, 4
        %v1646 = vshll.u32 %v1472, 16
        %v1648 = vrot.slane %v1646, 5
        %v1649 = vsel %vm1505, %v1644, %v1648
        %v1651 = vshrl.u32 %v1473, 16
        %v1653 = vrot.slane %v1651, 4
        %v1654 = vshll.u32 %v1473, 16
        %v1656 = vrot.slane %v1654, 5
        %v1657 = vor.u32 %v1653, %v1656
        %v1658 = vrot.slane %v1657, 4
        %v1660 = vshll.u32 %v1474, 16
        %v1662 = vrot.slane %v1660, 5
        %v1663 = vsel %vm1505, %v1658, %v1662
        %v1664 = vshrl.u32 %v1474, 16
        %v1666 = vrot.slane %v1664, 4
        %v1667 = vor.u32 %v1666, %v1662
        %v1668 = vrot.slane %v1667, 4
        %v1670 = vshll.u32 %v1475, 16
        %v1672 = vrot.slane %v1670, 5
        %v1673 = vsel %vm1505, %v1668, %v1672
        %v1675 = vshrl.u32 %v1476, 16
        %v1677 = vrot.slane %v1675, 4
        %v1678 = vshll.u32 %v1476, 16
        %v1680 = vrot.slane %v1678, 5
        %v1681 = vor.u32 %v1677, %v1680
        %v1682 = vrot.slane %v1681, 4
        %v1684 = vshll.u32 %v1477, 16
        %v1686 = vrot.slane %v1684, 5
        %v1687 = vsel %vm1505, %v1682, %v1686
        %v1688 = vshrl.u32 %v1477, 16
        %v1690 = vrot.slane %v1688, 4
        %v1691 = vor.u32 %v1690, %v1686
        %v1692 = vrot.slane %v1691, 4
        %v1694 = vshll.u32 %v1478, 16
        %v1696 = vrot.slane %v1694, 5
        %v1697 = vsel %vm1505, %v1692, %v1696
        %v1699 = vshrl.u32 %v1479, 16
        %v1701 = vrot.slane %v1699, 4
        %v1702 = vshll.u32 %v1479, 16
        %v1704 = vrot.slane %v1702, 5
        %v1705 = vor.u32 %v1701, %v1704
        %v1706 = vrot.slane %v1705, 4
        %v1708 = vshll.u32 %v1480, 16
        %v1710 = vrot.slane %v1708, 5
        %v1711 = vsel %vm1505, %v1706, %v1710
        %v1712 = vshrl.u32 %v1480, 16
        %v1714 = vrot.slane %v1712, 4
        %v1715 = vor.u32 %v1714, %v1710
        %v1716 = vrot.slane %v1715, 4
        %v1718 = vshll.u32 %v1481, 16
        %v1720 = vrot.slane %v1718, 5
        %v1721 = vsel %vm1505, %v1716, %v1720
        %v1723 = vshrl.u32 %v1482, 16
        %v1725 = vrot.slane %v1723, 4
        %v1726 = vshll.u32 %v1482, 16
        %v1728 = vrot.slane %v1726, 5
        %v1729 = vor.u32 %v1725, %v1728
        %v1730 = vrot.slane %v1729, 4
        %v1732 = vshll.u32 %v1483, 16
        %v1734 = vrot.slane %v1732, 5
        %v1735 = vsel %vm1505, %v1730, %v1734
        %v1736 = vshrl.u32 %v1483, 16
        %v1738 = vrot.slane %v1736, 4
        %v1739 = vor.u32 %v1738, %v1734
        %v1740 = vrot.slane %v1739, 4
        %v1742 = vshll.u32 %v1484, 16
        %v1744 = vrot.slane %v1742, 5
        %v1745 = vsel %vm1505, %v1740, %v1744
        %v1747 = vshrl.u32 %v1485, 16
        %v1749 = vrot.slane %v1747, 4
        %v1750 = vshll.u32 %v1485, 16
        %v1752 = vrot.slane %v1750, 5
        %v1753 = vor.u32 %v1749, %v1752
        %v1754 = vrot.slane %v1753, 4
        %v1756 = vshll.u32 %v1486, 16
        %v1758 = vrot.slane %v1756, 5
        %v1759 = vsel %vm1505, %v1754, %v1758
        %v1760 = vshrl.u32 %v1486, 16
        %v1762 = vrot.slane %v1760, 4
        %v1763 = vor.u32 %v1762, %v1758
        %v1764 = vrot.slane %v1763, 4
        %v1766 = vshll.u32 %v1487, 16
        %v1768 = vrot.slane %v1766, 5
        %v1769 = vsel %vm1505, %v1764, %v1768
        %v1771 = vshrl.u32 %v1488, 16
        %v1773 = vrot.slane %v1771, 4
        %v1774 = vshll.u32 %v1488, 16
        %v1776 = vrot.slane %v1774, 5
        %v1777 = vor.u32 %v1773, %v1776
        %v1778 = vrot.slane %v1777, 4
        %v1780 = vshll.u32 %v1489, 16
        %v1782 = vrot.slane %v1780, 5
        %v1783 = vsel %vm1505, %v1778, %v1782
        %v1784 = vshrl.u32 %v1489, 16
        %v1786 = vrot.slane %v1784, 4
        %v1787 = vor.u32 %v1786, %v1782
        %v1788 = vrot.slane %v1787, 4
        %v1790 = vshll.u32 %v1490, 16
        %v1792 = vrot.slane %v1790, 5
        %v1793 = vsel %vm1505, %v1788, %v1792
        %v1795 = vshrl.u32 %v1491, 16
        %v1797 = vrot.slane %v1795, 4
        %v1798 = vshll.u32 %v1491, 16
        %v1800 = vrot.slane %v1798, 5
        %v1801 = vor.u32 %v1797, %v1800
        %v1802 = vrot.slane %v1801, 4
        %v1804 = vshll.u32 %v1492, 16
        %v1806 = vrot.slane %v1804, 5
        %v1807 = vsel %vm1505, %v1802, %v1806
        %v1808 = vshrl.u32 %v1492, 16
        %v1810 = vrot.slane %v1808, 4
        %v1811 = vor.u32 %v1810, %v1806
        %v1812 = vrot.slane %v1811, 4
        %v1814 = vshll.u32 %v1493, 16
        %v1816 = vrot.slane %v1814, 5
        %v1817 = vsel %vm1505, %v1812, %v1816
        %v1819 = vshrl.u32 %v1494, 16
        %v1821 = vrot.slane %v1819, 4
        %v1822 = vshll.u32 %v1494, 16
        %v1824 = vrot.slane %v1822, 5
        %v1825 = vor.u32 %v1821, %v1824
        %v1826 = vrot.slane %v1825, 4
        %v1828 = vshll.u32 %v1495, 16
        %v1830 = vrot.slane %v1828, 5
        %v1831 = vsel %vm1505, %v1826, %v1830
        %v1832 = vshrl.u32 %v1495, 16
        %v1834 = vrot.slane %v1832, 4
        %v1835 = vor.u32 %v1834, %v1830
        %v1836 = vrot.slane %v1835, 4
        %v1838 = vshll.u32 %v1496, 16
        %v1840 = vrot.slane %v1838, 5
        %v1841 = vsel %vm1505, %v1836, %v1840
        %v1843 = vshrl.u32 %v1497, 16
        %v1845 = vrot.slane %v1843, 4
        %v1846 = vshll.u32 %v1497, 16
        %v1848 = vrot.slane %v1846, 5
        %v1849 = vor.u32 %v1845, %v1848
        %v1850 = vrot.slane %v1849, 4
        %v1852 = vshll.u32 %v1498, 16
        %v1854 = vrot.slane %v1852, 5
        %v1855 = vsel %vm1505, %v1850, %v1854
        %v1856 = vshrl.u32 %v1498, 16
        %v1858 = vrot.slane %v1856, 4
        %v1859 = vor.u32 %v1858, %v1854
        %v1860 = vrot.slane %v1859, 4
        %v1862 = vshll.u32 %v1499, 16
        %v1864 = vrot.slane %v1862, 5
        %v1865 = vsel %vm1505, %v1860, %v1864
        %v1867 = vshrl.u32 %v1500, 16
        %v1869 = vrot.slane %v1867, 4
        %v1870 = vshll.u32 %v1500, 16
        %v1872 = vrot.slane %v1870, 5
        %v1873 = vor.u32 %v1869, %v1872
        %v1874 = vrot.slane %v1873, 4
        %v1876 = vshll.u32 %v1501, 16
        %v1878 = vrot.slane %v1876, 5
        %v1879 = vsel %vm1505, %v1874, %v1878
        %v1880 = vshrl.u32 %v1501, 16
        %v1882 = vrot.slane %v1880, 4
        %v1883 = vor.u32 %v1882, %v1878
        %v1884 = vrot.slane %v1883, 4
        %v1886 = vshll.u32 %v1502, 16
        %v1888 = vrot.slane %v1886, 5
        %v1889 = vsel %vm1505, %v1884, %v1888
        %1890 = vrot.lane.b32.xlu0 %v1519, 64
        %v1891 = vpop.permute.xlu0 %1890
        %1892 = vrot.lane.b32.xlu0 %v1529, 64
        %v1893 = vpop.permute.xlu0 %1892
        %1894 = vrot.lane.b32.xlu0 %v1543, 64
        %v1895 = vpop.permute.xlu0 %1894
        %1896 = vrot.lane.b32.xlu0 %v1553, 64
        %v1897 = vpop.permute.xlu0 %1896
        %1898 = vrot.lane.b32.xlu0 %v1567, 64
        %v1899 = vpop.permute.xlu0 %1898
        %1900 = vrot.lane.b32.xlu0 %v1577, 64
        %v1901 = vpop.permute.xlu0 %1900
        %1902 = vrot.lane.b32.xlu0 %v1591, 64
        %v1903 = vpop.permute.xlu0 %1902
        %1904 = vrot.lane.b32.xlu0 %v1601, 64
        %v1905 = vpop.permute.xlu0 %1904
        %1906 = vrot.lane.b32.xlu0 %v1615, 64
        %v1907 = vpop.permute.xlu0 %1906
        %1908 = vrot.lane.b32.xlu0 %v1625, 64
        %v1909 = vpop.permute.xlu0 %1908
        %1910 = vrot.lane.b32.xlu0 %v1639, 64
        %v1911 = vpop.permute.xlu0 %1910
        %1912 = vrot.lane.b32.xlu0 %v1649, 64
        %v1913 = vpop.permute.xlu0 %1912
        %1914 = vrot.lane.b32.xlu0 %v1663, 64
        %v1915 = vpop.permute.xlu0 %1914
        %1916 = vrot.lane.b32.xlu0 %v1673, 64
        %v1917 = vpop.permute.xlu0 %1916
        %1918 = vrot.lane.b32.xlu0 %v1687, 64
        %v1919 = vpop.permute.xlu0 %1918
        %1920 = vrot.lane.b32.xlu0 %v1697, 64
        %v1921 = vpop.permute.xlu0 %1920
        %1922 = vrot.lane.b32.xlu0 %v1711, 64
        %v1923 = vpop.permute.xlu0 %1922
        %1924 = vrot.lane.b32.xlu0 %v1721, 64
        %v1925 = vpop.permute.xlu0 %1924
        %1926 = vrot.lane.b32.xlu0 %v1735, 64
        %v1927 = vpop.permute.xlu0 %1926
        %1928 = vrot.lane.b32.xlu0 %v1745, 64
        %v1929 = vpop.permute.xlu0 %1928
        %1930 = vrot.lane.b32.xlu0 %v1759, 64
        %v1931 = vpop.permute.xlu0 %1930
        %1932 = vrot.lane.b32.xlu0 %v1769, 64
        %v1933 = vpop.permute.xlu0 %1932
        %1934 = vrot.lane.b32.xlu0 %v1783, 64
        %v1935 = vpop.permute.xlu0 %1934
        %1936 = vrot.lane.b32.xlu0 %v1793, 64
        %v1937 = vpop.permute.xlu0 %1936
        %1938 = vrot.lane.b32.xlu0 %v1807, 64
        %v1939 = vpop.permute.xlu0 %1938
        %1940 = vrot.lane.b32.xlu0 %v1817, 64
        %v1941 = vpop.permute.xlu0 %1940
        %1942 = vrot.lane.b32.xlu0 %v1831, 64
        %v1943 = vpop.permute.xlu0 %1942
        %1944 = vrot.lane.b32.xlu0 %v1841, 64
        %v1945 = vpop.permute.xlu0 %1944
        %1946 = vrot.lane.b32.xlu0 %v1855, 64
        %v1947 = vpop.permute.xlu0 %1946
        %1948 = vrot.lane.b32.xlu0 %v1865, 64
        %v1949 = vpop.permute.xlu0 %1948
        %1950 = vrot.lane.b32.xlu0 %v1879, 64
        %v1951 = vpop.permute.xlu0 %1950
        %1952 = vrot.lane.b32.xlu0 %v1889, 64
        %v1953 = vpop.permute.xlu0 %1952
        %vm1986 = vcmask 1043968
        %1987 = vst.msk [vmem:[#allocation3] sm:$0xf] %vm1986, %v1891
        %1988 = vst.msk [vmem:[#allocation3 + $0x14] sm:$0xf] %vm1986, %v1893
        %1989 = vst.msk [vmem:[#allocation3 + $0x28] sm:$0xf] %vm1986, %v1895
        %1990 = vst.msk [vmem:[#allocation3 + $0x3c] sm:$0xf] %vm1986, %v1897
        %1991 = vst.msk [vmem:[#allocation3 + $0x50] sm:$0xf] %vm1986, %v1899
        %1992 = vst.msk [vmem:[#allocation3 + $0x64] sm:$0xf] %vm1986, %v1901
        %1993 = vst.msk [vmem:[#allocation3 + $0x78] sm:$0xf] %vm1986, %v1903
        %1994 = vst.msk [vmem:[#allocation3 + $0x8c] sm:$0xf] %vm1986, %v1905
        %1995 = vst.msk [vmem:[#allocation3 + $0xa0] sm:$0xf] %vm1986, %v1907
        %1996 = vst.msk [vmem:[#allocation3 + $0xb4] sm:$0xf] %vm1986, %v1909
        %1997 = vst.msk [vmem:[#allocation3 + $0xc8] sm:$0xf] %vm1986, %v1911
        %1998 = vst.msk [vmem:[#allocation3 + $0xdc] sm:$0xf] %vm1986, %v1913
        %1999 = vst.msk [vmem:[#allocation3 + $0xf0] sm:$0xf] %vm1986, %v1915
        %2000 = vst.msk [vmem:[#allocation3 + $0x104] sm:$0xf] %vm1986, %v1917
        %2001 = vst.msk [vmem:[#allocation3 + $0x118] sm:$0xf] %vm1986, %v1919
        %2002 = vst.msk [vmem:[#allocation3 + $0x12c] sm:$0xf] %vm1986, %v1921
        %2003 = vst.msk [vmem:[#allocation3 + $0x140] sm:$0xf] %vm1986, %v1923
        %2004 = vst.msk [vmem:[#allocation3 + $0x154] sm:$0xf] %vm1986, %v1925
        %2005 = vst.msk [vmem:[#allocation3 + $0x168] sm:$0xf] %vm1986, %v1927
        %2006 = vst.msk [vmem:[#allocation3 + $0x17c] sm:$0xf] %vm1986, %v1929
        %2007 = vst.msk [vmem:[#allocation3 + $0x190] sm:$0xf] %vm1986, %v1931
        %2008 = vst.msk [vmem:[#allocation3 + $0x1a4] sm:$0xf] %vm1986, %v1933
        %2009 = vst.msk [vmem:[#allocation3 + $0x1b8] sm:$0xf] %vm1986, %v1935
        %2010 = vst.msk [vmem:[#allocation3 + $0x1cc] sm:$0xf] %vm1986, %v1937
        %2011 = vst.msk [vmem:[#allocation3 + $0x1e0] sm:$0xf] %vm1986, %v1939
        %2012 = vst.msk [vmem:[#allocation3 + $0x1f4] sm:$0xf] %vm1986, %v1941
        %2013 = vst.msk [vmem:[#allocation3 + $0x208] sm:$0xf] %vm1986, %v1943
        %2014 = vst.msk [vmem:[#allocation3 + $0x21c] sm:$0xf] %vm1986, %v1945
        %2015 = vst.msk [vmem:[#allocation3 + $0x230] sm:$0xf] %vm1986, %v1947
        %2016 = vst.msk [vmem:[#allocation3 + $0x244] sm:$0xf] %vm1986, %v1949
        %2017 = vst.msk [vmem:[#allocation3 + $0x258] sm:$0xf] %vm1986, %v1951
        %2018 = vst.msk [vmem:[#allocation3 + $0x26c] sm:$0xf] %vm1986, %v1953
        %v2019 = vld [vmem:[#allocation2] sm:$0xe]
        %v2020 = vld [vmem:[#allocation2 + $0x4] sm:$0xf]
        %v2021 = vld [vmem:[#allocation2 + $0x8] sm:$0x1]
        %v2022 = vld [vmem:[#allocation2 + $0xc] sm:$0xe]
        %v2023 = vld [vmem:[#allocation2 + $0x10] sm:$0xf]
        %v2024 = vld [vmem:[#allocation2 + $0x14] sm:$0x1]
        %v2025 = vld [vmem:[#allocation2 + $0x18] sm:$0xe]
        %v2026 = vld [vmem:[#allocation2 + $0x1c] sm:$0xf]
        %v2027 = vld [vmem:[#allocation2 + $0x20] sm:$0x1]
        %v2028 = vld [vmem:[#allocation2 + $0x24] sm:$0xe]
        %v2029 = vld [vmem:[#allocation2 + $0x28] sm:$0xf]
        %v2030 = vld [vmem:[#allocation2 + $0x2c] sm:$0x1]
        %v2031 = vld [vmem:[#allocation2 + $0x30] sm:$0xe]
        %v2032 = vld [vmem:[#allocation2 + $0x34] sm:$0xf]
        %v2033 = vld [vmem:[#allocation2 + $0x38] sm:$0x1]
        %v2034 = vld [vmem:[#allocation2 + $0x3c] sm:$0xe]
        %v2035 = vld [vmem:[#allocation2 + $0x40] sm:$0xf]
        %v2036 = vld [vmem:[#allocation2 + $0x44] sm:$0x1]
        %v2037 = vld [vmem:[#allocation2 + $0x48] sm:$0xe]
        %v2038 = vld [vmem:[#allocation2 + $0x4c] sm:$0xf]
        %v2039 = vld [vmem:[#allocation2 + $0x50] sm:$0x1]
        %v2040 = vld [vmem:[#allocation2 + $0x54] sm:$0xe]
        %v2041 = vld [vmem:[#allocation2 + $0x58] sm:$0xf]
        %v2042 = vld [vmem:[#allocation2 + $0x5c] sm:$0x1]
        %v2043 = vld [vmem:[#allocation2 + $0x60] sm:$0xe]
        %v2044 = vld [vmem:[#allocation2 + $0x64] sm:$0xf]
        %v2045 = vld [vmem:[#allocation2 + $0x68] sm:$0x1]
        %v2046 = vld [vmem:[#allocation2 + $0x6c] sm:$0xe]
        %v2047 = vld [vmem:[#allocation2 + $0x70] sm:$0xf]
        %v2048 = vld [vmem:[#allocation2 + $0x74] sm:$0x1]
        %v2049 = vld [vmem:[#allocation2 + $0x78] sm:$0xe]
        %v2050 = vld [vmem:[#allocation2 + $0x7c] sm:$0xf]
        %v2051 = vld [vmem:[#allocation2 + $0x80] sm:$0x1]
        %v2052 = vld [vmem:[#allocation2 + $0x84] sm:$0xe]
        %v2053 = vld [vmem:[#allocation2 + $0x88] sm:$0xf]
        %v2054 = vld [vmem:[#allocation2 + $0x8c] sm:$0x1]
        %v2055 = vld [vmem:[#allocation2 + $0x90] sm:$0xe]
        %v2056 = vld [vmem:[#allocation2 + $0x94] sm:$0xf]
        %v2057 = vld [vmem:[#allocation2 + $0x98] sm:$0x1]
        %v2058 = vld [vmem:[#allocation2 + $0x9c] sm:$0xe]
        %v2059 = vld [vmem:[#allocation2 + $0xa0] sm:$0xf]
        %v2060 = vld [vmem:[#allocation2 + $0xa4] sm:$0x1]
        %v2061 = vld [vmem:[#allocation2 + $0xa8] sm:$0xe]
        %v2062 = vld [vmem:[#allocation2 + $0xac] sm:$0xf]
        %v2063 = vld [vmem:[#allocation2 + $0xb0] sm:$0x1]
        %v2064 = vld [vmem:[#allocation2 + $0xb4] sm:$0xe]
        %v2065 = vld [vmem:[#allocation2 + $0xb8] sm:$0xf]
        %v2066 = vld [vmem:[#allocation2 + $0xbc] sm:$0x1]
        %vm2115 = vcmask 1042432
        %vm2116 = vcmask 1046532
        %vm2117 = vmor %vm2115, %vm2116
        %v2118 = vrot.slane %v2019, 5
        %v2119 = vrot.slane %v2118, 4
        %v2120 = vrot.slane %v2020, 5
        %v2121 = vsel %vm2117, %v2119, %v2120
        %v2122 = vrot.slane %v2120, 4
        %v2123 = vrot.slane %v2021, 5
        %v2124 = vsel %vm2117, %v2122, %v2123
        %v2125 = vrot.slane %v2022, 5
        %v2126 = vrot.slane %v2125, 4
        %v2127 = vrot.slane %v2023, 5
        %v2128 = vsel %vm2117, %v2126, %v2127
        %v2129 = vrot.slane %v2127, 4
        %v2130 = vrot.slane %v2024, 5
        %v2131 = vsel %vm2117, %v2129, %v2130
        %v2132 = vrot.slane %v2025, 5
        %v2133 = vrot.slane %v2132, 4
        %v2134 = vrot.slane %v2026, 5
        %v2135 = vsel %vm2117, %v2133, %v2134
        %v2136 = vrot.slane %v2134, 4
        %v2137 = vrot.slane %v2027, 5
        %v2138 = vsel %vm2117, %v2136, %v2137
        %v2139 = vrot.slane %v2028, 5
        %v2140 = vrot.slane %v2139, 4
        %v2141 = vrot.slane %v2029, 5
        %v2142 = vsel %vm2117, %v2140, %v2141
        %v2143 = vrot.slane %v2141, 4
        %v2144 = vrot.slane %v2030, 5
        %v2145 = vsel %vm2117, %v2143, %v2144
        %v2146 = vrot.slane %v2031, 5
        %v2147 = vrot.slane %v2146, 4
        %v2148 = vrot.slane %v2032, 5
        %v2149 = vsel %vm2117, %v2147, %v2148
        %v2150 = vrot.slane %v2148, 4
        %v2151 = vrot.slane %v2033, 5
        %v2152 = vsel %vm2117, %v2150, %v2151
        %v2153 = vrot.slane %v2034, 5
        %v2154 = vrot.slane %v2153, 4
        %v2155 = vrot.slane %v2035, 5
        %v2156 = vsel %vm2117, %v2154, %v2155
        %v2157 = vrot.slane %v2155, 4
        %v2158 = vrot.slane %v2036, 5
        %v2159 = vsel %vm2117, %v2157, %v2158
        %v2160 = vrot.slane %v2037, 5
        %v2161 = vrot.slane %v2160, 4
        %v2162 = vrot.slane %v2038, 5
        %v2163 = vsel %vm2117, %v2161, %v2162
        %v2164 = vrot.slane %v2162, 4
        %v2165 = vrot.slane %v2039, 5
        %v2166 = vsel %vm2117, %v2164, %v2165
        %v2167 = vrot.slane %v2040, 5
        %v2168 = vrot.slane %v2167, 4
        %v2169 = vrot.slane %v2041, 5
        %v2170 = vsel %vm2117, %v2168, %v2169
        %v2171 = vrot.slane %v2169, 4
        %v2172 = vrot.slane %v2042, 5
        %v2173 = vsel %vm2117, %v2171, %v2172
        %v2174 = vrot.slane %v2043, 5
        %v2175 = vrot.slane %v2174, 4
        %v2176 = vrot.slane %v2044, 5
        %v2177 = vsel %vm2117, %v2175, %v2176
        %v2178 = vrot.slane %v2176, 4
        %v2179 = vrot.slane %v2045, 5
        %v2180 = vsel %vm2117, %v2178, %v2179
        %v2181 = vrot.slane %v2046, 5
        %v2182 = vrot.slane %v2181, 4
        %v2183 = vrot.slane %v2047, 5
        %v2184 = vsel %vm2117, %v2182, %v2183
        %v2185 = vrot.slane %v2183, 4
        %v2186 = vrot.slane %v2048, 5
        %v2187 = vsel %vm2117, %v2185, %v2186
        %v2188 = vrot.slane %v2049, 5
        %v2189 = vrot.slane %v2188, 4
        %v2190 = vrot.slane %v2050, 5
        %v2191 = vsel %vm2117, %v2189, %v2190
        %v2192 = vrot.slane %v2190, 4
        %v2193 = vrot.slane %v2051, 5
        %v2194 = vsel %vm2117, %v2192, %v2193
        %v2195 = vrot.slane %v2052, 5
        %v2196 = vrot.slane %v2195, 4
        %v2197 = vrot.slane %v2053, 5
        %v2198 = vsel %vm2117, %v2196, %v2197
        %v2199 = vrot.slane %v2197, 4
        %v2200 = vrot.slane %v2054, 5
        %v2201 = vsel %vm2117, %v2199, %v2200
        %v2202 = vrot.slane %v2055, 5
        %v2203 = vrot.slane %v2202, 4
        %v2204 = vrot.slane %v2056, 5
        %v2205 = vsel %vm2117, %v2203, %v2204
        %v2206 = vrot.slane %v2204, 4
        %v2207 = vrot.slane %v2057, 5
        %v2208 = vsel %vm2117, %v2206, %v2207
        %v2209 = vrot.slane %v2058, 5
        %v2210 = vrot.slane %v2209, 4
        %v2211 = vrot.slane %v2059, 5
        %v2212 = vsel %vm2117, %v2210, %v2211
        %v2213 = vrot.slane %v2211, 4
        %v2214 = vrot.slane %v2060, 5
        %v2215 = vsel %vm2117, %v2213, %v2214
        %v2216 = vrot.slane %v2061, 5
        %v2217 = vrot.slane %v2216, 4
        %v2218 = vrot.slane %v2062, 5
        %v2219 = vsel %vm2117, %v2217, %v2218
        %v2220 = vrot.slane %v2218, 4
        %v2221 = vrot.slane %v2063, 5
        %v2222 = vsel %vm2117, %v2220, %v2221
        %v2223 = vrot.slane %v2064, 5
        %v2224 = vrot.slane %v2223, 4
        %v2225 = vrot.slane %v2065, 5
        %v2226 = vsel %vm2117, %v2224, %v2225
        %v2227 = vrot.slane %v2225, 4
        %v2228 = vrot.slane %v2066, 5
        %v2229 = vsel %vm2117, %v2227, %v2228
        %2262 = vst.msk [vmem:[#allocation3 + $0x4] sm:$0xf] %vm812, %v2121
        %2263 = vst.msk [vmem:[#allocation3 + $0x18] sm:$0xf] %vm812, %v2124
        %2264 = vst.msk [vmem:[#allocation3 + $0x2c] sm:$0xf] %vm812, %v2128
        %2265 = vst.msk [vmem:[#allocation3 + $0x40] sm:$0xf] %vm812, %v2131
        %2266 = vst.msk [vmem:[#allocation3 + $0x54] sm:$0xf] %vm812, %v2135
        %2267 = vst.msk [vmem:[#allocation3 + $0x68] sm:$0xf] %vm812, %v2138
        %2268 = vst.msk [vmem:[#allocation3 + $0x7c] sm:$0xf] %vm812, %v2142
        %2269 = vst.msk [vmem:[#allocation3 + $0x90] sm:$0xf] %vm812, %v2145
        %2270 = vst.msk [vmem:[#allocation3 + $0xa4] sm:$0xf] %vm812, %v2149
        %2271 = vst.msk [vmem:[#allocation3 + $0xb8] sm:$0xf] %vm812, %v2152
        %2272 = vst.msk [vmem:[#allocation3 + $0xcc] sm:$0xf] %vm812, %v2156
        %2273 = vst.msk [vmem:[#allocation3 + $0xe0] sm:$0xf] %vm812, %v2159
        %2274 = vst.msk [vmem:[#allocation3 + $0xf4] sm:$0xf] %vm812, %v2163
        %2275 = vst.msk [vmem:[#allocation3 + $0x108] sm:$0xf] %vm812, %v2166
        %2276 = vst.msk [vmem:[#allocation3 + $0x11c] sm:$0xf] %vm812, %v2170
        %2277 = vst.msk [vmem:[#allocation3 + $0x130] sm:$0xf] %vm812, %v2173
        %2278 = vst.msk [vmem:[#allocation3 + $0x144] sm:$0xf] %vm812, %v2177
        %2279 = vst.msk [vmem:[#allocation3 + $0x158] sm:$0xf] %vm812, %v2180
        %2280 = vst.msk [vmem:[#allocation3 + $0x16c] sm:$0xf] %vm812, %v2184
        %2281 = vst.msk [vmem:[#allocation3 + $0x180] sm:$0xf] %vm812, %v2187
        %2282 = vst.msk [vmem:[#allocation3 + $0x194] sm:$0xf] %vm812, %v2191
        %2283 = vst.msk [vmem:[#allocation3 + $0x1a8] sm:$0xf] %vm812, %v2194
        %2284 = vst.msk [vmem:[#allocation3 + $0x1bc] sm:$0xf] %vm812, %v2198
        %2285 = vst.msk [vmem:[#allocation3 + $0x1d0] sm:$0xf] %vm812, %v2201
        %2286 = vst.msk [vmem:[#allocation3 + $0x1e4] sm:$0xf] %vm812, %v2205
        %2287 = vst.msk [vmem:[#allocation3 + $0x1f8] sm:$0xf] %vm812, %v2208
        %2288 = vst.msk [vmem:[#allocation3 + $0x20c] sm:$0xf] %vm812, %v2212
        %2289 = vst.msk [vmem:[#allocation3 + $0x220] sm:$0xf] %vm812, %v2215
        %2290 = vst.msk [vmem:[#allocation3 + $0x234] sm:$0xf] %vm812, %v2219
        %2291 = vst.msk [vmem:[#allocation3 + $0x248] sm:$0xf] %vm812, %v2222
        %2292 = vst.msk [vmem:[#allocation3 + $0x25c] sm:$0xf] %vm812, %v2226
        %2293 = vst.msk [vmem:[#allocation3 + $0x270] sm:$0xf] %vm812, %v2229
        %v2294 = vld [vmem:[%s821] sm:$0xf]
        %v2295 = vld [vmem:[%s821 + $0x4] sm:$0xf]
        %v2296 = vld [vmem:[%s821 + $0xc] sm:$0xf]
        %v2297 = vld [vmem:[%s821 + $0x10] sm:$0xf]
        %v2298 = vld [vmem:[%s821 + $0x18] sm:$0xf]
        %v2299 = vld [vmem:[%s821 + $0x1c] sm:$0xf]
        %v2300 = vld [vmem:[%s821 + $0x24] sm:$0xf]
        %v2301 = vld [vmem:[%s821 + $0x28] sm:$0xf]
        %v2302 = vld [vmem:[%s821 + $0x30] sm:$0xf]
        %v2303 = vld [vmem:[%s821 + $0x34] sm:$0xf]
        %v2304 = vld [vmem:[%s821 + $0x3c] sm:$0xf]
        %v2305 = vld [vmem:[%s821 + $0x40] sm:$0xf]
        %v2306 = vld [vmem:[%s821 + $0x48] sm:$0xf]
        %v2307 = vld [vmem:[%s821 + $0x4c] sm:$0xf]
        %v2308 = vld [vmem:[%s821 + $0x54] sm:$0xf]
        %v2309 = vld [vmem:[%s821 + $0x58] sm:$0xf]
        %v2310 = vld [vmem:[%s821 + $0x60] sm:$0xf]
        %v2311 = vld [vmem:[%s821 + $0x64] sm:$0xf]
        %v2312 = vld [vmem:[%s821 + $0x6c] sm:$0xf]
        %v2313 = vld [vmem:[%s821 + $0x70] sm:$0xf]
        %v2314 = vld [vmem:[%s821 + $0x78] sm:$0xf]
        %v2315 = vld [vmem:[%s821 + $0x7c] sm:$0xf]
        %v2316 = vld [vmem:[%s821 + $0x84] sm:$0xf]
        %v2317 = vld [vmem:[%s821 + $0x88] sm:$0xf]
        %v2318 = vld [vmem:[%s821 + $0x90] sm:$0xf]
        %v2319 = vld [vmem:[%s821 + $0x94] sm:$0xf]
        %v2320 = vld [vmem:[%s821 + $0x9c] sm:$0xf]
        %v2321 = vld [vmem:[%s821 + $0xa0] sm:$0xf]
        %v2322 = vld [vmem:[%s821 + $0xa8] sm:$0xf]
        %v2323 = vld [vmem:[%s821 + $0xac] sm:$0xf]
        %v2324 = vld [vmem:[%s821 + $0xb4] sm:$0xf]
        %v2325 = vld [vmem:[%s821 + $0xb8] sm:$0xf]
        %2358 = vrot.lane.b32.xlu0 %v2294, 64
        %v2359 = vpop.permute.xlu0 %2358
        %2360 = vrot.lane.b32.xlu0 %v2295, 64
        %v2361 = vpop.permute.xlu0 %2360
        %2362 = vrot.lane.b32.xlu0 %v2296, 64
        %v2363 = vpop.permute.xlu0 %2362
        %2364 = vrot.lane.b32.xlu0 %v2297, 64
        %v2365 = vpop.permute.xlu0 %2364
        %2366 = vrot.lane.b32.xlu0 %v2298, 64
        %v2367 = vpop.permute.xlu0 %2366
        %2368 = vrot.lane.b32.xlu0 %v2299, 64
        %v2369 = vpop.permute.xlu0 %2368
        %2370 = vrot.lane.b32.xlu0 %v2300, 64
        %v2371 = vpop.permute.xlu0 %2370
        %2372 = vrot.lane.b32.xlu0 %v2301, 64
        %v2373 = vpop.permute.xlu0 %2372
        %2374 = vrot.lane.b32.xlu0 %v2302, 64
        %v2375 = vpop.permute.xlu0 %2374
        %2376 = vrot.lane.b32.xlu0 %v2303, 64
        %v2377 = vpop.permute.xlu0 %2376
        %2378 = vrot.lane.b32.xlu0 %v2304, 64
        %v2379 = vpop.permute.xlu0 %2378
        %2380 = vrot.lane.b32.xlu0 %v2305, 64
        %v2381 = vpop.permute.xlu0 %2380
        %2382 = vrot.lane.b32.xlu0 %v2306, 64
        %v2383 = vpop.permute.xlu0 %2382
        %2384 = vrot.lane.b32.xlu0 %v2307, 64
        %v2385 = vpop.permute.xlu0 %2384
        %2386 = vrot.lane.b32.xlu0 %v2308, 64
        %v2387 = vpop.permute.xlu0 %2386
        %2388 = vrot.lane.b32.xlu0 %v2309, 64
        %v2389 = vpop.permute.xlu0 %2388
        %2390 = vrot.lane.b32.xlu0 %v2310, 64
        %v2391 = vpop.permute.xlu0 %2390
        %2392 = vrot.lane.b32.xlu0 %v2311, 64
        %v2393 = vpop.permute.xlu0 %2392
        %2394 = vrot.lane.b32.xlu0 %v2312, 64
        %v2395 = vpop.permute.xlu0 %2394
        %2396 = vrot.lane.b32.xlu0 %v2313, 64
        %v2397 = vpop.permute.xlu0 %2396
        %2398 = vrot.lane.b32.xlu0 %v2314, 64
        %v2399 = vpop.permute.xlu0 %2398
        %2400 = vrot.lane.b32.xlu0 %v2315, 64
        %v2401 = vpop.permute.xlu0 %2400
        %2402 = vrot.lane.b32.xlu0 %v2316, 64
        %v2403 = vpop.permute.xlu0 %2402
        %2404 = vrot.lane.b32.xlu0 %v2317, 64
        %v2405 = vpop.permute.xlu0 %2404
        %2406 = vrot.lane.b32.xlu0 %v2318, 64
        %v2407 = vpop.permute.xlu0 %2406
        %2408 = vrot.lane.b32.xlu0 %v2319, 64
        %v2409 = vpop.permute.xlu0 %2408
        %2410 = vrot.lane.b32.xlu0 %v2320, 64
        %v2411 = vpop.permute.xlu0 %2410
        %2412 = vrot.lane.b32.xlu0 %v2321, 64
        %v2413 = vpop.permute.xlu0 %2412
        %2414 = vrot.lane.b32.xlu0 %v2322, 64
        %v2415 = vpop.permute.xlu0 %2414
        %2416 = vrot.lane.b32.xlu0 %v2323, 64
        %v2417 = vpop.permute.xlu0 %2416
        %2418 = vrot.lane.b32.xlu0 %v2324, 64
        %v2419 = vpop.permute.xlu0 %2418
        %2420 = vrot.lane.b32.xlu0 %v2325, 64
        %v2421 = vpop.permute.xlu0 %2420
        %2454 = vst.msk [vmem:[#allocation3 + $0x4] sm:$0xf] %vm1986, %v2359
        %2455 = vst.msk [vmem:[#allocation3 + $0x18] sm:$0xf] %vm1986, %v2361
        %2456 = vst.msk [vmem:[#allocation3 + $0x2c] sm:$0xf] %vm1986, %v2363
        %2457 = vst.msk [vmem:[#allocation3 + $0x40] sm:$0xf] %vm1986, %v2365
        %2458 = vst.msk [vmem:[#allocation3 + $0x54] sm:$0xf] %vm1986, %v2367
        %2459 = vst.msk [vmem:[#allocation3 + $0x68] sm:$0xf] %vm1986, %v2369
        %2460 = vst.msk [vmem:[#allocation3 + $0x7c] sm:$0xf] %vm1986, %v2371
        %2461 = vst.msk [vmem:[#allocation3 + $0x90] sm:$0xf] %vm1986, %v2373
        %2462 = vst.msk [vmem:[#allocation3 + $0xa4] sm:$0xf] %vm1986, %v2375
        %2463 = vst.msk [vmem:[#allocation3 + $0xb8] sm:$0xf] %vm1986, %v2377
        %2464 = vst.msk [vmem:[#allocation3 + $0xcc] sm:$0xf] %vm1986, %v2379
        %2465 = vst.msk [vmem:[#allocation3 + $0xe0] sm:$0xf] %vm1986, %v2381
        %2466 = vst.msk [vmem:[#allocation3 + $0xf4] sm:$0xf] %vm1986, %v2383
        %2467 = vst.msk [vmem:[#allocation3 + $0x108] sm:$0xf] %vm1986, %v2385
        %2468 = vst.msk [vmem:[#allocation3 + $0x11c] sm:$0xf] %vm1986, %v2387
        %2469 = vst.msk [vmem:[#allocation3 + $0x130] sm:$0xf] %vm1986, %v2389
        %2470 = vst.msk [vmem:[#allocation3 + $0x144] sm:$0xf] %vm1986, %v2391
        %2471 = vst.msk [vmem:[#allocation3 + $0x158] sm:$0xf] %vm1986, %v2393
        %2472 = vst.msk [vmem:[#allocation3 + $0x16c] sm:$0xf] %vm1986, %v2395
        %2473 = vst.msk [vmem:[#allocation3 + $0x180] sm:$0xf] %vm1986, %v2397
        %2474 = vst.msk [vmem:[#allocation3 + $0x194] sm:$0xf] %vm1986, %v2399
        %2475 = vst.msk [vmem:[#allocation3 + $0x1a8] sm:$0xf] %vm1986, %v2401
        %2476 = vst.msk [vmem:[#allocation3 + $0x1bc] sm:$0xf] %vm1986, %v2403
        %2477 = vst.msk [vmem:[#allocation3 + $0x1d0] sm:$0xf] %vm1986, %v2405
        %2478 = vst.msk [vmem:[#allocation3 + $0x1e4] sm:$0xf] %vm1986, %v2407
        %2479 = vst.msk [vmem:[#allocation3 + $0x1f8] sm:$0xf] %vm1986, %v2409
        %2480 = vst.msk [vmem:[#allocation3 + $0x20c] sm:$0xf] %vm1986, %v2411
        %2481 = vst.msk [vmem:[#allocation3 + $0x220] sm:$0xf] %vm1986, %v2413
        %2482 = vst.msk [vmem:[#allocation3 + $0x234] sm:$0xf] %vm1986, %v2415
        %2483 = vst.msk [vmem:[#allocation3 + $0x248] sm:$0xf] %vm1986, %v2417
        %2484 = vst.msk [vmem:[#allocation3 + $0x25c] sm:$0xf] %vm1986, %v2419
        %2485 = vst.msk [vmem:[#allocation3 + $0x270] sm:$0xf] %vm1986, %v2421
        %v2486 = vld [vmem:[%s821] sm:$0xf]
        %v2487 = vld [vmem:[%s821 + $0x4] sm:$0xf]
        %v2488 = vld [vmem:[%s821 + $0x8] sm:$0x1]
        %v2489 = vld [vmem:[%s821 + $0xc] sm:$0xf]
        %v2490 = vld [vmem:[%s821 + $0x10] sm:$0xf]
        %v2491 = vld [vmem:[%s821 + $0x14] sm:$0x1]
        %v2492 = vld [vmem:[%s821 + $0x18] sm:$0xf]
        %v2493 = vld [vmem:[%s821 + $0x1c] sm:$0xf]
        %v2494 = vld [vmem:[%s821 + $0x20] sm:$0x1]
        %v2495 = vld [vmem:[%s821 + $0x24] sm:$0xf]
        %v2496 = vld [vmem:[%s821 + $0x28] sm:$0xf]
        %v2497 = vld [vmem:[%s821 + $0x2c] sm:$0x1]
        %v2498 = vld [vmem:[%s821 + $0x30] sm:$0xf]
        %v2499 = vld [vmem:[%s821 + $0x34] sm:$0xf]
        %v2500 = vld [vmem:[%s821 + $0x38] sm:$0x1]
        %v2501 = vld [vmem:[%s821 + $0x3c] sm:$0xf]
        %v2502 = vld [vmem:[%s821 + $0x40] sm:$0xf]
        %v2503 = vld [vmem:[%s821 + $0x44] sm:$0x1]
        %v2504 = vld [vmem:[%s821 + $0x48] sm:$0xf]
        %v2505 = vld [vmem:[%s821 + $0x4c] sm:$0xf]
        %v2506 = vld [vmem:[%s821 + $0x50] sm:$0x1]
        %v2507 = vld [vmem:[%s821 + $0x54] sm:$0xf]
        %v2508 = vld [vmem:[%s821 + $0x58] sm:$0xf]
        %v2509 = vld [vmem:[%s821 + $0x5c] sm:$0x1]
        %v2510 = vld [vmem:[%s821 + $0x60] sm:$0xf]
        %v2511 = vld [vmem:[%s821 + $0x64] sm:$0xf]
        %v2512 = vld [vmem:[%s821 + $0x68] sm:$0x1]
        %v2513 = vld [vmem:[%s821 + $0x6c] sm:$0xf]
        %v2514 = vld [vmem:[%s821 + $0x70] sm:$0xf]
        %v2515 = vld [vmem:[%s821 + $0x74] sm:$0x1]
        %v2516 = vld [vmem:[%s821 + $0x78] sm:$0xf]
        %v2517 = vld [vmem:[%s821 + $0x7c] sm:$0xf]
        %v2518 = vld [vmem:[%s821 + $0x80] sm:$0x1]
        %v2519 = vld [vmem:[%s821 + $0x84] sm:$0xf]
        %v2520 = vld [vmem:[%s821 + $0x88] sm:$0xf]
        %v2521 = vld [vmem:[%s821 + $0x8c] sm:$0x1]
        %v2522 = vld [vmem:[%s821 + $0x90] sm:$0xf]
        %v2523 = vld [vmem:[%s821 + $0x94] sm:$0xf]
        %v2524 = vld [vmem:[%s821 + $0x98] sm:$0x1]
        %v2525 = vld [vmem:[%s821 + $0x9c] sm:$0xf]
        %v2526 = vld [vmem:[%s821 + $0xa0] sm:$0xf]
        %v2527 = vld [vmem:[%s821 + $0xa4] sm:$0x1]
        %v2528 = vld [vmem:[%s821 + $0xa8] sm:$0xf]
        %v2529 = vld [vmem:[%s821 + $0xac] sm:$0xf]
        %v2530 = vld [vmem:[%s821 + $0xb0] sm:$0x1]
        %v2531 = vld [vmem:[%s821 + $0xb4] sm:$0xf]
        %v2532 = vld [vmem:[%s821 + $0xb8] sm:$0xf]
        %v2533 = vld [vmem:[%s821 + $0xbc] sm:$0x1]
        %v2535 = vshrl.u32 %v2486, 16
        %v2537 = vrot.slane %v2535, 4
        %v2538 = vshll.u32 %v2486, 16
        %v2540 = vrot.slane %v2538, 5
        %v2541 = vor.u32 %v2537, %v2540
        %v2542 = vrot.slane %v2541, 4
        %v2544 = vshll.u32 %v2487, 16
        %v2546 = vrot.slane %v2544, 5
        %v2547 = vsel %vm1505, %v2542, %v2546
        %v2548 = vshrl.u32 %v2487, 16
        %v2550 = vrot.slane %v2548, 4
        %v2551 = vor.u32 %v2550, %v2546
        %v2552 = vrot.slane %v2551, 4
        %v2554 = vshll.u32 %v2488, 16
        %v2556 = vrot.slane %v2554, 5
        %v2557 = vsel %vm1505, %v2552, %v2556
        %v2559 = vshrl.u32 %v2489, 16
        %v2561 = vrot.slane %v2559, 4
        %v2562 = vshll.u32 %v2489, 16
        %v2564 = vrot.slane %v2562, 5
        %v2565 = vor.u32 %v2561, %v2564
        %v2566 = vrot.slane %v2565, 4
        %v2568 = vshll.u32 %v2490, 16
        %v2570 = vrot.slane %v2568, 5
        %v2571 = vsel %vm1505, %v2566, %v2570
        %v2572 = vshrl.u32 %v2490, 16
        %v2574 = vrot.slane %v2572, 4
        %v2575 = vor.u32 %v2574, %v2570
        %v2576 = vrot.slane %v2575, 4
        %v2578 = vshll.u32 %v2491, 16
        %v2580 = vrot.slane %v2578, 5
        %v2581 = vsel %vm1505, %v2576, %v2580
        %v2583 = vshrl.u32 %v2492, 16
        %v2585 = vrot.slane %v2583, 4
        %v2586 = vshll.u32 %v2492, 16
        %v2588 = vrot.slane %v2586, 5
        %v2589 = vor.u32 %v2585, %v2588
        %v2590 = vrot.slane %v2589, 4
        %v2592 = vshll.u32 %v2493, 16
        %v2594 = vrot.slane %v2592, 5
        %v2595 = vsel %vm1505, %v2590, %v2594
        %v2596 = vshrl.u32 %v2493, 16
        %v2598 = vrot.slane %v2596, 4
        %v2599 = vor.u32 %v2598, %v2594
        %v2600 = vrot.slane %v2599, 4
        %v2602 = vshll.u32 %v2494, 16
        %v2604 = vrot.slane %v2602, 5
        %v2605 = vsel %vm1505, %v2600, %v2604
        %v2607 = vshrl.u32 %v2495, 16
        %v2609 = vrot.slane %v2607, 4
        %v2610 = vshll.u32 %v2495, 16
        %v2612 = vrot.slane %v2610, 5
        %v2613 = vor.u32 %v2609, %v2612
        %v2614 = vrot.slane %v2613, 4
        %v2616 = vshll.u32 %v2496, 16
        %v2618 = vrot.slane %v2616, 5
        %v2619 = vsel %vm1505, %v2614, %v2618
        %v2620 = vshrl.u32 %v2496, 16
        %v2622 = vrot.slane %v2620, 4
        %v2623 = vor.u32 %v2622, %v2618
        %v2624 = vrot.slane %v2623, 4
        %v2626 = vshll.u32 %v2497, 16
        %v2628 = vrot.slane %v2626, 5
        %v2629 = vsel %vm1505, %v2624, %v2628
        %v2631 = vshrl.u32 %v2498, 16
        %v2633 = vrot.slane %v2631, 4
        %v2634 = vshll.u32 %v2498, 16
        %v2636 = vrot.slane %v2634, 5
        %v2637 = vor.u32 %v2633, %v2636
        %v2638 = vrot.slane %v2637, 4
        %v2640 = vshll.u32 %v2499, 16
        %v2642 = vrot.slane %v2640, 5
        %v2643 = vsel %vm1505, %v2638, %v2642
        %v2644 = vshrl.u32 %v2499, 16
        %v2646 = vrot.slane %v2644, 4
        %v2647 = vor.u32 %v2646, %v2642
        %v2648 = vrot.slane %v2647, 4
        %v2650 = vshll.u32 %v2500, 16
        %v2652 = vrot.slane %v2650, 5
        %v2653 = vsel %vm1505, %v2648, %v2652
        %v2655 = vshrl.u32 %v2501, 16
        %v2657 = vrot.slane %v2655, 4
        %v2658 = vshll.u32 %v2501, 16
        %v2660 = vrot.slane %v2658, 5
        %v2661 = vor.u32 %v2657, %v2660
        %v2662 = vrot.slane %v2661, 4
        %v2664 = vshll.u32 %v2502, 16
        %v2666 = vrot.slane %v2664, 5
        %v2667 = vsel %vm1505, %v2662, %v2666
        %v2668 = vshrl.u32 %v2502, 16
        %v2670 = vrot.slane %v2668, 4
        %v2671 = vor.u32 %v2670, %v2666
        %v2672 = vrot.slane %v2671, 4
        %v2674 = vshll.u32 %v2503, 16
        %v2676 = vrot.slane %v2674, 5
        %v2677 = vsel %vm1505, %v2672, %v2676
        %v2679 = vshrl.u32 %v2504, 16
        %v2681 = vrot.slane %v2679, 4
        %v2682 = vshll.u32 %v2504, 16
        %v2684 = vrot.slane %v2682, 5
        %v2685 = vor.u32 %v2681, %v2684
        %v2686 = vrot.slane %v2685, 4
        %v2688 = vshll.u32 %v2505, 16
        %v2690 = vrot.slane %v2688, 5
        %v2691 = vsel %vm1505, %v2686, %v2690
        %v2692 = vshrl.u32 %v2505, 16
        %v2694 = vrot.slane %v2692, 4
        %v2695 = vor.u32 %v2694, %v2690
        %v2696 = vrot.slane %v2695, 4
        %v2698 = vshll.u32 %v2506, 16
        %v2700 = vrot.slane %v2698, 5
        %v2701 = vsel %vm1505, %v2696, %v2700
        %v2703 = vshrl.u32 %v2507, 16
        %v2705 = vrot.slane %v2703, 4
        %v2706 = vshll.u32 %v2507, 16
        %v2708 = vrot.slane %v2706, 5
        %v2709 = vor.u32 %v2705, %v2708
        %v2710 = vrot.slane %v2709, 4
        %v2712 = vshll.u32 %v2508, 16
        %v2714 = vrot.slane %v2712, 5
        %v2715 = vsel %vm1505, %v2710, %v2714
        %v2716 = vshrl.u32 %v2508, 16
        %v2718 = vrot.slane %v2716, 4
        %v2719 = vor.u32 %v2718, %v2714
        %v2720 = vrot.slane %v2719, 4
        %v2722 = vshll.u32 %v2509, 16
        %v2724 = vrot.slane %v2722, 5
        %v2725 = vsel %vm1505, %v2720, %v2724
        %v2727 = vshrl.u32 %v2510, 16
        %v2729 = vrot.slane %v2727, 4
        %v2730 = vshll.u32 %v2510, 16
        %v2732 = vrot.slane %v2730, 5
        %v2733 = vor.u32 %v2729, %v2732
        %v2734 = vrot.slane %v2733, 4
        %v2736 = vshll.u32 %v2511, 16
        %v2738 = vrot.slane %v2736, 5
        %v2739 = vsel %vm1505, %v2734, %v2738
        %v2740 = vshrl.u32 %v2511, 16
        %v2742 = vrot.slane %v2740, 4
        %v2743 = vor.u32 %v2742, %v2738
        %v2744 = vrot.slane %v2743, 4
        %v2746 = vshll.u32 %v2512, 16
        %v2748 = vrot.slane %v2746, 5
        %v2749 = vsel %vm1505, %v2744, %v2748
        %v2751 = vshrl.u32 %v2513, 16
        %v2753 = vrot.slane %v2751, 4
        %v2754 = vshll.u32 %v2513, 16
        %v2756 = vrot.slane %v2754, 5
        %v2757 = vor.u32 %v2753, %v2756
        %v2758 = vrot.slane %v2757, 4
        %v2760 = vshll.u32 %v2514, 16
        %v2762 = vrot.slane %v2760, 5
        %v2763 = vsel %vm1505, %v2758, %v2762
        %v2764 = vshrl.u32 %v2514, 16
        %v2766 = vrot.slane %v2764, 4
        %v2767 = vor.u32 %v2766, %v2762
        %v2768 = vrot.slane %v2767, 4
        %v2770 = vshll.u32 %v2515, 16
        %v2772 = vrot.slane %v2770, 5
        %v2773 = vsel %vm1505, %v2768, %v2772
        %v2775 = vshrl.u32 %v2516, 16
        %v2777 = vrot.slane %v2775, 4
        %v2778 = vshll.u32 %v2516, 16
        %v2780 = vrot.slane %v2778, 5
        %v2781 = vor.u32 %v2777, %v2780
        %v2782 = vrot.slane %v2781, 4
        %v2784 = vshll.u32 %v2517, 16
        %v2786 = vrot.slane %v2784, 5
        %v2787 = vsel %vm1505, %v2782, %v2786
        %v2788 = vshrl.u32 %v2517, 16
        %v2790 = vrot.slane %v2788, 4
        %v2791 = vor.u32 %v2790, %v2786
        %v2792 = vrot.slane %v2791, 4
        %v2794 = vshll.u32 %v2518, 16
        %v2796 = vrot.slane %v2794, 5
        %v2797 = vsel %vm1505, %v2792, %v2796
        %v2799 = vshrl.u32 %v2519, 16
        %v2801 = vrot.slane %v2799, 4
        %v2802 = vshll.u32 %v2519, 16
        %v2804 = vrot.slane %v2802, 5
        %v2805 = vor.u32 %v2801, %v2804
        %v2806 = vrot.slane %v2805, 4
        %v2808 = vshll.u32 %v2520, 16
        %v2810 = vrot.slane %v2808, 5
        %v2811 = vsel %vm1505, %v2806, %v2810
        %v2812 = vshrl.u32 %v2520, 16
        %v2814 = vrot.slane %v2812, 4
        %v2815 = vor.u32 %v2814, %v2810
        %v2816 = vrot.slane %v2815, 4
        %v2818 = vshll.u32 %v2521, 16
        %v2820 = vrot.slane %v2818, 5
        %v2821 = vsel %vm1505, %v2816, %v2820
        %v2823 = vshrl.u32 %v2522, 16
        %v2825 = vrot.slane %v2823, 4
        %v2826 = vshll.u32 %v2522, 16
        %v2828 = vrot.slane %v2826, 5
        %v2829 = vor.u32 %v2825, %v2828
        %v2830 = vrot.slane %v2829, 4
        %v2832 = vshll.u32 %v2523, 16
        %v2834 = vrot.slane %v2832, 5
        %v2835 = vsel %vm1505, %v2830, %v2834
        %v2836 = vshrl.u32 %v2523, 16
        %v2838 = vrot.slane %v2836, 4
        %v2839 = vor.u32 %v2838, %v2834
        %v2840 = vrot.slane %v2839, 4
        %v2842 = vshll.u32 %v2524, 16
        %v2844 = vrot.slane %v2842, 5
        %v2845 = vsel %vm1505, %v2840, %v2844
        %v2847 = vshrl.u32 %v2525, 16
        %v2849 = vrot.slane %v2847, 4
        %v2850 = vshll.u32 %v2525, 16
        %v2852 = vrot.slane %v2850, 5
        %v2853 = vor.u32 %v2849, %v2852
        %v2854 = vrot.slane %v2853, 4
        %v2856 = vshll.u32 %v2526, 16
        %v2858 = vrot.slane %v2856, 5
        %v2859 = vsel %vm1505, %v2854, %v2858
        %v2860 = vshrl.u32 %v2526, 16
        %v2862 = vrot.slane %v2860, 4
        %v2863 = vor.u32 %v2862, %v2858
        %v2864 = vrot.slane %v2863, 4
        %v2866 = vshll.u32 %v2527, 16
        %v2868 = vrot.slane %v2866, 5
        %v2869 = vsel %vm1505, %v2864, %v2868
        %v2871 = vshrl.u32 %v2528, 16
        %v2873 = vrot.slane %v2871, 4
        %v2874 = vshll.u32 %v2528, 16
        %v2876 = vrot.slane %v2874, 5
        %v2877 = vor.u32 %v2873, %v2876
        %v2878 = vrot.slane %v2877, 4
        %v2880 = vshll.u32 %v2529, 16
        %v2882 = vrot.slane %v2880, 5
        %v2883 = vsel %vm1505, %v2878, %v2882
        %v2884 = vshrl.u32 %v2529, 16
        %v2886 = vrot.slane %v2884, 4
        %v2887 = vor.u32 %v2886, %v2882
        %v2888 = vrot.slane %v2887, 4
        %v2890 = vshll.u32 %v2530, 16
        %v2892 = vrot.slane %v2890, 5
        %v2893 = vsel %vm1505, %v2888, %v2892
        %v2895 = vshrl.u32 %v2531, 16
        %v2897 = vrot.slane %v2895, 4
        %v2898 = vshll.u32 %v2531, 16
        %v2900 = vrot.slane %v2898, 5
        %v2901 = vor.u32 %v2897, %v2900
        %v2902 = vrot.slane %v2901, 4
        %v2904 = vshll.u32 %v2532, 16
        %v2906 = vrot.slane %v2904, 5
        %v2907 = vsel %vm1505, %v2902, %v2906
        %v2908 = vshrl.u32 %v2532, 16
        %v2910 = vrot.slane %v2908, 4
        %v2911 = vor.u32 %v2910, %v2906
        %v2912 = vrot.slane %v2911, 4
        %v2914 = vshll.u32 %v2533, 16
        %v2916 = vrot.slane %v2914, 5
        %v2917 = vsel %vm1505, %v2912, %v2916
        %2950 = vst.msk [vmem:[#allocation3 + $0x8] sm:$0xf] %vm812, %v2547
        %2951 = vst.msk [vmem:[#allocation3 + $0x1c] sm:$0xf] %vm812, %v2557
        %2952 = vst.msk [vmem:[#allocation3 + $0x30] sm:$0xf] %vm812, %v2571
        %2953 = vst.msk [vmem:[#allocation3 + $0x44] sm:$0xf] %vm812, %v2581
        %2954 = vst.msk [vmem:[#allocation3 + $0x58] sm:$0xf] %vm812, %v2595
        %2955 = vst.msk [vmem:[#allocation3 + $0x6c] sm:$0xf] %vm812, %v2605
        %2956 = vst.msk [vmem:[#allocation3 + $0x80] sm:$0xf] %vm812, %v2619
        %2957 = vst.msk [vmem:[#allocation3 + $0x94] sm:$0xf] %vm812, %v2629
        %2958 = vst.msk [vmem:[#allocation3 + $0xa8] sm:$0xf] %vm812, %v2643
        %2959 = vst.msk [vmem:[#allocation3 + $0xbc] sm:$0xf] %vm812, %v2653
        %2960 = vst.msk [vmem:[#allocation3 + $0xd0] sm:$0xf] %vm812, %v2667
        %2961 = vst.msk [vmem:[#allocation3 + $0xe4] sm:$0xf] %vm812, %v2677
        %2962 = vst.msk [vmem:[#allocation3 + $0xf8] sm:$0xf] %vm812, %v2691
        %2963 = vst.msk [vmem:[#allocation3 + $0x10c] sm:$0xf] %vm812, %v2701
        %2964 = vst.msk [vmem:[#allocation3 + $0x120] sm:$0xf] %vm812, %v2715
        %2965 = vst.msk [vmem:[#allocation3 + $0x134] sm:$0xf] %vm812, %v2725
        %2966 = vst.msk [vmem:[#allocation3 + $0x148] sm:$0xf] %vm812, %v2739
        %2967 = vst.msk [vmem:[#allocation3 + $0x15c] sm:$0xf] %vm812, %v2749
        %2968 = vst.msk [vmem:[#allocation3 + $0x170] sm:$0xf] %vm812, %v2763
        %2969 = vst.msk [vmem:[#allocation3 + $0x184] sm:$0xf] %vm812, %v2773
        %2970 = vst.msk [vmem:[#allocation3 + $0x198] sm:$0xf] %vm812, %v2787
        %2971 = vst.msk [vmem:[#allocation3 + $0x1ac] sm:$0xf] %vm812, %v2797
        %2972 = vst.msk [vmem:[#allocation3 + $0x1c0] sm:$0xf] %vm812, %v2811
        %2973 = vst.msk [vmem:[#allocation3 + $0x1d4] sm:$0xf] %vm812, %v2821
        %2974 = vst.msk [vmem:[#allocation3 + $0x1e8] sm:$0xf] %vm812, %v2835
        %2975 = vst.msk [vmem:[#allocation3 + $0x1fc] sm:$0xf] %vm812, %v2845
        %2976 = vst.msk [vmem:[#allocation3 + $0x210] sm:$0xf] %vm812, %v2859
        %2977 = vst.msk [vmem:[#allocation3 + $0x224] sm:$0xf] %vm812, %v2869
        %2978 = vst.msk [vmem:[#allocation3 + $0x238] sm:$0xf] %vm812, %v2883
        %2979 = vst.msk [vmem:[#allocation3 + $0x24c] sm:$0xf] %vm812, %v2893
        %2980 = vst.msk [vmem:[#allocation3 + $0x260] sm:$0xf] %vm812, %v2907
        %2981 = vst.msk [vmem:[#allocation3 + $0x274] sm:$0xf] %vm812, %v2917
        %v2982 = vld [vmem:[%s821] sm:$0xe]
        %v2983 = vld [vmem:[%s821 + $0x4] sm:$0xf]
        %v2984 = vld [vmem:[%s821 + $0x8] sm:$0x1]
        %v2985 = vld [vmem:[%s821 + $0xc] sm:$0xe]
        %v2986 = vld [vmem:[%s821 + $0x10] sm:$0xf]
        %v2987 = vld [vmem:[%s821 + $0x14] sm:$0x1]
        %v2988 = vld [vmem:[%s821 + $0x18] sm:$0xe]
        %v2989 = vld [vmem:[%s821 + $0x1c] sm:$0xf]
        %v2990 = vld [vmem:[%s821 + $0x20] sm:$0x1]
        %v2991 = vld [vmem:[%s821 + $0x24] sm:$0xe]
        %v2992 = vld [vmem:[%s821 + $0x28] sm:$0xf]
        %v2993 = vld [vmem:[%s821 + $0x2c] sm:$0x1]
        %v2994 = vld [vmem:[%s821 + $0x30] sm:$0xe]
        %v2995 = vld [vmem:[%s821 + $0x34] sm:$0xf]
        %v2996 = vld [vmem:[%s821 + $0x38] sm:$0x1]
        %v2997 = vld [vmem:[%s821 + $0x3c] sm:$0xe]
        %v2998 = vld [vmem:[%s821 + $0x40] sm:$0xf]
        %v2999 = vld [vmem:[%s821 + $0x44] sm:$0x1]
        %v3000 = vld [vmem:[%s821 + $0x48] sm:$0xe]
        %v3001 = vld [vmem:[%s821 + $0x4c] sm:$0xf]
        %v3002 = vld [vmem:[%s821 + $0x50] sm:$0x1]
        %v3003 = vld [vmem:[%s821 + $0x54] sm:$0xe]
        %v3004 = vld [vmem:[%s821 + $0x58] sm:$0xf]
        %v3005 = vld [vmem:[%s821 + $0x5c] sm:$0x1]
        %v3006 = vld [vmem:[%s821 + $0x60] sm:$0xe]
        %v3007 = vld [vmem:[%s821 + $0x64] sm:$0xf]
        %v3008 = vld [vmem:[%s821 + $0x68] sm:$0x1]
        %v3009 = vld [vmem:[%s821 + $0x6c] sm:$0xe]
        %v3010 = vld [vmem:[%s821 + $0x70] sm:$0xf]
        %v3011 = vld [vmem:[%s821 + $0x74] sm:$0x1]
        %v3012 = vld [vmem:[%s821 + $0x78] sm:$0xe]
        %v3013 = vld [vmem:[%s821 + $0x7c] sm:$0xf]
        %v3014 = vld [vmem:[%s821 + $0x80] sm:$0x1]
        %v3015 = vld [vmem:[%s821 + $0x84] sm:$0xe]
        %v3016 = vld [vmem:[%s821 + $0x88] sm:$0xf]
        %v3017 = vld [vmem:[%s821 + $0x8c] sm:$0x1]
        %v3018 = vld [vmem:[%s821 + $0x90] sm:$0xe]
        %v3019 = vld [vmem:[%s821 + $0x94] sm:$0xf]
        %v3020 = vld [vmem:[%s821 + $0x98] sm:$0x1]
        %v3021 = vld [vmem:[%s821 + $0x9c] sm:$0xe]
        %v3022 = vld [vmem:[%s821 + $0xa0] sm:$0xf]
        %v3023 = vld [vmem:[%s821 + $0xa4] sm:$0x1]
        %v3024 = vld [vmem:[%s821 + $0xa8] sm:$0xe]
        %v3025 = vld [vmem:[%s821 + $0xac] sm:$0xf]
        %v3026 = vld [vmem:[%s821 + $0xb0] sm:$0x1]
        %v3027 = vld [vmem:[%s821 + $0xb4] sm:$0xe]
        %v3028 = vld [vmem:[%s821 + $0xb8] sm:$0xf]
        %v3029 = vld [vmem:[%s821 + $0xbc] sm:$0x1]
        %v3078 = vrot.slane %v2982, 5
        %v3079 = vrot.slane %v3078, 4
        %v3080 = vrot.slane %v2983, 5
        %v3081 = vsel %vm2117, %v3079, %v3080
        %v3082 = vrot.slane %v3080, 4
        %v3083 = vrot.slane %v2984, 5
        %v3084 = vsel %vm2117, %v3082, %v3083
        %v3085 = vrot.slane %v2985, 5
        %v3086 = vrot.slane %v3085, 4
        %v3087 = vrot.slane %v2986, 5
        %v3088 = vsel %vm2117, %v3086, %v3087
        %v3089 = vrot.slane %v3087, 4
        %v3090 = vrot.slane %v2987, 5
        %v3091 = vsel %vm2117, %v3089, %v3090
        %v3092 = vrot.slane %v2988, 5
        %v3093 = vrot.slane %v3092, 4
        %v3094 = vrot.slane %v2989, 5
        %v3095 = vsel %vm2117, %v3093, %v3094
        %v3096 = vrot.slane %v3094, 4
        %v3097 = vrot.slane %v2990, 5
        %v3098 = vsel %vm2117, %v3096, %v3097
        %v3099 = vrot.slane %v2991, 5
        %v3100 = vrot.slane %v3099, 4
        %v3101 = vrot.slane %v2992, 5
        %v3102 = vsel %vm2117, %v3100, %v3101
        %v3103 = vrot.slane %v3101, 4
        %v3104 = vrot.slane %v2993, 5
        %v3105 = vsel %vm2117, %v3103, %v3104
        %v3106 = vrot.slane %v2994, 5
        %v3107 = vrot.slane %v3106, 4
        %v3108 = vrot.slane %v2995, 5
        %v3109 = vsel %vm2117, %v3107, %v3108
        %v3110 = vrot.slane %v3108, 4
        %v3111 = vrot.slane %v2996, 5
        %v3112 = vsel %vm2117, %v3110, %v3111
        %v3113 = vrot.slane %v2997, 5
        %v3114 = vrot.slane %v3113, 4
        %v3115 = vrot.slane %v2998, 5
        %v3116 = vsel %vm2117, %v3114, %v3115
        %v3117 = vrot.slane %v3115, 4
        %v3118 = vrot.slane %v2999, 5
        %v3119 = vsel %vm2117, %v3117, %v3118
        %v3120 = vrot.slane %v3000, 5
        %v3121 = vrot.slane %v3120, 4
        %v3122 = vrot.slane %v3001, 5
        %v3123 = vsel %vm2117, %v3121, %v3122
        %v3124 = vrot.slane %v3122, 4
        %v3125 = vrot.slane %v3002, 5
        %v3126 = vsel %vm2117, %v3124, %v3125
        %v3127 = vrot.slane %v3003, 5
        %v3128 = vrot.slane %v3127, 4
        %v3129 = vrot.slane %v3004, 5
        %v3130 = vsel %vm2117, %v3128, %v3129
        %v3131 = vrot.slane %v3129, 4
        %v3132 = vrot.slane %v3005, 5
        %v3133 = vsel %vm2117, %v3131, %v3132
        %v3134 = vrot.slane %v3006, 5
        %v3135 = vrot.slane %v3134, 4
        %v3136 = vrot.slane %v3007, 5
        %v3137 = vsel %vm2117, %v3135, %v3136
        %v3138 = vrot.slane %v3136, 4
        %v3139 = vrot.slane %v3008, 5
        %v3140 = vsel %vm2117, %v3138, %v3139
        %v3141 = vrot.slane %v3009, 5
        %v3142 = vrot.slane %v3141, 4
        %v3143 = vrot.slane %v3010, 5
        %v3144 = vsel %vm2117, %v3142, %v3143
        %v3145 = vrot.slane %v3143, 4
        %v3146 = vrot.slane %v3011, 5
        %v3147 = vsel %vm2117, %v3145, %v3146
        %v3148 = vrot.slane %v3012, 5
        %v3149 = vrot.slane %v3148, 4
        %v3150 = vrot.slane %v3013, 5
        %v3151 = vsel %vm2117, %v3149, %v3150
        %v3152 = vrot.slane %v3150, 4
        %v3153 = vrot.slane %v3014, 5
        %v3154 = vsel %vm2117, %v3152, %v3153
        %v3155 = vrot.slane %v3015, 5
        %v3156 = vrot.slane %v3155, 4
        %v3157 = vrot.slane %v3016, 5
        %v3158 = vsel %vm2117, %v3156, %v3157
        %v3159 = vrot.slane %v3157, 4
        %v3160 = vrot.slane %v3017, 5
        %v3161 = vsel %vm2117, %v3159, %v3160
        %v3162 = vrot.slane %v3018, 5
        %v3163 = vrot.slane %v3162, 4
        %v3164 = vrot.slane %v3019, 5
        %v3165 = vsel %vm2117, %v3163, %v3164
        %v3166 = vrot.slane %v3164, 4
        %v3167 = vrot.slane %v3020, 5
        %v3168 = vsel %vm2117, %v3166, %v3167
        %v3169 = vrot.slane %v3021, 5
        %v3170 = vrot.slane %v3169, 4
        %v3171 = vrot.slane %v3022, 5
        %v3172 = vsel %vm2117, %v3170, %v3171
        %v3173 = vrot.slane %v3171, 4
        %v3174 = vrot.slane %v3023, 5
        %v3175 = vsel %vm2117, %v3173, %v3174
        %v3176 = vrot.slane %v3024, 5
        %v3177 = vrot.slane %v3176, 4
        %v3178 = vrot.slane %v3025, 5
        %v3179 = vsel %vm2117, %v3177, %v3178
        %v3180 = vrot.slane %v3178, 4
        %v3181 = vrot.slane %v3026, 5
        %v3182 = vsel %vm2117, %v3180, %v3181
        %v3183 = vrot.slane %v3027, 5
        %v3184 = vrot.slane %v3183, 4
        %v3185 = vrot.slane %v3028, 5
        %v3186 = vsel %vm2117, %v3184, %v3185
        %v3187 = vrot.slane %v3185, 4
        %v3188 = vrot.slane %v3029, 5
        %v3189 = vsel %vm2117, %v3187, %v3188
        %3190 = vrot.lane.b32.xlu0 %v3081, 64
        %v3191 = vpop.permute.xlu0 %3190
        %3192 = vrot.lane.b32.xlu0 %v3084, 64
        %v3193 = vpop.permute.xlu0 %3192
        %3194 = vrot.lane.b32.xlu0 %v3088, 64
        %v3195 = vpop.permute.xlu0 %3194
        %3196 = vrot.lane.b32.xlu0 %v3091, 64
        %v3197 = vpop.permute.xlu0 %3196
        %3198 = vrot.lane.b32.xlu0 %v3095, 64
        %v3199 = vpop.permute.xlu0 %3198
        %3200 = vrot.lane.b32.xlu0 %v3098, 64
        %v3201 = vpop.permute.xlu0 %3200
        %3202 = vrot.lane.b32.xlu0 %v3102, 64
        %v3203 = vpop.permute.xlu0 %3202
        %3204 = vrot.lane.b32.xlu0 %v3105, 64
        %v3205 = vpop.permute.xlu0 %3204
        %3206 = vrot.lane.b32.xlu0 %v3109, 64
        %v3207 = vpop.permute.xlu0 %3206
        %3208 = vrot.lane.b32.xlu0 %v3112, 64
        %v3209 = vpop.permute.xlu0 %3208
        %3210 = vrot.lane.b32.xlu0 %v3116, 64
        %v3211 = vpop.permute.xlu0 %3210
        %3212 = vrot.lane.b32.xlu0 %v3119, 64
        %v3213 = vpop.permute.xlu0 %3212
        %3214 = vrot.lane.b32.xlu0 %v3123, 64
        %v3215 = vpop.permute.xlu0 %3214
        %3216 = vrot.lane.b32.xlu0 %v3126, 64
        %v3217 = vpop.permute.xlu0 %3216
        %3218 = vrot.lane.b32.xlu0 %v3130, 64
        %v3219 = vpop.permute.xlu0 %3218
        %3220 = vrot.lane.b32.xlu0 %v3133, 64
        %v3221 = vpop.permute.xlu0 %3220
        %3222 = vrot.lane.b32.xlu0 %v3137, 64
        %v3223 = vpop.permute.xlu0 %3222
        %3224 = vrot.lane.b32.xlu0 %v3140, 64
        %v3225 = vpop.permute.xlu0 %3224
        %3226 = vrot.lane.b32.xlu0 %v3144, 64
        %v3227 = vpop.permute.xlu0 %3226
        %3228 = vrot.lane.b32.xlu0 %v3147, 64
        %v3229 = vpop.permute.xlu0 %3228
        %3230 = vrot.lane.b32.xlu0 %v3151, 64
        %v3231 = vpop.permute.xlu0 %3230
        %3232 = vrot.lane.b32.xlu0 %v3154, 64
        %v3233 = vpop.permute.xlu0 %3232
        %3234 = vrot.lane.b32.xlu0 %v3158, 64
        %v3235 = vpop.permute.xlu0 %3234
        %3236 = vrot.lane.b32.xlu0 %v3161, 64
        %v3237 = vpop.permute.xlu0 %3236
        %3238 = vrot.lane.b32.xlu0 %v3165, 64
        %v3239 = vpop.permute.xlu0 %3238
        %3240 = vrot.lane.b32.xlu0 %v3168, 64
        %v3241 = vpop.permute.xlu0 %3240
        %3242 = vrot.lane.b32.xlu0 %v3172, 64
        %v3243 = vpop.permute.xlu0 %3242
        %3244 = vrot.lane.b32.xlu0 %v3175, 64
        %v3245 = vpop.permute.xlu0 %3244
        %3246 = vrot.lane.b32.xlu0 %v3179, 64
        %v3247 = vpop.permute.xlu0 %3246
        %3248 = vrot.lane.b32.xlu0 %v3182, 64
        %v3249 = vpop.permute.xlu0 %3248
        %3250 = vrot.lane.b32.xlu0 %v3186, 64
        %v3251 = vpop.permute.xlu0 %3250
        %3252 = vrot.lane.b32.xlu0 %v3189, 64
        %v3253 = vpop.permute.xlu0 %3252
        %3286 = vst.msk [vmem:[#allocation3 + $0x8] sm:$0xf] %vm1986, %v3191
        %3287 = vst.msk [vmem:[#allocation3 + $0x1c] sm:$0xf] %vm1986, %v3193
        %3288 = vst.msk [vmem:[#allocation3 + $0x30] sm:$0xf] %vm1986, %v3195
        %3289 = vst.msk [vmem:[#allocation3 + $0x44] sm:$0xf] %vm1986, %v3197
        %3290 = vst.msk [vmem:[#allocation3 + $0x58] sm:$0xf] %vm1986, %v3199
        %3291 = vst.msk [vmem:[#allocation3 + $0x6c] sm:$0xf] %vm1986, %v3201
        %3292 = vst.msk [vmem:[#allocation3 + $0x80] sm:$0xf] %vm1986, %v3203
        %3293 = vst.msk [vmem:[#allocation3 + $0x94] sm:$0xf] %vm1986, %v3205
        %3294 = vst.msk [vmem:[#allocation3 + $0xa8] sm:$0xf] %vm1986, %v3207
        %3295 = vst.msk [vmem:[#allocation3 + $0xbc] sm:$0xf] %vm1986, %v3209
        %3296 = vst.msk [vmem:[#allocation3 + $0xd0] sm:$0xf] %vm1986, %v3211
        %3297 = vst.msk [vmem:[#allocation3 + $0xe4] sm:$0xf] %vm1986, %v3213
        %3298 = vst.msk [vmem:[#allocation3 + $0xf8] sm:$0xf] %vm1986, %v3215
        %3299 = vst.msk [vmem:[#allocation3 + $0x10c] sm:$0xf] %vm1986, %v3217
        %3300 = vst.msk [vmem:[#allocation3 + $0x120] sm:$0xf] %vm1986, %v3219
        %3301 = vst.msk [vmem:[#allocation3 + $0x134] sm:$0xf] %vm1986, %v3221
        %3302 = vst.msk [vmem:[#allocation3 + $0x148] sm:$0xf] %vm1986, %v3223
        %3303 = vst.msk [vmem:[#allocation3 + $0x15c] sm:$0xf] %vm1986, %v3225
        %3304 = vst.msk [vmem:[#allocation3 + $0x170] sm:$0xf] %vm1986, %v3227
        %3305 = vst.msk [vmem:[#allocation3 + $0x184] sm:$0xf] %vm1986, %v3229
        %3306 = vst.msk [vmem:[#allocation3 + $0x198] sm:$0xf] %vm1986, %v3231
        %3307 = vst.msk [vmem:[#allocation3 + $0x1ac] sm:$0xf] %vm1986, %v3233
        %3308 = vst.msk [vmem:[#allocation3 + $0x1c0] sm:$0xf] %vm1986, %v3235
        %3309 = vst.msk [vmem:[#allocation3 + $0x1d4] sm:$0xf] %vm1986, %v3237
        %3310 = vst.msk [vmem:[#allocation3 + $0x1e8] sm:$0xf] %vm1986, %v3239
        %3311 = vst.msk [vmem:[#allocation3 + $0x1fc] sm:$0xf] %vm1986, %v3241
        %3312 = vst.msk [vmem:[#allocation3 + $0x210] sm:$0xf] %vm1986, %v3243
        %3313 = vst.msk [vmem:[#allocation3 + $0x224] sm:$0xf] %vm1986, %v3245
        %3314 = vst.msk [vmem:[#allocation3 + $0x238] sm:$0xf] %vm1986, %v3247
        %3315 = vst.msk [vmem:[#allocation3 + $0x24c] sm:$0xf] %vm1986, %v3249
        %3316 = vst.msk [vmem:[#allocation3 + $0x260] sm:$0xf] %vm1986, %v3251
        %3317 = vst.msk [vmem:[#allocation3 + $0x274] sm:$0xf] %vm1986, %v3253
        %s3318 = scalar_lea.vmem [#allocation2], 24
        %v3319 = vld [vmem:[%s3318] sm:$0xf]
        %v3320 = vld [vmem:[%s3318 + $0x4] sm:$0xf]
        %v3321 = vld [vmem:[%s3318 + $0xc] sm:$0xf]
        %v3322 = vld [vmem:[%s3318 + $0x10] sm:$0xf]
        %v3323 = vld [vmem:[%s3318 + $0x18] sm:$0xf]
        %v3324 = vld [vmem:[%s3318 + $0x1c] sm:$0xf]
        %v3325 = vld [vmem:[%s3318 + $0x24] sm:$0xf]
        %v3326 = vld [vmem:[%s3318 + $0x28] sm:$0xf]
        %v3327 = vld [vmem:[%s3318 + $0x30] sm:$0xf]
        %v3328 = vld [vmem:[%s3318 + $0x34] sm:$0xf]
        %v3329 = vld [vmem:[%s3318 + $0x3c] sm:$0xf]
        %v3330 = vld [vmem:[%s3318 + $0x40] sm:$0xf]
        %v3331 = vld [vmem:[%s3318 + $0x48] sm:$0xf]
        %v3332 = vld [vmem:[%s3318 + $0x4c] sm:$0xf]
        %v3333 = vld [vmem:[%s3318 + $0x54] sm:$0xf]
        %v3334 = vld [vmem:[%s3318 + $0x58] sm:$0xf]
        %v3335 = vld [vmem:[%s3318 + $0x60] sm:$0xf]
        %v3336 = vld [vmem:[%s3318 + $0x64] sm:$0xf]
        %v3337 = vld [vmem:[%s3318 + $0x6c] sm:$0xf]
        %v3338 = vld [vmem:[%s3318 + $0x70] sm:$0xf]
        %v3339 = vld [vmem:[%s3318 + $0x78] sm:$0xf]
        %v3340 = vld [vmem:[%s3318 + $0x7c] sm:$0xf]
        %v3341 = vld [vmem:[%s3318 + $0x84] sm:$0xf]
        %v3342 = vld [vmem:[%s3318 + $0x88] sm:$0xf]
        %v3343 = vld [vmem:[%s3318 + $0x90] sm:$0xf]
        %v3344 = vld [vmem:[%s3318 + $0x94] sm:$0xf]
        %v3345 = vld [vmem:[%s3318 + $0x9c] sm:$0xf]
        %v3346 = vld [vmem:[%s3318 + $0xa0] sm:$0xf]
        %v3347 = vld [vmem:[%s3318 + $0xa8] sm:$0xf]
        %v3348 = vld [vmem:[%s3318 + $0xac] sm:$0xf]
        %v3349 = vld [vmem:[%s3318 + $0xb4] sm:$0xf]
        %v3350 = vld [vmem:[%s3318 + $0xb8] sm:$0xf]
        %3351 = vst.msk [vmem:[#allocation3 + $0xc] sm:$0xf] %vm812, %v3319
        %3352 = vst.msk [vmem:[#allocation3 + $0x20] sm:$0xf] %vm812, %v3320
        %3353 = vst.msk [vmem:[#allocation3 + $0x34] sm:$0xf] %vm812, %v3321
        %3354 = vst.msk [vmem:[#allocation3 + $0x48] sm:$0xf] %vm812, %v3322
        %3355 = vst.msk [vmem:[#allocation3 + $0x5c] sm:$0xf] %vm812, %v3323
        %3356 = vst.msk [vmem:[#allocation3 + $0x70] sm:$0xf] %vm812, %v3324
        %3357 = vst.msk [vmem:[#allocation3 + $0x84] sm:$0xf] %vm812, %v3325
        %3358 = vst.msk [vmem:[#allocation3 + $0x98] sm:$0xf] %vm812, %v3326
        %3359 = vst.msk [vmem:[#allocation3 + $0xac] sm:$0xf] %vm812, %v3327
        %3360 = vst.msk [vmem:[#allocation3 + $0xc0] sm:$0xf] %vm812, %v3328
        %3361 = vst.msk [vmem:[#allocation3 + $0xd4] sm:$0xf] %vm812, %v3329
        %3362 = vst.msk [vmem:[#allocation3 + $0xe8] sm:$0xf] %vm812, %v3330
        %3363 = vst.msk [vmem:[#allocation3 + $0xfc] sm:$0xf] %vm812, %v3331
        %3364 = vst.msk [vmem:[#allocation3 + $0x110] sm:$0xf] %vm812, %v3332
        %3365 = vst.msk [vmem:[#allocation3 + $0x124] sm:$0xf] %vm812, %v3333
        %3366 = vst.msk [vmem:[#allocation3 + $0x138] sm:$0xf] %vm812, %v3334
        %3367 = vst.msk [vmem:[#allocation3 + $0x14c] sm:$0xf] %vm812, %v3335
        %3368 = vst.msk [vmem:[#allocation3 + $0x160] sm:$0xf] %vm812, %v3336
        %3369 = vst.msk [vmem:[#allocation3 + $0x174] sm:$0xf] %vm812, %v3337
        %3370 = vst.msk [vmem:[#allocation3 + $0x188] sm:$0xf] %vm812, %v3338
        %3371 = vst.msk [vmem:[#allocation3 + $0x19c] sm:$0xf] %vm812, %v3339
        %3372 = vst.msk [vmem:[#allocation3 + $0x1b0] sm:$0xf] %vm812, %v3340
        %3373 = vst.msk [vmem:[#allocation3 + $0x1c4] sm:$0xf] %vm812, %v3341
        %3374 = vst.msk [vmem:[#allocation3 + $0x1d8] sm:$0xf] %vm812, %v3342
        %3375 = vst.msk [vmem:[#allocation3 + $0x1ec] sm:$0xf] %vm812, %v3343
        %3376 = vst.msk [vmem:[#allocation3 + $0x200] sm:$0xf] %vm812, %v3344
        %3377 = vst.msk [vmem:[#allocation3 + $0x214] sm:$0xf] %vm812, %v3345
        %3378 = vst.msk [vmem:[#allocation3 + $0x228] sm:$0xf] %vm812, %v3346
        %3379 = vst.msk [vmem:[#allocation3 + $0x23c] sm:$0xf] %vm812, %v3347
        %3380 = vst.msk [vmem:[#allocation3 + $0x250] sm:$0xf] %vm812, %v3348
        %3381 = vst.msk [vmem:[#allocation3 + $0x264] sm:$0xf] %vm812, %v3349
        %3382 = vst.msk [vmem:[#allocation3 + $0x278] sm:$0xf] %vm812, %v3350
        %v3383 = vld [vmem:[%s3318] sm:$0xf]
        %v3384 = vld [vmem:[%s3318 + $0x4] sm:$0xf]
        %v3385 = vld [vmem:[%s3318 + $0x8] sm:$0x1]
        %v3386 = vld [vmem:[%s3318 + $0xc] sm:$0xf]
        %v3387 = vld [vmem:[%s3318 + $0x10] sm:$0xf]
        %v3388 = vld [vmem:[%s3318 + $0x14] sm:$0x1]
        %v3389 = vld [vmem:[%s3318 + $0x18] sm:$0xf]
        %v3390 = vld [vmem:[%s3318 + $0x1c] sm:$0xf]
        %v3391 = vld [vmem:[%s3318 + $0x20] sm:$0x1]
        %v3392 = vld [vmem:[%s3318 + $0x24] sm:$0xf]
        %v3393 = vld [vmem:[%s3318 + $0x28] sm:$0xf]
        %v3394 = vld [vmem:[%s3318 + $0x2c] sm:$0x1]
        %v3395 = vld [vmem:[%s3318 + $0x30] sm:$0xf]
        %v3396 = vld [vmem:[%s3318 + $0x34] sm:$0xf]
        %v3397 = vld [vmem:[%s3318 + $0x38] sm:$0x1]
        %v3398 = vld [vmem:[%s3318 + $0x3c] sm:$0xf]
        %v3399 = vld [vmem:[%s3318 + $0x40] sm:$0xf]
        %v3400 = vld [vmem:[%s3318 + $0x44] sm:$0x1]
        %v3401 = vld [vmem:[%s3318 + $0x48] sm:$0xf]
        %v3402 = vld [vmem:[%s3318 + $0x4c] sm:$0xf]
        %v3403 = vld [vmem:[%s3318 + $0x50] sm:$0x1]
        %v3404 = vld [vmem:[%s3318 + $0x54] sm:$0xf]
        %v3405 = vld [vmem:[%s3318 + $0x58] sm:$0xf]
        %v3406 = vld [vmem:[%s3318 + $0x5c] sm:$0x1]
        %v3407 = vld [vmem:[%s3318 + $0x60] sm:$0xf]
        %v3408 = vld [vmem:[%s3318 + $0x64] sm:$0xf]
        %v3409 = vld [vmem:[%s3318 + $0x68] sm:$0x1]
        %v3410 = vld [vmem:[%s3318 + $0x6c] sm:$0xf]
        %v3411 = vld [vmem:[%s3318 + $0x70] sm:$0xf]
        %v3412 = vld [vmem:[%s3318 + $0x74] sm:$0x1]
        %v3413 = vld [vmem:[%s3318 + $0x78] sm:$0xf]
        %v3414 = vld [vmem:[%s3318 + $0x7c] sm:$0xf]
        %v3415 = vld [vmem:[%s3318 + $0x80] sm:$0x1]
        %v3416 = vld [vmem:[%s3318 + $0x84] sm:$0xf]
        %v3417 = vld [vmem:[%s3318 + $0x88] sm:$0xf]
        %v3418 = vld [vmem:[%s3318 + $0x8c] sm:$0x1]
        %v3419 = vld [vmem:[%s3318 + $0x90] sm:$0xf]
        %v3420 = vld [vmem:[%s3318 + $0x94] sm:$0xf]
        %v3421 = vld [vmem:[%s3318 + $0x98] sm:$0x1]
        %v3422 = vld [vmem:[%s3318 + $0x9c] sm:$0xf]
        %v3423 = vld [vmem:[%s3318 + $0xa0] sm:$0xf]
        %v3424 = vld [vmem:[%s3318 + $0xa4] sm:$0x1]
        %v3425 = vld [vmem:[%s3318 + $0xa8] sm:$0xf]
        %v3426 = vld [vmem:[%s3318 + $0xac] sm:$0xf]
        %v3427 = vld [vmem:[%s3318 + $0xb0] sm:$0x1]
        %v3428 = vld [vmem:[%s3318 + $0xb4] sm:$0xf]
        %v3429 = vld [vmem:[%s3318 + $0xb8] sm:$0xf]
        %v3430 = vld [vmem:[%s3318 + $0xbc] sm:$0x1]
        %v3432 = vshrl.u32 %v3383, 16
        %v3434 = vrot.slane %v3432, 4
        %v3435 = vshll.u32 %v3383, 16
        %v3437 = vrot.slane %v3435, 5
        %v3438 = vor.u32 %v3434, %v3437
        %v3439 = vrot.slane %v3438, 4
        %v3441 = vshll.u32 %v3384, 16
        %v3443 = vrot.slane %v3441, 5
        %v3444 = vsel %vm1505, %v3439, %v3443
        %v3445 = vshrl.u32 %v3384, 16
        %v3447 = vrot.slane %v3445, 4
        %v3448 = vor.u32 %v3447, %v3443
        %v3449 = vrot.slane %v3448, 4
        %v3451 = vshll.u32 %v3385, 16
        %v3453 = vrot.slane %v3451, 5
        %v3454 = vsel %vm1505, %v3449, %v3453
        %v3456 = vshrl.u32 %v3386, 16
        %v3458 = vrot.slane %v3456, 4
        %v3459 = vshll.u32 %v3386, 16
        %v3461 = vrot.slane %v3459, 5
        %v3462 = vor.u32 %v3458, %v3461
        %v3463 = vrot.slane %v3462, 4
        %v3465 = vshll.u32 %v3387, 16
        %v3467 = vrot.slane %v3465, 5
        %v3468 = vsel %vm1505, %v3463, %v3467
        %v3469 = vshrl.u32 %v3387, 16
        %v3471 = vrot.slane %v3469, 4
        %v3472 = vor.u32 %v3471, %v3467
        %v3473 = vrot.slane %v3472, 4
        %v3475 = vshll.u32 %v3388, 16
        %v3477 = vrot.slane %v3475, 5
        %v3478 = vsel %vm1505, %v3473, %v3477
        %v3480 = vshrl.u32 %v3389, 16
        %v3482 = vrot.slane %v3480, 4
        %v3483 = vshll.u32 %v3389, 16
        %v3485 = vrot.slane %v3483, 5
        %v3486 = vor.u32 %v3482, %v3485
        %v3487 = vrot.slane %v3486, 4
        %v3489 = vshll.u32 %v3390, 16
        %v3491 = vrot.slane %v3489, 5
        %v3492 = vsel %vm1505, %v3487, %v3491
        %v3493 = vshrl.u32 %v3390, 16
        %v3495 = vrot.slane %v3493, 4
        %v3496 = vor.u32 %v3495, %v3491
        %v3497 = vrot.slane %v3496, 4
        %v3499 = vshll.u32 %v3391, 16
        %v3501 = vrot.slane %v3499, 5
        %v3502 = vsel %vm1505, %v3497, %v3501
        %v3504 = vshrl.u32 %v3392, 16
        %v3506 = vrot.slane %v3504, 4
        %v3507 = vshll.u32 %v3392, 16
        %v3509 = vrot.slane %v3507, 5
        %v3510 = vor.u32 %v3506, %v3509
        %v3511 = vrot.slane %v3510, 4
        %v3513 = vshll.u32 %v3393, 16
        %v3515 = vrot.slane %v3513, 5
        %v3516 = vsel %vm1505, %v3511, %v3515
        %v3517 = vshrl.u32 %v3393, 16
        %v3519 = vrot.slane %v3517, 4
        %v3520 = vor.u32 %v3519, %v3515
        %v3521 = vrot.slane %v3520, 4
        %v3523 = vshll.u32 %v3394, 16
        %v3525 = vrot.slane %v3523, 5
        %v3526 = vsel %vm1505, %v3521, %v3525
        %v3528 = vshrl.u32 %v3395, 16
        %v3530 = vrot.slane %v3528, 4
        %v3531 = vshll.u32 %v3395, 16
        %v3533 = vrot.slane %v3531, 5
        %v3534 = vor.u32 %v3530, %v3533
        %v3535 = vrot.slane %v3534, 4
        %v3537 = vshll.u32 %v3396, 16
        %v3539 = vrot.slane %v3537, 5
        %v3540 = vsel %vm1505, %v3535, %v3539
        %v3541 = vshrl.u32 %v3396, 16
        %v3543 = vrot.slane %v3541, 4
        %v3544 = vor.u32 %v3543, %v3539
        %v3545 = vrot.slane %v3544, 4
        %v3547 = vshll.u32 %v3397, 16
        %v3549 = vrot.slane %v3547, 5
        %v3550 = vsel %vm1505, %v3545, %v3549
        %v3552 = vshrl.u32 %v3398, 16
        %v3554 = vrot.slane %v3552, 4
        %v3555 = vshll.u32 %v3398, 16
        %v3557 = vrot.slane %v3555, 5
        %v3558 = vor.u32 %v3554, %v3557
        %v3559 = vrot.slane %v3558, 4
        %v3561 = vshll.u32 %v3399, 16
        %v3563 = vrot.slane %v3561, 5
        %v3564 = vsel %vm1505, %v3559, %v3563
        %v3565 = vshrl.u32 %v3399, 16
        %v3567 = vrot.slane %v3565, 4
        %v3568 = vor.u32 %v3567, %v3563
        %v3569 = vrot.slane %v3568, 4
        %v3571 = vshll.u32 %v3400, 16
        %v3573 = vrot.slane %v3571, 5
        %v3574 = vsel %vm1505, %v3569, %v3573
        %v3576 = vshrl.u32 %v3401, 16
        %v3578 = vrot.slane %v3576, 4
        %v3579 = vshll.u32 %v3401, 16
        %v3581 = vrot.slane %v3579, 5
        %v3582 = vor.u32 %v3578, %v3581
        %v3583 = vrot.slane %v3582, 4
        %v3585 = vshll.u32 %v3402, 16
        %v3587 = vrot.slane %v3585, 5
        %v3588 = vsel %vm1505, %v3583, %v3587
        %v3589 = vshrl.u32 %v3402, 16
        %v3591 = vrot.slane %v3589, 4
        %v3592 = vor.u32 %v3591, %v3587
        %v3593 = vrot.slane %v3592, 4
        %v3595 = vshll.u32 %v3403, 16
        %v3597 = vrot.slane %v3595, 5
        %v3598 = vsel %vm1505, %v3593, %v3597
        %v3600 = vshrl.u32 %v3404, 16
        %v3602 = vrot.slane %v3600, 4
        %v3603 = vshll.u32 %v3404, 16
        %v3605 = vrot.slane %v3603, 5
        %v3606 = vor.u32 %v3602, %v3605
        %v3607 = vrot.slane %v3606, 4
        %v3609 = vshll.u32 %v3405, 16
        %v3611 = vrot.slane %v3609, 5
        %v3612 = vsel %vm1505, %v3607, %v3611
        %v3613 = vshrl.u32 %v3405, 16
        %v3615 = vrot.slane %v3613, 4
        %v3616 = vor.u32 %v3615, %v3611
        %v3617 = vrot.slane %v3616, 4
        %v3619 = vshll.u32 %v3406, 16
        %v3621 = vrot.slane %v3619, 5
        %v3622 = vsel %vm1505, %v3617, %v3621
        %v3624 = vshrl.u32 %v3407, 16
        %v3626 = vrot.slane %v3624, 4
        %v3627 = vshll.u32 %v3407, 16
        %v3629 = vrot.slane %v3627, 5
        %v3630 = vor.u32 %v3626, %v3629
        %v3631 = vrot.slane %v3630, 4
        %v3633 = vshll.u32 %v3408, 16
        %v3635 = vrot.slane %v3633, 5
        %v3636 = vsel %vm1505, %v3631, %v3635
        %v3637 = vshrl.u32 %v3408, 16
        %v3639 = vrot.slane %v3637, 4
        %v3640 = vor.u32 %v3639, %v3635
        %v3641 = vrot.slane %v3640, 4
        %v3643 = vshll.u32 %v3409, 16
        %v3645 = vrot.slane %v3643, 5
        %v3646 = vsel %vm1505, %v3641, %v3645
        %v3648 = vshrl.u32 %v3410, 16
        %v3650 = vrot.slane %v3648, 4
        %v3651 = vshll.u32 %v3410, 16
        %v3653 = vrot.slane %v3651, 5
        %v3654 = vor.u32 %v3650, %v3653
        %v3655 = vrot.slane %v3654, 4
        %v3657 = vshll.u32 %v3411, 16
        %v3659 = vrot.slane %v3657, 5
        %v3660 = vsel %vm1505, %v3655, %v3659
        %v3661 = vshrl.u32 %v3411, 16
        %v3663 = vrot.slane %v3661, 4
        %v3664 = vor.u32 %v3663, %v3659
        %v3665 = vrot.slane %v3664, 4
        %v3667 = vshll.u32 %v3412, 16
        %v3669 = vrot.slane %v3667, 5
        %v3670 = vsel %vm1505, %v3665, %v3669
        %v3672 = vshrl.u32 %v3413, 16
        %v3674 = vrot.slane %v3672, 4
        %v3675 = vshll.u32 %v3413, 16
        %v3677 = vrot.slane %v3675, 5
        %v3678 = vor.u32 %v3674, %v3677
        %v3679 = vrot.slane %v3678, 4
        %v3681 = vshll.u32 %v3414, 16
        %v3683 = vrot.slane %v3681, 5
        %v3684 = vsel %vm1505, %v3679, %v3683
        %v3685 = vshrl.u32 %v3414, 16
        %v3687 = vrot.slane %v3685, 4
        %v3688 = vor.u32 %v3687, %v3683
        %v3689 = vrot.slane %v3688, 4
        %v3691 = vshll.u32 %v3415, 16
        %v3693 = vrot.slane %v3691, 5
        %v3694 = vsel %vm1505, %v3689, %v3693
        %v3696 = vshrl.u32 %v3416, 16
        %v3698 = vrot.slane %v3696, 4
        %v3699 = vshll.u32 %v3416, 16
        %v3701 = vrot.slane %v3699, 5
        %v3702 = vor.u32 %v3698, %v3701
        %v3703 = vrot.slane %v3702, 4
        %v3705 = vshll.u32 %v3417, 16
        %v3707 = vrot.slane %v3705, 5
        %v3708 = vsel %vm1505, %v3703, %v3707
        %v3709 = vshrl.u32 %v3417, 16
        %v3711 = vrot.slane %v3709, 4
        %v3712 = vor.u32 %v3711, %v3707
        %v3713 = vrot.slane %v3712, 4
        %v3715 = vshll.u32 %v3418, 16
        %v3717 = vrot.slane %v3715, 5
        %v3718 = vsel %vm1505, %v3713, %v3717
        %v3720 = vshrl.u32 %v3419, 16
        %v3722 = vrot.slane %v3720, 4
        %v3723 = vshll.u32 %v3419, 16
        %v3725 = vrot.slane %v3723, 5
        %v3726 = vor.u32 %v3722, %v3725
        %v3727 = vrot.slane %v3726, 4
        %v3729 = vshll.u32 %v3420, 16
        %v3731 = vrot.slane %v3729, 5
        %v3732 = vsel %vm1505, %v3727, %v3731
        %v3733 = vshrl.u32 %v3420, 16
        %v3735 = vrot.slane %v3733, 4
        %v3736 = vor.u32 %v3735, %v3731
        %v3737 = vrot.slane %v3736, 4
        %v3739 = vshll.u32 %v3421, 16
        %v3741 = vrot.slane %v3739, 5
        %v3742 = vsel %vm1505, %v3737, %v3741
        %v3744 = vshrl.u32 %v3422, 16
        %v3746 = vrot.slane %v3744, 4
        %v3747 = vshll.u32 %v3422, 16
        %v3749 = vrot.slane %v3747, 5
        %v3750 = vor.u32 %v3746, %v3749
        %v3751 = vrot.slane %v3750, 4
        %v3753 = vshll.u32 %v3423, 16
        %v3755 = vrot.slane %v3753, 5
        %v3756 = vsel %vm1505, %v3751, %v3755
        %v3757 = vshrl.u32 %v3423, 16
        %v3759 = vrot.slane %v3757, 4
        %v3760 = vor.u32 %v3759, %v3755
        %v3761 = vrot.slane %v3760, 4
        %v3763 = vshll.u32 %v3424, 16
        %v3765 = vrot.slane %v3763, 5
        %v3766 = vsel %vm1505, %v3761, %v3765
        %v3768 = vshrl.u32 %v3425, 16
        %v3770 = vrot.slane %v3768, 4
        %v3771 = vshll.u32 %v3425, 16
        %v3773 = vrot.slane %v3771, 5
        %v3774 = vor.u32 %v3770, %v3773
        %v3775 = vrot.slane %v3774, 4
        %v3777 = vshll.u32 %v3426, 16
        %v3779 = vrot.slane %v3777, 5
        %v3780 = vsel %vm1505, %v3775, %v3779
        %v3781 = vshrl.u32 %v3426, 16
        %v3783 = vrot.slane %v3781, 4
        %v3784 = vor.u32 %v3783, %v3779
        %v3785 = vrot.slane %v3784, 4
        %v3787 = vshll.u32 %v3427, 16
        %v3789 = vrot.slane %v3787, 5
        %v3790 = vsel %vm1505, %v3785, %v3789
        %v3792 = vshrl.u32 %v3428, 16
        %v3794 = vrot.slane %v3792, 4
        %v3795 = vshll.u32 %v3428, 16
        %v3797 = vrot.slane %v3795, 5
        %v3798 = vor.u32 %v3794, %v3797
        %v3799 = vrot.slane %v3798, 4
        %v3801 = vshll.u32 %v3429, 16
        %v3803 = vrot.slane %v3801, 5
        %v3804 = vsel %vm1505, %v3799, %v3803
        %v3805 = vshrl.u32 %v3429, 16
        %v3807 = vrot.slane %v3805, 4
        %v3808 = vor.u32 %v3807, %v3803
        %v3809 = vrot.slane %v3808, 4
        %v3811 = vshll.u32 %v3430, 16
        %v3813 = vrot.slane %v3811, 5
        %v3814 = vsel %vm1505, %v3809, %v3813
        %3815 = vrot.lane.b32.xlu0 %v3444, 64
        %v3816 = vpop.permute.xlu0 %3815
        %3817 = vrot.lane.b32.xlu0 %v3454, 64
        %v3818 = vpop.permute.xlu0 %3817
        %3819 = vrot.lane.b32.xlu0 %v3468, 64
        %v3820 = vpop.permute.xlu0 %3819
        %3821 = vrot.lane.b32.xlu0 %v3478, 64
        %v3822 = vpop.permute.xlu0 %3821
        %3823 = vrot.lane.b32.xlu0 %v3492, 64
        %v3824 = vpop.permute.xlu0 %3823
        %3825 = vrot.lane.b32.xlu0 %v3502, 64
        %v3826 = vpop.permute.xlu0 %3825
        %3827 = vrot.lane.b32.xlu0 %v3516, 64
        %v3828 = vpop.permute.xlu0 %3827
        %3829 = vrot.lane.b32.xlu0 %v3526, 64
        %v3830 = vpop.permute.xlu0 %3829
        %3831 = vrot.lane.b32.xlu0 %v3540, 64
        %v3832 = vpop.permute.xlu0 %3831
        %3833 = vrot.lane.b32.xlu0 %v3550, 64
        %v3834 = vpop.permute.xlu0 %3833
        %3835 = vrot.lane.b32.xlu0 %v3564, 64
        %v3836 = vpop.permute.xlu0 %3835
        %3837 = vrot.lane.b32.xlu0 %v3574, 64
        %v3838 = vpop.permute.xlu0 %3837
        %3839 = vrot.lane.b32.xlu0 %v3588, 64
        %v3840 = vpop.permute.xlu0 %3839
        %3841 = vrot.lane.b32.xlu0 %v3598, 64
        %v3842 = vpop.permute.xlu0 %3841
        %3843 = vrot.lane.b32.xlu0 %v3612, 64
        %v3844 = vpop.permute.xlu0 %3843
        %3845 = vrot.lane.b32.xlu0 %v3622, 64
        %v3846 = vpop.permute.xlu0 %3845
        %3847 = vrot.lane.b32.xlu0 %v3636, 64
        %v3848 = vpop.permute.xlu0 %3847
        %3849 = vrot.lane.b32.xlu0 %v3646, 64
        %v3850 = vpop.permute.xlu0 %3849
        %3851 = vrot.lane.b32.xlu0 %v3660, 64
        %v3852 = vpop.permute.xlu0 %3851
        %3853 = vrot.lane.b32.xlu0 %v3670, 64
        %v3854 = vpop.permute.xlu0 %3853
        %3855 = vrot.lane.b32.xlu0 %v3684, 64
        %v3856 = vpop.permute.xlu0 %3855
        %3857 = vrot.lane.b32.xlu0 %v3694, 64
        %v3858 = vpop.permute.xlu0 %3857
        %3859 = vrot.lane.b32.xlu0 %v3708, 64
        %v3860 = vpop.permute.xlu0 %3859
        %3861 = vrot.lane.b32.xlu0 %v3718, 64
        %v3862 = vpop.permute.xlu0 %3861
        %3863 = vrot.lane.b32.xlu0 %v3732, 64
        %v3864 = vpop.permute.xlu0 %3863
        %3865 = vrot.lane.b32.xlu0 %v3742, 64
        %v3866 = vpop.permute.xlu0 %3865
        %3867 = vrot.lane.b32.xlu0 %v3756, 64
        %v3868 = vpop.permute.xlu0 %3867
        %3869 = vrot.lane.b32.xlu0 %v3766, 64
        %v3870 = vpop.permute.xlu0 %3869
        %3871 = vrot.lane.b32.xlu0 %v3780, 64
        %v3872 = vpop.permute.xlu0 %3871
        %3873 = vrot.lane.b32.xlu0 %v3790, 64
        %v3874 = vpop.permute.xlu0 %3873
        %3875 = vrot.lane.b32.xlu0 %v3804, 64
        %v3876 = vpop.permute.xlu0 %3875
        %3877 = vrot.lane.b32.xlu0 %v3814, 64
        %v3878 = vpop.permute.xlu0 %3877
        %3911 = vst.msk [vmem:[#allocation3 + $0xc] sm:$0xf] %vm1986, %v3816
        %3912 = vst.msk [vmem:[#allocation3 + $0x20] sm:$0xf] %vm1986, %v3818
        %3913 = vst.msk [vmem:[#allocation3 + $0x34] sm:$0xf] %vm1986, %v3820
        %3914 = vst.msk [vmem:[#allocation3 + $0x48] sm:$0xf] %vm1986, %v3822
        %3915 = vst.msk [vmem:[#allocation3 + $0x5c] sm:$0xf] %vm1986, %v3824
        %3916 = vst.msk [vmem:[#allocation3 + $0x70] sm:$0xf] %vm1986, %v3826
        %3917 = vst.msk [vmem:[#allocation3 + $0x84] sm:$0xf] %vm1986, %v3828
        %3918 = vst.msk [vmem:[#allocation3 + $0x98] sm:$0xf] %vm1986, %v3830
        %3919 = vst.msk [vmem:[#allocation3 + $0xac] sm:$0xf] %vm1986, %v3832
        %3920 = vst.msk [vmem:[#allocation3 + $0xc0] sm:$0xf] %vm1986, %v3834
        %3921 = vst.msk [vmem:[#allocation3 + $0xd4] sm:$0xf] %vm1986, %v3836
        %3922 = vst.msk [vmem:[#allocation3 + $0xe8] sm:$0xf] %vm1986, %v3838
        %3923 = vst.msk [vmem:[#allocation3 + $0xfc] sm:$0xf] %vm1986, %v3840
        %3924 = vst.msk [vmem:[#allocation3 + $0x110] sm:$0xf] %vm1986, %v3842
        %3925 = vst.msk [vmem:[#allocation3 + $0x124] sm:$0xf] %vm1986, %v3844
        %3926 = vst.msk [vmem:[#allocation3 + $0x138] sm:$0xf] %vm1986, %v3846
        %3927 = vst.msk [vmem:[#allocation3 + $0x14c] sm:$0xf] %vm1986, %v3848
        %3928 = vst.msk [vmem:[#allocation3 + $0x160] sm:$0xf] %vm1986, %v3850
        %3929 = vst.msk [vmem:[#allocation3 + $0x174] sm:$0xf] %vm1986, %v3852
        %3930 = vst.msk [vmem:[#allocation3 + $0x188] sm:$0xf] %vm1986, %v3854
        %3931 = vst.msk [vmem:[#allocation3 + $0x19c] sm:$0xf] %vm1986, %v3856
        %3932 = vst.msk [vmem:[#allocation3 + $0x1b0] sm:$0xf] %vm1986, %v3858
        %3933 = vst.msk [vmem:[#allocation3 + $0x1c4] sm:$0xf] %vm1986, %v3860
        %3934 = vst.msk [vmem:[#allocation3 + $0x1d8] sm:$0xf] %vm1986, %v3862
        %3935 = vst.msk [vmem:[#allocation3 + $0x1ec] sm:$0xf] %vm1986, %v3864
        %3936 = vst.msk [vmem:[#allocation3 + $0x200] sm:$0xf] %vm1986, %v3866
        %3937 = vst.msk [vmem:[#allocation3 + $0x214] sm:$0xf] %vm1986, %v3868
        %3938 = vst.msk [vmem:[#allocation3 + $0x228] sm:$0xf] %vm1986, %v3870
        %3939 = vst.msk [vmem:[#allocation3 + $0x23c] sm:$0xf] %vm1986, %v3872
        %3940 = vst.msk [vmem:[#allocation3 + $0x250] sm:$0xf] %vm1986, %v3874
        %3941 = vst.msk [vmem:[#allocation3 + $0x264] sm:$0xf] %vm1986, %v3876
        %3942 = vst.msk [vmem:[#allocation3 + $0x278] sm:$0xf] %vm1986, %v3878
        %v3943 = vld [vmem:[%s3318] sm:$0xe]
        %v3944 = vld [vmem:[%s3318 + $0x4] sm:$0xf]
        %v3945 = vld [vmem:[%s3318 + $0x8] sm:$0x1]
        %v3946 = vld [vmem:[%s3318 + $0xc] sm:$0xe]
        %v3947 = vld [vmem:[%s3318 + $0x10] sm:$0xf]
        %v3948 = vld [vmem:[%s3318 + $0x14] sm:$0x1]
        %v3949 = vld [vmem:[%s3318 + $0x18] sm:$0xe]
        %v3950 = vld [vmem:[%s3318 + $0x1c] sm:$0xf]
        %v3951 = vld [vmem:[%s3318 + $0x20] sm:$0x1]
        %v3952 = vld [vmem:[%s3318 + $0x24] sm:$0xe]
        %v3953 = vld [vmem:[%s3318 + $0x28] sm:$0xf]
        %v3954 = vld [vmem:[%s3318 + $0x2c] sm:$0x1]
        %v3955 = vld [vmem:[%s3318 + $0x30] sm:$0xe]
        %v3956 = vld [vmem:[%s3318 + $0x34] sm:$0xf]
        %v3957 = vld [vmem:[%s3318 + $0x38] sm:$0x1]
        %v3958 = vld [vmem:[%s3318 + $0x3c] sm:$0xe]
        %v3959 = vld [vmem:[%s3318 + $0x40] sm:$0xf]
        %v3960 = vld [vmem:[%s3318 + $0x44] sm:$0x1]
        %v3961 = vld [vmem:[%s3318 + $0x48] sm:$0xe]
        %v3962 = vld [vmem:[%s3318 + $0x4c] sm:$0xf]
        %v3963 = vld [vmem:[%s3318 + $0x50] sm:$0x1]
        %v3964 = vld [vmem:[%s3318 + $0x54] sm:$0xe]
        %v3965 = vld [vmem:[%s3318 + $0x58] sm:$0xf]
        %v3966 = vld [vmem:[%s3318 + $0x5c] sm:$0x1]
        %v3967 = vld [vmem:[%s3318 + $0x60] sm:$0xe]
        %v3968 = vld [vmem:[%s3318 + $0x64] sm:$0xf]
        %v3969 = vld [vmem:[%s3318 + $0x68] sm:$0x1]
        %v3970 = vld [vmem:[%s3318 + $0x6c] sm:$0xe]
        %v3971 = vld [vmem:[%s3318 + $0x70] sm:$0xf]
        %v3972 = vld [vmem:[%s3318 + $0x74] sm:$0x1]
        %v3973 = vld [vmem:[%s3318 + $0x78] sm:$0xe]
        %v3974 = vld [vmem:[%s3318 + $0x7c] sm:$0xf]
        %v3975 = vld [vmem:[%s3318 + $0x80] sm:$0x1]
        %v3976 = vld [vmem:[%s3318 + $0x84] sm:$0xe]
        %v3977 = vld [vmem:[%s3318 + $0x88] sm:$0xf]
        %v3978 = vld [vmem:[%s3318 + $0x8c] sm:$0x1]
        %v3979 = vld [vmem:[%s3318 + $0x90] sm:$0xe]
        %v3980 = vld [vmem:[%s3318 + $0x94] sm:$0xf]
        %v3981 = vld [vmem:[%s3318 + $0x98] sm:$0x1]
        %v3982 = vld [vmem:[%s3318 + $0x9c] sm:$0xe]
        %v3983 = vld [vmem:[%s3318 + $0xa0] sm:$0xf]
        %v3984 = vld [vmem:[%s3318 + $0xa4] sm:$0x1]
        %v3985 = vld [vmem:[%s3318 + $0xa8] sm:$0xe]
        %v3986 = vld [vmem:[%s3318 + $0xac] sm:$0xf]
        %v3987 = vld [vmem:[%s3318 + $0xb0] sm:$0x1]
        %v3988 = vld [vmem:[%s3318 + $0xb4] sm:$0xe]
        %v3989 = vld [vmem:[%s3318 + $0xb8] sm:$0xf]
        %v3990 = vld [vmem:[%s3318 + $0xbc] sm:$0x1]
        %v4039 = vrot.slane %v3943, 5
        %v4040 = vrot.slane %v4039, 4
        %v4041 = vrot.slane %v3944, 5
        %v4042 = vsel %vm2117, %v4040, %v4041
        %v4043 = vrot.slane %v4041, 4
        %v4044 = vrot.slane %v3945, 5
        %v4045 = vsel %vm2117, %v4043, %v4044
        %v4046 = vrot.slane %v3946, 5
        %v4047 = vrot.slane %v4046, 4
        %v4048 = vrot.slane %v3947, 5
        %v4049 = vsel %vm2117, %v4047, %v4048
        %v4050 = vrot.slane %v4048, 4
        %v4051 = vrot.slane %v3948, 5
        %v4052 = vsel %vm2117, %v4050, %v4051
        %v4053 = vrot.slane %v3949, 5
        %v4054 = vrot.slane %v4053, 4
        %v4055 = vrot.slane %v3950, 5
        %v4056 = vsel %vm2117, %v4054, %v4055
        %v4057 = vrot.slane %v4055, 4
        %v4058 = vrot.slane %v3951, 5
        %v4059 = vsel %vm2117, %v4057, %v4058
        %v4060 = vrot.slane %v3952, 5
        %v4061 = vrot.slane %v4060, 4
        %v4062 = vrot.slane %v3953, 5
        %v4063 = vsel %vm2117, %v4061, %v4062
        %v4064 = vrot.slane %v4062, 4
        %v4065 = vrot.slane %v3954, 5
        %v4066 = vsel %vm2117, %v4064, %v4065
        %v4067 = vrot.slane %v3955, 5
        %v4068 = vrot.slane %v4067, 4
        %v4069 = vrot.slane %v3956, 5
        %v4070 = vsel %vm2117, %v4068, %v4069
        %v4071 = vrot.slane %v4069, 4
        %v4072 = vrot.slane %v3957, 5
        %v4073 = vsel %vm2117, %v4071, %v4072
        %v4074 = vrot.slane %v3958, 5
        %v4075 = vrot.slane %v4074, 4
        %v4076 = vrot.slane %v3959, 5
        %v4077 = vsel %vm2117, %v4075, %v4076
        %v4078 = vrot.slane %v4076, 4
        %v4079 = vrot.slane %v3960, 5
        %v4080 = vsel %vm2117, %v4078, %v4079
        %v4081 = vrot.slane %v3961, 5
        %v4082 = vrot.slane %v4081, 4
        %v4083 = vrot.slane %v3962, 5
        %v4084 = vsel %vm2117, %v4082, %v4083
        %v4085 = vrot.slane %v4083, 4
        %v4086 = vrot.slane %v3963, 5
        %v4087 = vsel %vm2117, %v4085, %v4086
        %v4088 = vrot.slane %v3964, 5
        %v4089 = vrot.slane %v4088, 4
        %v4090 = vrot.slane %v3965, 5
        %v4091 = vsel %vm2117, %v4089, %v4090
        %v4092 = vrot.slane %v4090, 4
        %v4093 = vrot.slane %v3966, 5
        %v4094 = vsel %vm2117, %v4092, %v4093
        %v4095 = vrot.slane %v3967, 5
        %v4096 = vrot.slane %v4095, 4
        %v4097 = vrot.slane %v3968, 5
        %v4098 = vsel %vm2117, %v4096, %v4097
        %v4099 = vrot.slane %v4097, 4
        %v4100 = vrot.slane %v3969, 5
        %v4101 = vsel %vm2117, %v4099, %v4100
        %v4102 = vrot.slane %v3970, 5
        %v4103 = vrot.slane %v4102, 4
        %v4104 = vrot.slane %v3971, 5
        %v4105 = vsel %vm2117, %v4103, %v4104
        %v4106 = vrot.slane %v4104, 4
        %v4107 = vrot.slane %v3972, 5
        %v4108 = vsel %vm2117, %v4106, %v4107
        %v4109 = vrot.slane %v3973, 5
        %v4110 = vrot.slane %v4109, 4
        %v4111 = vrot.slane %v3974, 5
        %v4112 = vsel %vm2117, %v4110, %v4111
        %v4113 = vrot.slane %v4111, 4
        %v4114 = vrot.slane %v3975, 5
        %v4115 = vsel %vm2117, %v4113, %v4114
        %v4116 = vrot.slane %v3976, 5
        %v4117 = vrot.slane %v4116, 4
        %v4118 = vrot.slane %v3977, 5
        %v4119 = vsel %vm2117, %v4117, %v4118
        %v4120 = vrot.slane %v4118, 4
        %v4121 = vrot.slane %v3978, 5
        %v4122 = vsel %vm2117, %v4120, %v4121
        %v4123 = vrot.slane %v3979, 5
        %v4124 = vrot.slane %v4123, 4
        %v4125 = vrot.slane %v3980, 5
        %v4126 = vsel %vm2117, %v4124, %v4125
        %v4127 = vrot.slane %v4125, 4
        %v4128 = vrot.slane %v3981, 5
        %v4129 = vsel %vm2117, %v4127, %v4128
        %v4130 = vrot.slane %v3982, 5
        %v4131 = vrot.slane %v4130, 4
        %v4132 = vrot.slane %v3983, 5
        %v4133 = vsel %vm2117, %v4131, %v4132
        %v4134 = vrot.slane %v4132, 4
        %v4135 = vrot.slane %v3984, 5
        %v4136 = vsel %vm2117, %v4134, %v4135
        %v4137 = vrot.slane %v3985, 5
        %v4138 = vrot.slane %v4137, 4
        %v4139 = vrot.slane %v3986, 5
        %v4140 = vsel %vm2117, %v4138, %v4139
        %v4141 = vrot.slane %v4139, 4
        %v4142 = vrot.slane %v3987, 5
        %v4143 = vsel %vm2117, %v4141, %v4142
        %v4144 = vrot.slane %v3988, 5
        %v4145 = vrot.slane %v4144, 4
        %v4146 = vrot.slane %v3989, 5
        %v4147 = vsel %vm2117, %v4145, %v4146
        %v4148 = vrot.slane %v4146, 4
        %v4149 = vrot.slane %v3990, 5
        %v4150 = vsel %vm2117, %v4148, %v4149
        %4183 = vst.msk [vmem:[#allocation3 + $0x10] sm:$0xf] %vm812, %v4042
        %4184 = vst.msk [vmem:[#allocation3 + $0x24] sm:$0xf] %vm812, %v4045
        %4185 = vst.msk [vmem:[#allocation3 + $0x38] sm:$0xf] %vm812, %v4049
        %4186 = vst.msk [vmem:[#allocation3 + $0x4c] sm:$0xf] %vm812, %v4052
        %4187 = vst.msk [vmem:[#allocation3 + $0x60] sm:$0xf] %vm812, %v4056
        %4188 = vst.msk [vmem:[#allocation3 + $0x74] sm:$0xf] %vm812, %v4059
        %4189 = vst.msk [vmem:[#allocation3 + $0x88] sm:$0xf] %vm812, %v4063
        %4190 = vst.msk [vmem:[#allocation3 + $0x9c] sm:$0xf] %vm812, %v4066
        %4191 = vst.msk [vmem:[#allocation3 + $0xb0] sm:$0xf] %vm812, %v4070
        %4192 = vst.msk [vmem:[#allocation3 + $0xc4] sm:$0xf] %vm812, %v4073
        %4193 = vst.msk [vmem:[#allocation3 + $0xd8] sm:$0xf] %vm812, %v4077
        %4194 = vst.msk [vmem:[#allocation3 + $0xec] sm:$0xf] %vm812, %v4080
        %4195 = vst.msk [vmem:[#allocation3 + $0x100] sm:$0xf] %vm812, %v4084
        %4196 = vst.msk [vmem:[#allocation3 + $0x114] sm:$0xf] %vm812, %v4087
        %4197 = vst.msk [vmem:[#allocation3 + $0x128] sm:$0xf] %vm812, %v4091
        %4198 = vst.msk [vmem:[#allocation3 + $0x13c] sm:$0xf] %vm812, %v4094
        %4199 = vst.msk [vmem:[#allocation3 + $0x150] sm:$0xf] %vm812, %v4098
        %4200 = vst.msk [vmem:[#allocation3 + $0x164] sm:$0xf] %vm812, %v4101
        %4201 = vst.msk [vmem:[#allocation3 + $0x178] sm:$0xf] %vm812, %v4105
        %4202 = vst.msk [vmem:[#allocation3 + $0x18c] sm:$0xf] %vm812, %v4108
        %4203 = vst.msk [vmem:[#allocation3 + $0x1a0] sm:$0xf] %vm812, %v4112
        %4204 = vst.msk [vmem:[#allocation3 + $0x1b4] sm:$0xf] %vm812, %v4115
        %4205 = vst.msk [vmem:[#allocation3 + $0x1c8] sm:$0xf] %vm812, %v4119
        %4206 = vst.msk [vmem:[#allocation3 + $0x1dc] sm:$0xf] %vm812, %v4122
        %4207 = vst.msk [vmem:[#allocation3 + $0x1f0] sm:$0xf] %vm812, %v4126
        %4208 = vst.msk [vmem:[#allocation3 + $0x204] sm:$0xf] %vm812, %v4129
        %4209 = vst.msk [vmem:[#allocation3 + $0x218] sm:$0xf] %vm812, %v4133
        %4210 = vst.msk [vmem:[#allocation3 + $0x22c] sm:$0xf] %vm812, %v4136
        %4211 = vst.msk [vmem:[#allocation3 + $0x240] sm:$0xf] %vm812, %v4140
        %4212 = vst.msk [vmem:[#allocation3 + $0x254] sm:$0xf] %vm812, %v4143
        %4213 = vst.msk [vmem:[#allocation3 + $0x268] sm:$0xf] %vm812, %v4147
        %4214 = vst.msk [vmem:[#allocation3 + $0x27c] sm:$0xf] %vm812, %v4150
        %v4215 = vld [vmem:[#allocation3] sm:$0xff]
        %v4216 = vld [vmem:[#allocation3 + $0x8] sm:$0xff]
        %v4217 = vld [vmem:[#allocation3 + $0x10] sm:$0xf]
        %v4218 = vld [vmem:[#allocation3 + $0x14] sm:$0xff]
        %v4219 = vld [vmem:[#allocation3 + $0x1c] sm:$0xff]
        %v4220 = vld [vmem:[#allocation3 + $0x24] sm:$0xf]
        %v4221 = vld [vmem:[#allocation3 + $0x28] sm:$0xff]
        %v4222 = vld [vmem:[#allocation3 + $0x30] sm:$0xff]
        %v4223 = vld [vmem:[#allocation3 + $0x38] sm:$0xf]
        %v4224 = vld [vmem:[#allocation3 + $0x3c] sm:$0xff]
        %v4225 = vld [vmem:[#allocation3 + $0x44] sm:$0xff]
        %v4226 = vld [vmem:[#allocation3 + $0x4c] sm:$0xf]
        %v4227 = vld [vmem:[#allocation3 + $0x50] sm:$0xff]
        %v4228 = vld [vmem:[#allocation3 + $0x58] sm:$0xff]
        %v4229 = vld [vmem:[#allocation3 + $0x60] sm:$0xf]
        %v4230 = vld [vmem:[#allocation3 + $0x64] sm:$0xff]
        %v4231 = vld [vmem:[#allocation3 + $0x6c] sm:$0xff]
        %v4232 = vld [vmem:[#allocation3 + $0x74] sm:$0xf]
        %v4233 = vld [vmem:[#allocation3 + $0x78] sm:$0xff]
        %v4234 = vld [vmem:[#allocation3 + $0x80] sm:$0xff]
        %v4235 = vld [vmem:[#allocation3 + $0x88] sm:$0xf]
        %v4236 = vld [vmem:[#allocation3 + $0x8c] sm:$0xff]
        %v4237 = vld [vmem:[#allocation3 + $0x94] sm:$0xff]
        %v4238 = vld [vmem:[#allocation3 + $0x9c] sm:$0xf]
        %v4239 = vld [vmem:[#allocation3 + $0xa0] sm:$0xff]
        %v4240 = vld [vmem:[#allocation3 + $0xa8] sm:$0xff]
        %v4241 = vld [vmem:[#allocation3 + $0xb0] sm:$0xf]
        %v4242 = vld [vmem:[#allocation3 + $0xb4] sm:$0xff]
        %v4243 = vld [vmem:[#allocation3 + $0xbc] sm:$0xff]
        %v4244 = vld [vmem:[#allocation3 + $0xc4] sm:$0xf]
        %v4245 = vld [vmem:[#allocation3 + $0xc8] sm:$0xff]
        %v4246 = vld [vmem:[#allocation3 + $0xd0] sm:$0xff]
        %v4247 = vld [vmem:[#allocation3 + $0xd8] sm:$0xf]
        %v4248 = vld [vmem:[#allocation3 + $0xdc] sm:$0xff]
        %v4249 = vld [vmem:[#allocation3 + $0xe4] sm:$0xff]
        %v4250 = vld [vmem:[#allocation3 + $0xec] sm:$0xf]
        %v4251 = vld [vmem:[#allocation3 + $0xf0] sm:$0xff]
        %v4252 = vld [vmem:[#allocation3 + $0xf8] sm:$0xff]
        %v4253 = vld [vmem:[#allocation3 + $0x100] sm:$0xf]
        %v4254 = vld [vmem:[#allocation3 + $0x104] sm:$0xff]
        %v4255 = vld [vmem:[#allocation3 + $0x10c] sm:$0xff]
        %v4256 = vld [vmem:[#allocation3 + $0x114] sm:$0xf]
        %v4257 = vld [vmem:[#allocation3 + $0x118] sm:$0xff]
        %v4258 = vld [vmem:[#allocation3 + $0x120] sm:$0xff]
        %v4259 = vld [vmem:[#allocation3 + $0x128] sm:$0xf]
        %v4260 = vld [vmem:[#allocation3 + $0x12c] sm:$0xff]
        %v4261 = vld [vmem:[#allocation3 + $0x134] sm:$0xff]
        %v4262 = vld [vmem:[#allocation3 + $0x13c] sm:$0xf]
        %v4263 = vld [vmem:[#allocation3 + $0x140] sm:$0xff]
        %v4264 = vld [vmem:[#allocation3 + $0x148] sm:$0xff]
        %v4265 = vld [vmem:[#allocation3 + $0x150] sm:$0xf]
        %v4266 = vld [vmem:[#allocation3 + $0x154] sm:$0xff]
        %v4267 = vld [vmem:[#allocation3 + $0x15c] sm:$0xff]
        %v4268 = vld [vmem:[#allocation3 + $0x164] sm:$0xf]
        %v4269 = vld [vmem:[#allocation3 + $0x168] sm:$0xff]
        %v4270 = vld [vmem:[#allocation3 + $0x170] sm:$0xff]
        %v4271 = vld [vmem:[#allocation3 + $0x178] sm:$0xf]
        %v4272 = vld [vmem:[#allocation3 + $0x17c] sm:$0xff]
        %v4273 = vld [vmem:[#allocation3 + $0x184] sm:$0xff]
        %v4274 = vld [vmem:[#allocation3 + $0x18c] sm:$0xf]
        %v4275 = vld [vmem:[#allocation3 + $0x190] sm:$0xff]
        %v4276 = vld [vmem:[#allocation3 + $0x198] sm:$0xff]
        %v4277 = vld [vmem:[#allocation3 + $0x1a0] sm:$0xf]
        %v4278 = vld [vmem:[#allocation3 + $0x1a4] sm:$0xff]
        %v4279 = vld [vmem:[#allocation3 + $0x1ac] sm:$0xff]
        %v4280 = vld [vmem:[#allocation3 + $0x1b4] sm:$0xf]
        %v4281 = vld [vmem:[#allocation3 + $0x1b8] sm:$0xff]
        %v4282 = vld [vmem:[#allocation3 + $0x1c0] sm:$0xff]
        %v4283 = vld [vmem:[#allocation3 + $0x1c8] sm:$0xf]
        %v4284 = vld [vmem:[#allocation3 + $0x1cc] sm:$0xff]
        %v4285 = vld [vmem:[#allocation3 + $0x1d4] sm:$0xff]
        %v4286 = vld [vmem:[#allocation3 + $0x1dc] sm:$0xf]
        %v4287 = vld [vmem:[#allocation3 + $0x1e0] sm:$0xff]
        %v4288 = vld [vmem:[#allocation3 + $0x1e8] sm:$0xff]
        %v4289 = vld [vmem:[#allocation3 + $0x1f0] sm:$0xf]
        %v4290 = vld [vmem:[#allocation3 + $0x1f4] sm:$0xff]
        %v4291 = vld [vmem:[#allocation3 + $0x1fc] sm:$0xff]
        %v4292 = vld [vmem:[#allocation3 + $0x204] sm:$0xf]
        %v4293 = vld [vmem:[#allocation3 + $0x208] sm:$0xff]
        %v4294 = vld [vmem:[#allocation3 + $0x210] sm:$0xff]
        %v4295 = vld [vmem:[#allocation3 + $0x218] sm:$0xf]
        %v4296 = vld [vmem:[#allocation3 + $0x21c] sm:$0xff]
        %v4297 = vld [vmem:[#allocation3 + $0x224] sm:$0xff]
        %v4298 = vld [vmem:[#allocation3 + $0x22c] sm:$0xf]
        %v4299 = vld [vmem:[#allocation3 + $0x230] sm:$0xff]
        %v4300 = vld [vmem:[#allocation3 + $0x238] sm:$0xff]
        %v4301 = vld [vmem:[#allocation3 + $0x240] sm:$0xf]
        %v4302 = vld [vmem:[#allocation3 + $0x244] sm:$0xff]
        %v4303 = vld [vmem:[#allocation3 + $0x24c] sm:$0xff]
        %v4304 = vld [vmem:[#allocation3 + $0x254] sm:$0xf]
        %v4305 = vld [vmem:[#allocation3 + $0x258] sm:$0xff]
        %v4306 = vld [vmem:[#allocation3 + $0x260] sm:$0xff]
        %v4307 = vld [vmem:[#allocation3 + $0x268] sm:$0xf]
        %v4308 = vld [vmem:[#allocation3 + $0x26c] sm:$0xff]
        %v4309 = vld [vmem:[#allocation3 + $0x274] sm:$0xff]
        %v4310 = vld [vmem:[#allocation3 + $0x27c] sm:$0xf]
        %v4311 = vld [vmem:[%s3] sm:$0xf]
        %v4312 = vld [vmem:[%s3 + $0x4] sm:$0xf]
        %v4313 = vld [vmem:[%s3 + $0x8] sm:$0xf]
        %v4314 = vld [vmem:[%s3 + $0xc] sm:$0xf]
        %v4315 = vld [vmem:[%s3 + $0x10] sm:$0xf]
        %v4316 = vld [vmem:[%s3 + $0x14] sm:$0xf]
        %v4317 = vld [vmem:[%s3 + $0x18] sm:$0xf]
        %v4318 = vld [vmem:[%s3 + $0x1c] sm:$0xf]
        %v4319 = vld [vmem:[%s3 + $0x20] sm:$0xf]
        %v4320 = vld [vmem:[%s3 + $0x24] sm:$0xf]
        %v4321 = vld [vmem:[%s3 + $0x28] sm:$0xf]
        %v4322 = vld [vmem:[%s3 + $0x2c] sm:$0xf]
        %v4323 = vld [vmem:[%s3 + $0x30] sm:$0xf]
        %v4324 = vld [vmem:[%s3 + $0x34] sm:$0xf]
        %v4325 = vld [vmem:[%s3 + $0x38] sm:$0xf]
        %v4326 = vld [vmem:[%s3 + $0x3c] sm:$0xf]
        %v4327 = vld [vmem:[%s3 + $0x40] sm:$0xf]
        %v4328 = vld [vmem:[%s3 + $0x44] sm:$0xf]
        %v4329 = vld [vmem:[%s3 + $0x48] sm:$0xf]
        %v4330 = vld [vmem:[%s3 + $0x4c] sm:$0xf]
        %v4331 = vld [vmem:[%s3 + $0x50] sm:$0xf]
        %v4332 = vld [vmem:[%s3 + $0x54] sm:$0xf]
        %v4333 = vld [vmem:[%s3 + $0x58] sm:$0xf]
        %v4334 = vld [vmem:[%s3 + $0x5c] sm:$0xf]
        %v4335 = vld [vmem:[%s3 + $0x60] sm:$0xf]
        %v4336 = vld [vmem:[%s3 + $0x64] sm:$0xf]
        %v4337 = vld [vmem:[%s3 + $0x68] sm:$0xf]
        %v4338 = vld [vmem:[%s3 + $0x6c] sm:$0xf]
        %v4339 = vld [vmem:[%s3 + $0x70] sm:$0xf]
        %v4340 = vld [vmem:[%s3 + $0x74] sm:$0xf]
        %v4341 = vld [vmem:[%s3 + $0x78] sm:$0xf]
        %v4342 = vld [vmem:[%s3 + $0x7c] sm:$0xf]
        %v4343 = vld [vmem:[%s3 + $0x80] sm:$0xf]
        %v4344 = vld [vmem:[%s3 + $0x84] sm:$0xf]
        %v4345 = vld [vmem:[%s3 + $0x88] sm:$0xf]
        %v4346 = vld [vmem:[%s3 + $0x8c] sm:$0xf]
        %v4347 = vld [vmem:[%s3 + $0x90] sm:$0xf]
        %v4348 = vld [vmem:[%s3 + $0x94] sm:$0xf]
        %v4349 = vld [vmem:[%s3 + $0x98] sm:$0xf]
        %v4350 = vld [vmem:[%s3 + $0x9c] sm:$0xf]
        %v4351 = vld [vmem:[%s3 + $0xa0] sm:$0xf]
        %v4352 = vld [vmem:[%s3 + $0xa4] sm:$0xf]
        %v4353 = vld [vmem:[%s3 + $0xa8] sm:$0xf]
        %v4354 = vld [vmem:[%s3 + $0xac] sm:$0xf]
        %v4355 = vld [vmem:[%s3 + $0xb0] sm:$0xf]
        %v4356 = vld [vmem:[%s3 + $0xb4] sm:$0xf]
        %v4357 = vld [vmem:[%s3 + $0xb8] sm:$0xf]
        %v4358 = vld [vmem:[%s3 + $0xbc] sm:$0xf]
        %v4359 = vld [vmem:[%s3 + $0xc0] sm:$0xf]
        %v4360 = vld [vmem:[%s3 + $0xc4] sm:$0xf]
        %v4361 = vld [vmem:[%s3 + $0xc8] sm:$0xf]
        %v4362 = vld [vmem:[%s3 + $0xcc] sm:$0xf]
        %v4363 = vld [vmem:[%s3 + $0xd0] sm:$0xf]
        %v4364 = vld [vmem:[%s3 + $0xd4] sm:$0xf]
        %v4365 = vld [vmem:[%s3 + $0xd8] sm:$0xf]
        %v4366 = vld [vmem:[%s3 + $0xdc] sm:$0xf]
        %v4367 = vld [vmem:[%s3 + $0xe0] sm:$0xf]
        %v4368 = vld [vmem:[%s3 + $0xe4] sm:$0xf]
        %v4369 = vld [vmem:[%s3 + $0xe8] sm:$0xf]
        %v4370 = vld [vmem:[%s3 + $0xec] sm:$0xf]
        %v4371 = vld [vmem:[%s3 + $0xf0] sm:$0xf]
        %v4372 = vld [vmem:[%s3 + $0xf4] sm:$0xf]
        %v4373 = vld [vmem:[%s3 + $0xf8] sm:$0xf]
        %v4374 = vld [vmem:[%s3 + $0xfc] sm:$0xf]
        %v4375 = vld [vmem:[%s3 + $0x100] sm:$0xf]
        %v4376 = vld [vmem:[%s3 + $0x104] sm:$0xf]
        %v4377 = vld [vmem:[%s3 + $0x108] sm:$0xf]
        %v4378 = vld [vmem:[%s3 + $0x10c] sm:$0xf]
        %v4379 = vld [vmem:[%s3 + $0x110] sm:$0xf]
        %v4380 = vld [vmem:[%s3 + $0x114] sm:$0xf]
        %v4381 = vld [vmem:[%s3 + $0x118] sm:$0xf]
        %v4382 = vld [vmem:[%s3 + $0x11c] sm:$0xf]
        %v4383 = vld [vmem:[%s4] sm:$0x1]
        %v4385 = vperm.slane %v4383, 0
        %v4483 = vunpack.c.l.b16 %v4215
        %v4484 = vunpack.c.h.b16 %v4215
        %v4485 = vunpack.c.l.b16 %v4216
        %v4486 = vunpack.c.h.b16 %v4216
        %v4487 = vunpack.c.l.b16 %v4217
        %v4488 = vunpack.c.l.b16 %v4218
        %v4489 = vunpack.c.h.b16 %v4218
        %v4490 = vunpack.c.l.b16 %v4219
        %v4491 = vunpack.c.h.b16 %v4219
        %v4492 = vunpack.c.l.b16 %v4220
        %v4493 = vunpack.c.l.b16 %v4221
        %v4494 = vunpack.c.h.b16 %v4221
        %v4495 = vunpack.c.l.b16 %v4222
        %v4496 = vunpack.c.h.b16 %v4222
        %v4497 = vunpack.c.l.b16 %v4223
        %v4498 = vunpack.c.l.b16 %v4224
        %v4499 = vunpack.c.h.b16 %v4224
        %v4500 = vunpack.c.l.b16 %v4225
        %v4501 = vunpack.c.h.b16 %v4225
        %v4502 = vunpack.c.l.b16 %v4226
        %v4503 = vunpack.c.l.b16 %v4227
        %v4504 = vunpack.c.h.b16 %v4227
        %v4505 = vunpack.c.l.b16 %v4228
        %v4506 = vunpack.c.h.b16 %v4228
        %v4507 = vunpack.c.l.b16 %v4229
        %v4508 = vunpack.c.l.b16 %v4230
        %v4509 = vunpack.c.h.b16 %v4230
        %v4510 = vunpack.c.l.b16 %v4231
        %v4511 = vunpack.c.h.b16 %v4231
        %v4512 = vunpack.c.l.b16 %v4232
        %v4513 = vunpack.c.l.b16 %v4233
        %v4514 = vunpack.c.h.b16 %v4233
        %v4515 = vunpack.c.l.b16 %v4234
        %v4516 = vunpack.c.h.b16 %v4234
        %v4517 = vunpack.c.l.b16 %v4235
        %v4518 = vunpack.c.l.b16 %v4236
        %v4519 = vunpack.c.h.b16 %v4236
        %v4520 = vunpack.c.l.b16 %v4237
        %v4521 = vunpack.c.h.b16 %v4237
        %v4522 = vunpack.c.l.b16 %v4238
        %v4523 = vunpack.c.l.b16 %v4239
        %v4524 = vunpack.c.h.b16 %v4239
        %v4525 = vunpack.c.l.b16 %v4240
        %v4526 = vunpack.c.h.b16 %v4240
        %v4527 = vunpack.c.l.b16 %v4241
        %v4528 = vunpack.c.l.b16 %v4242
        %v4529 = vunpack.c.h.b16 %v4242
        %v4530 = vunpack.c.l.b16 %v4243
        %v4531 = vunpack.c.h.b16 %v4243
        %v4532 = vunpack.c.l.b16 %v4244
        %v4533 = vunpack.c.l.b16 %v4245
        %v4534 = vunpack.c.h.b16 %v4245
        %v4535 = vunpack.c.l.b16 %v4246
        %v4536 = vunpack.c.h.b16 %v4246
        %v4537 = vunpack.c.l.b16 %v4247
        %v4538 = vunpack.c.l.b16 %v4248
        %v4539 = vunpack.c.h.b16 %v4248
        %v4540 = vunpack.c.l.b16 %v4249
        %v4541 = vunpack.c.h.b16 %v4249
        %v4542 = vunpack.c.l.b16 %v4250
        %v4543 = vunpack.c.l.b16 %v4251
        %v4544 = vunpack.c.h.b16 %v4251
        %v4545 = vunpack.c.l.b16 %v4252
        %v4546 = vunpack.c.h.b16 %v4252
        %v4547 = vunpack.c.l.b16 %v4253
        %v4548 = vunpack.c.l.b16 %v4254
        %v4549 = vunpack.c.h.b16 %v4254
        %v4550 = vunpack.c.l.b16 %v4255
        %v4551 = vunpack.c.h.b16 %v4255
        %v4552 = vunpack.c.l.b16 %v4256
        %v4553 = vunpack.c.l.b16 %v4257
        %v4554 = vunpack.c.h.b16 %v4257
        %v4555 = vunpack.c.l.b16 %v4258
        %v4556 = vunpack.c.h.b16 %v4258
        %v4557 = vunpack.c.l.b16 %v4259
        %v4558 = vunpack.c.l.b16 %v4260
        %v4559 = vunpack.c.h.b16 %v4260
        %v4560 = vunpack.c.l.b16 %v4261
        %v4561 = vunpack.c.h.b16 %v4261
        %v4562 = vunpack.c.l.b16 %v4262
        %v4563 = vunpack.c.l.b16 %v4263
        %v4564 = vunpack.c.h.b16 %v4263
        %v4565 = vunpack.c.l.b16 %v4264
        %v4566 = vunpack.c.h.b16 %v4264
        %v4567 = vunpack.c.l.b16 %v4265
        %v4568 = vunpack.c.l.b16 %v4266
        %v4569 = vunpack.c.h.b16 %v4266
        %v4570 = vunpack.c.l.b16 %v4267
        %v4571 = vunpack.c.h.b16 %v4267
        %v4572 = vunpack.c.l.b16 %v4268
        %v4573 = vunpack.c.l.b16 %v4269
        %v4574 = vunpack.c.h.b16 %v4269
        %v4575 = vunpack.c.l.b16 %v4270
        %v4576 = vunpack.c.h.b16 %v4270
        %v4577 = vunpack.c.l.b16 %v4271
        %v4578 = vunpack.c.l.b16 %v4272
        %v4579 = vunpack.c.h.b16 %v4272
        %v4580 = vunpack.c.l.b16 %v4273
        %v4581 = vunpack.c.h.b16 %v4273
        %v4582 = vunpack.c.l.b16 %v4274
        %v4583 = vunpack.c.l.b16 %v4275
        %v4584 = vunpack.c.h.b16 %v4275
        %v4585 = vunpack.c.l.b16 %v4276
        %v4586 = vunpack.c.h.b16 %v4276
        %v4587 = vunpack.c.l.b16 %v4277
        %v4588 = vunpack.c.l.b16 %v4278
        %v4589 = vunpack.c.h.b16 %v4278
        %v4590 = vunpack.c.l.b16 %v4279
        %v4591 = vunpack.c.h.b16 %v4279
        %v4592 = vunpack.c.l.b16 %v4280
        %v4593 = vunpack.c.l.b16 %v4281
        %v4594 = vunpack.c.h.b16 %v4281
        %v4595 = vunpack.c.l.b16 %v4282
        %v4596 = vunpack.c.h.b16 %v4282
        %v4597 = vunpack.c.l.b16 %v4283
        %v4598 = vunpack.c.l.b16 %v4284
        %v4599 = vunpack.c.h.b16 %v4284
        %v4600 = vunpack.c.l.b16 %v4285
        %v4601 = vunpack.c.h.b16 %v4285
        %v4602 = vunpack.c.l.b16 %v4286
        %v4603 = vunpack.c.l.b16 %v4287
        %v4604 = vunpack.c.h.b16 %v4287
        %v4605 = vunpack.c.l.b16 %v4288
        %v4606 = vunpack.c.h.b16 %v4288
        %v4607 = vunpack.c.l.b16 %v4289
        %v4608 = vunpack.c.l.b16 %v4290
        %v4609 = vunpack.c.h.b16 %v4290
        %v4610 = vunpack.c.l.b16 %v4291
        %v4611 = vunpack.c.h.b16 %v4291
        %v4612 = vunpack.c.l.b16 %v4292
        %v4613 = vunpack.c.l.b16 %v4293
        %v4614 = vunpack.c.h.b16 %v4293
        %v4615 = vunpack.c.l.b16 %v4294
        %v4616 = vunpack.c.h.b16 %v4294
        %v4617 = vunpack.c.l.b16 %v4295
        %v4618 = vunpack.c.l.b16 %v4296
        %v4619 = vunpack.c.h.b16 %v4296
        %v4620 = vunpack.c.l.b16 %v4297
        %v4621 = vunpack.c.h.b16 %v4297
        %v4622 = vunpack.c.l.b16 %v4298
        %v4623 = vunpack.c.l.b16 %v4299
        %v4624 = vunpack.c.h.b16 %v4299
        %v4625 = vunpack.c.l.b16 %v4300
        %v4626 = vunpack.c.h.b16 %v4300
        %v4627 = vunpack.c.l.b16 %v4301
        %v4628 = vunpack.c.l.b16 %v4302
        %v4629 = vunpack.c.h.b16 %v4302
        %v4630 = vunpack.c.l.b16 %v4303
        %v4631 = vunpack.c.h.b16 %v4303
        %v4632 = vunpack.c.l.b16 %v4304
        %v4633 = vunpack.c.l.b16 %v4305
        %v4634 = vunpack.c.h.b16 %v4305
        %v4635 = vunpack.c.l.b16 %v4306
        %v4636 = vunpack.c.h.b16 %v4306
        %v4637 = vunpack.c.l.b16 %v4307
        %v4638 = vunpack.c.l.b16 %v4308
        %v4639 = vunpack.c.h.b16 %v4308
        %v4640 = vunpack.c.l.b16 %v4309
        %v4641 = vunpack.c.h.b16 %v4309
        %v4642 = vunpack.c.l.b16 %v4310
        %v4643 = vpack.c.b16 %v4488, %v4483
        %v4644 = vpack.c.b16 %v4489, %v4484
        %v4645 = vpack.c.b16 %v4490, %v4485
        %v4646 = vpack.c.b16 %v4491, %v4486
        %v4647 = vpack.c.b16 %v4492, %v4487
        %v4648 = vpack.c.b16 %v4498, %v4493
        %v4649 = vpack.c.b16 %v4499, %v4494
        %v4650 = vpack.c.b16 %v4500, %v4495
        %v4651 = vpack.c.b16 %v4501, %v4496
        %v4652 = vpack.c.b16 %v4502, %v4497
        %v4653 = vpack.c.b16 %v4508, %v4503
        %v4654 = vpack.c.b16 %v4509, %v4504
        %v4655 = vpack.c.b16 %v4510, %v4505
        %v4656 = vpack.c.b16 %v4511, %v4506
        %v4657 = vpack.c.b16 %v4512, %v4507
        %v4658 = vpack.c.b16 %v4518, %v4513
        %v4659 = vpack.c.b16 %v4519, %v4514
        %v4660 = vpack.c.b16 %v4520, %v4515
        %v4661 = vpack.c.b16 %v4521, %v4516
        %v4662 = vpack.c.b16 %v4522, %v4517
        %v4663 = vpack.c.b16 %v4528, %v4523
        %v4664 = vpack.c.b16 %v4529, %v4524
        %v4665 = vpack.c.b16 %v4530, %v4525
        %v4666 = vpack.c.b16 %v4531, %v4526
        %v4667 = vpack.c.b16 %v4532, %v4527
        %v4668 = vpack.c.b16 %v4538, %v4533
        %v4669 = vpack.c.b16 %v4539, %v4534
        %v4670 = vpack.c.b16 %v4540, %v4535
        %v4671 = vpack.c.b16 %v4541, %v4536
        %v4672 = vpack.c.b16 %v4542, %v4537
        %v4673 = vpack.c.b16 %v4548, %v4543
        %v4674 = vpack.c.b16 %v4549, %v4544
        %v4675 = vpack.c.b16 %v4550, %v4545
        %v4676 = vpack.c.b16 %v4551, %v4546
        %v4677 = vpack.c.b16 %v4552, %v4547
        %v4678 = vpack.c.b16 %v4558, %v4553
        %v4679 = vpack.c.b16 %v4559, %v4554
        %v4680 = vpack.c.b16 %v4560, %v4555
        %v4681 = vpack.c.b16 %v4561, %v4556
        %v4682 = vpack.c.b16 %v4562, %v4557
        %v4683 = vpack.c.b16 %v4568, %v4563
        %v4684 = vpack.c.b16 %v4569, %v4564
        %v4685 = vpack.c.b16 %v4570, %v4565
        %v4686 = vpack.c.b16 %v4571, %v4566
        %v4687 = vpack.c.b16 %v4572, %v4567
        %v4688 = vpack.c.b16 %v4578, %v4573
        %v4689 = vpack.c.b16 %v4579, %v4574
        %v4690 = vpack.c.b16 %v4580, %v4575
        %v4691 = vpack.c.b16 %v4581, %v4576
        %v4692 = vpack.c.b16 %v4582, %v4577
        %v4693 = vpack.c.b16 %v4588, %v4583
        %v4694 = vpack.c.b16 %v4589, %v4584
        %v4695 = vpack.c.b16 %v4590, %v4585
        %v4696 = vpack.c.b16 %v4591, %v4586
        %v4697 = vpack.c.b16 %v4592, %v4587
        %v4698 = vpack.c.b16 %v4598, %v4593
        %v4699 = vpack.c.b16 %v4599, %v4594
        %v4700 = vpack.c.b16 %v4600, %v4595
        %v4701 = vpack.c.b16 %v4601, %v4596
        %v4702 = vpack.c.b16 %v4602, %v4597
        %v4703 = vpack.c.b16 %v4608, %v4603
        %v4704 = vpack.c.b16 %v4609, %v4604
        %v4705 = vpack.c.b16 %v4610, %v4605
        %v4706 = vpack.c.b16 %v4611, %v4606
        %v4707 = vpack.c.b16 %v4612, %v4607
        %v4708 = vpack.c.b16 %v4618, %v4613
        %v4709 = vpack.c.b16 %v4619, %v4614
        %v4710 = vpack.c.b16 %v4620, %v4615
        %v4711 = vpack.c.b16 %v4621, %v4616
        %v4712 = vpack.c.b16 %v4622, %v4617
        %v4713 = vpack.c.b16 %v4628, %v4623
        %v4714 = vpack.c.b16 %v4629, %v4624
        %v4715 = vpack.c.b16 %v4630, %v4625
        %v4716 = vpack.c.b16 %v4631, %v4626
        %v4717 = vpack.c.b16 %v4632, %v4627
        %v4718 = vpack.c.b16 %v4638, %v4633
        %v4719 = vpack.c.b16 %v4639, %v4634
        %v4720 = vpack.c.b16 %v4640, %v4635
        %v4721 = vpack.c.b16 %v4641, %v4636
        %v4722 = vpack.c.b16 %v4642, %v4637
        %v4859 = vunpack.c.l.b16 %v4311
        %v4860 = vunpack.c.l.b16 %v4312
        %v4861 = vunpack.c.l.b16 %v4313
        %v4862 = vunpack.c.l.b16 %v4314
        %v4863 = vunpack.c.l.b16 %v4315
        %v4864 = vunpack.c.l.b16 %v4316
        %v4865 = vunpack.c.l.b16 %v4317
        %v4866 = vunpack.c.l.b16 %v4318
        %v4867 = vunpack.c.l.b16 %v4319
        %v4868 = vunpack.c.l.b16 %v4320
        %v4869 = vunpack.c.l.b16 %v4321
        %v4870 = vunpack.c.l.b16 %v4322
        %v4871 = vunpack.c.l.b16 %v4323
        %v4872 = vunpack.c.l.b16 %v4324
        %v4873 = vunpack.c.l.b16 %v4325
        %v4874 = vunpack.c.l.b16 %v4326
        %v4875 = vunpack.c.l.b16 %v4327
        %v4876 = vunpack.c.l.b16 %v4328
        %v4877 = vunpack.c.l.b16 %v4329
        %v4878 = vunpack.c.l.b16 %v4330
        %v4879 = vunpack.c.l.b16 %v4331
        %v4880 = vunpack.c.l.b16 %v4332
        %v4881 = vunpack.c.l.b16 %v4333
        %v4882 = vunpack.c.l.b16 %v4334
        %v4883 = vunpack.c.l.b16 %v4335
        %v4884 = vunpack.c.l.b16 %v4336
        %v4885 = vunpack.c.l.b16 %v4337
        %v4886 = vunpack.c.l.b16 %v4338
        %v4887 = vunpack.c.l.b16 %v4339
        %v4888 = vunpack.c.l.b16 %v4340
        %v4889 = vunpack.c.l.b16 %v4341
        %v4890 = vunpack.c.l.b16 %v4342
        %v4891 = vunpack.c.l.b16 %v4343
        %v4892 = vunpack.c.l.b16 %v4344
        %v4893 = vunpack.c.l.b16 %v4345
        %v4894 = vunpack.c.l.b16 %v4346
        %v4895 = vunpack.c.l.b16 %v4347
        %v4896 = vunpack.c.l.b16 %v4348
        %v4897 = vunpack.c.l.b16 %v4349
        %v4898 = vunpack.c.l.b16 %v4350
        %v4899 = vunpack.c.l.b16 %v4351
        %v4900 = vunpack.c.l.b16 %v4352
        %v4901 = vunpack.c.l.b16 %v4353
        %v4902 = vunpack.c.l.b16 %v4354
        %v4903 = vunpack.c.l.b16 %v4355
        %v4904 = vunpack.c.l.b16 %v4356
        %v4905 = vunpack.c.l.b16 %v4357
        %v4906 = vunpack.c.l.b16 %v4358
        %v4907 = vunpack.c.l.b16 %v4359
        %v4908 = vunpack.c.l.b16 %v4360
        %v4909 = vunpack.c.l.b16 %v4361
        %v4910 = vunpack.c.l.b16 %v4362
        %v4911 = vunpack.c.l.b16 %v4363
        %v4912 = vunpack.c.l.b16 %v4364
        %v4913 = vunpack.c.l.b16 %v4365
        %v4914 = vunpack.c.l.b16 %v4366
        %v4915 = vunpack.c.l.b16 %v4367
        %v4916 = vunpack.c.l.b16 %v4368
        %v4917 = vunpack.c.l.b16 %v4369
        %v4918 = vunpack.c.l.b16 %v4370
        %v4919 = vunpack.c.l.b16 %v4371
        %v4920 = vunpack.c.l.b16 %v4372
        %v4921 = vunpack.c.l.b16 %v4373
        %v4922 = vunpack.c.l.b16 %v4374
        %v4923 = vunpack.c.l.b16 %v4375
        %v4924 = vunpack.c.l.b16 %v4376
        %v4925 = vunpack.c.l.b16 %v4377
        %v4926 = vunpack.c.l.b16 %v4378
        %v4927 = vunpack.c.l.b16 %v4379
        %v4928 = vunpack.c.l.b16 %v4380
        %v4929 = vunpack.c.l.b16 %v4381
        %v4930 = vunpack.c.l.b16 %v4382
        %v4931 = vpack.c.b16 %v4860, %v4859
        %v4932 = vpack.c.b16 %v4862, %v4861
        %v4933 = vpack.c.b16 %v4864, %v4863
        %v4934 = vpack.c.b16 %v4866, %v4865
        %v4935 = vpack.c.b16 %v4868, %v4867
        %v4936 = vpack.c.b16 %v4870, %v4869
        %v4937 = vpack.c.b16 %v4872, %v4871
        %v4938 = vpack.c.b16 %v4874, %v4873
        %v4939 = vpack.c.b16 %v4876, %v4875
        %v4940 = vpack.c.b16 %v4878, %v4877
        %v4941 = vpack.c.b16 %v4880, %v4879
        %v4942 = vpack.c.b16 %v4882, %v4881
        %v4943 = vpack.c.b16 %v4884, %v4883
        %v4944 = vpack.c.b16 %v4886, %v4885
        %v4945 = vpack.c.b16 %v4888, %v4887
        %v4946 = vpack.c.b16 %v4890, %v4889
        %v4947 = vpack.c.b16 %v4892, %v4891
        %v4948 = vpack.c.b16 %v4894, %v4893
        %v4949 = vpack.c.b16 %v4896, %v4895
        %v4950 = vpack.c.b16 %v4898, %v4897
        %v4951 = vpack.c.b16 %v4900, %v4899
        %v4952 = vpack.c.b16 %v4902, %v4901
        %v4953 = vpack.c.b16 %v4904, %v4903
        %v4954 = vpack.c.b16 %v4906, %v4905
        %v4955 = vpack.c.b16 %v4908, %v4907
        %v4956 = vpack.c.b16 %v4910, %v4909
        %v4957 = vpack.c.b16 %v4912, %v4911
        %v4958 = vpack.c.b16 %v4914, %v4913
        %v4959 = vpack.c.b16 %v4916, %v4915
        %v4960 = vpack.c.b16 %v4918, %v4917
        %v4961 = vpack.c.b16 %v4920, %v4919
        %v4962 = vpack.c.b16 %v4922, %v4921
        %v4963 = vpack.c.b16 %v4924, %v4923
        %v4964 = vpack.c.b16 %v4926, %v4925
        %v4965 = vpack.c.b16 %v4928, %v4927
        %v4966 = vpack.c.b16 %v4930, %v4929
        %vm5003 = vcmask 523264
        %v5005 = vsel %vm5003, %v4647, 0
        %v5008 = vsel %vm5003, %v4652, 0
        %v5011 = vsel %vm5003, %v4657, 0
        %v5014 = vsel %vm5003, %v4662, 0
        %v5017 = vsel %vm5003, %v4667, 0
        %v5020 = vsel %vm5003, %v4672, 0
        %v5023 = vsel %vm5003, %v4677, 0
        %v5026 = vsel %vm5003, %v4682, 0
        %v5029 = vsel %vm5003, %v4687, 0
        %v5032 = vsel %vm5003, %v4692, 0
        %v5035 = vsel %vm5003, %v4697, 0
        %v5038 = vsel %vm5003, %v4702, 0
        %v5041 = vsel %vm5003, %v4707, 0
        %v5044 = vsel %vm5003, %v4712, 0
        %v5047 = vsel %vm5003, %v4717, 0
        %v5050 = vsel %vm5003, %v4722, 0
        %5052 = vmatpush.bf16.msra.mxu0 %v4938
        %5053 = vmatpush.bf16.msra.mxu0 %v4937
        %5054 = vmatpush.bf16.msra.mxu0 %v4936
        %5055 = vmatpush.bf16.msra.mxu0 %v4935
        %5056 = vmatpush.bf16.msra.mxu0 %v4934
        %5057 = vmatpush.bf16.msra.mxu0 %v4933
        %5058 = vmatpush.bf16.msra.mxu0 %v4932
        %5059 = vmatpush.bf16.msra.mxu0 %v4931
        %5060 = vmatmul.bf16.gmra.mxu0 %v4643
        %v5061 = vpop.f32.mrf.mxu0
        %v5062 = vadd.f32 %v4385, %v5061
        %v5063 = vpop.f32.mrf.mxu0
        %v5064 = vadd.f32 %v4385, %v5063
        %5065 = vmatmul.bf16.gmra.mxu0 %v4648
        %v5066 = vpop.f32.mrf.mxu0
        %v5067 = vadd.f32 %v4385, %v5066
        %v5068 = vpop.f32.mrf.mxu0
        %v5069 = vadd.f32 %v4385, %v5068
        %5070 = vmatmul.bf16.gmra.mxu0 %v4653
        %v5071 = vpop.f32.mrf.mxu0
        %v5072 = vadd.f32 %v4385, %v5071
        %v5073 = vpop.f32.mrf.mxu0
        %v5074 = vadd.f32 %v4385, %v5073
        %5075 = vmatmul.bf16.gmra.mxu0 %v4658
        %v5076 = vpop.f32.mrf.mxu0
        %v5077 = vadd.f32 %v4385, %v5076
        %v5078 = vpop.f32.mrf.mxu0
        %v5079 = vadd.f32 %v4385, %v5078
        %5080 = vmatmul.bf16.gmra.mxu0 %v4663
        %v5081 = vpop.f32.mrf.mxu0
        %v5082 = vadd.f32 %v4385, %v5081
        %v5083 = vpop.f32.mrf.mxu0
        %v5084 = vadd.f32 %v4385, %v5083
        %5085 = vmatmul.bf16.gmra.mxu0 %v4668
        %v5086 = vpop.f32.mrf.mxu0
        %v5087 = vadd.f32 %v4385, %v5086
        %v5088 = vpop.f32.mrf.mxu0
        %v5089 = vadd.f32 %v4385, %v5088
        %5090 = vmatmul.bf16.gmra.mxu0 %v4673
        %v5091 = vpop.f32.mrf.mxu0
        %v5092 = vadd.f32 %v4385, %v5091
        %v5093 = vpop.f32.mrf.mxu0
        %v5094 = vadd.f32 %v4385, %v5093
        %5095 = vmatmul.bf16.gmra.mxu0 %v4678
        %v5096 = vpop.f32.mrf.mxu0
        %v5097 = vadd.f32 %v4385, %v5096
        %v5098 = vpop.f32.mrf.mxu0
        %v5099 = vadd.f32 %v4385, %v5098
        %5100 = vmatmul.bf16.gmra.mxu0 %v4683
        %v5101 = vpop.f32.mrf.mxu0
        %v5102 = vadd.f32 %v4385, %v5101
        %v5103 = vpop.f32.mrf.mxu0
        %v5104 = vadd.f32 %v4385, %v5103
        %5105 = vmatmul.bf16.gmra.mxu0 %v4688
        %v5106 = vpop.f32.mrf.mxu0
        %v5107 = vadd.f32 %v4385, %v5106
        %v5108 = vpop.f32.mrf.mxu0
        %v5109 = vadd.f32 %v4385, %v5108
        %5110 = vmatmul.bf16.gmra.mxu0 %v4693
        %v5111 = vpop.f32.mrf.mxu0
        %v5112 = vadd.f32 %v4385, %v5111
        %v5113 = vpop.f32.mrf.mxu0
        %v5114 = vadd.f32 %v4385, %v5113
        %5115 = vmatmul.bf16.gmra.mxu0 %v4698
        %v5116 = vpop.f32.mrf.mxu0
        %v5117 = vadd.f32 %v4385, %v5116
        %v5118 = vpop.f32.mrf.mxu0
        %v5119 = vadd.f32 %v4385, %v5118
        %5120 = vmatmul.bf16.gmra.mxu0 %v4703
        %v5121 = vpop.f32.mrf.mxu0
        %v5122 = vadd.f32 %v4385, %v5121
        %v5123 = vpop.f32.mrf.mxu0
        %v5124 = vadd.f32 %v4385, %v5123
        %5125 = vmatmul.bf16.gmra.mxu0 %v4708
        %v5126 = vpop.f32.mrf.mxu0
        %v5127 = vadd.f32 %v4385, %v5126
        %v5128 = vpop.f32.mrf.mxu0
        %v5129 = vadd.f32 %v4385, %v5128
        %5130 = vmatmul.bf16.gmra.mxu0 %v4713
        %v5131 = vpop.f32.mrf.mxu0
        %v5132 = vadd.f32 %v4385, %v5131
        %v5133 = vpop.f32.mrf.mxu0
        %v5134 = vadd.f32 %v4385, %v5133
        %5135 = vmatmul.bf16.gmra.mxu0 %v4718
        %v5136 = vpop.f32.mrf.mxu0
        %v5137 = vadd.f32 %v4385, %v5136
        %v5138 = vpop.f32.mrf.mxu0
        %v5139 = vadd.f32 %v4385, %v5138
        %5140 = vdwg.mxu0
        %5141 = vmatpush.bf16.msra.mxu0 %v4946
        %5142 = vmatpush.bf16.msra.mxu0 %v4945
        %5143 = vmatpush.bf16.msra.mxu0 %v4944
        %5144 = vmatpush.bf16.msra.mxu0 %v4943
        %5145 = vmatpush.bf16.msra.mxu0 %v4942
        %5146 = vmatpush.bf16.msra.mxu0 %v4941
        %5147 = vmatpush.bf16.msra.mxu0 %v4940
        %5148 = vmatpush.bf16.msra.mxu0 %v4939
        %5149 = vmatmul.bf16.gmra.mxu0 %v4644
        %v5150 = vpop.f32.mrf.mxu0
        %v5151 = vadd.f32 %v5062, %v5150
        %v5152 = vpop.f32.mrf.mxu0
        %v5153 = vadd.f32 %v5064, %v5152
        %5154 = vmatmul.bf16.gmra.mxu0 %v4649
        %v5155 = vpop.f32.mrf.mxu0
        %v5156 = vadd.f32 %v5067, %v5155
        %v5157 = vpop.f32.mrf.mxu0
        %v5158 = vadd.f32 %v5069, %v5157
        %5159 = vmatmul.bf16.gmra.mxu0 %v4654
        %v5160 = vpop.f32.mrf.mxu0
        %v5161 = vadd.f32 %v5072, %v5160
        %v5162 = vpop.f32.mrf.mxu0
        %v5163 = vadd.f32 %v5074, %v5162
        %5164 = vmatmul.bf16.gmra.mxu0 %v4659
        %v5165 = vpop.f32.mrf.mxu0
        %v5166 = vadd.f32 %v5077, %v5165
        %v5167 = vpop.f32.mrf.mxu0
        %v5168 = vadd.f32 %v5079, %v5167
        %5169 = vmatmul.bf16.gmra.mxu0 %v4664
        %v5170 = vpop.f32.mrf.mxu0
        %v5171 = vadd.f32 %v5082, %v5170
        %v5172 = vpop.f32.mrf.mxu0
        %v5173 = vadd.f32 %v5084, %v5172
        %5174 = vmatmul.bf16.gmra.mxu0 %v4669
        %v5175 = vpop.f32.mrf.mxu0
        %v5176 = vadd.f32 %v5087, %v5175
        %v5177 = vpop.f32.mrf.mxu0
        %v5178 = vadd.f32 %v5089, %v5177
        %5179 = vmatmul.bf16.gmra.mxu0 %v4674
        %v5180 = vpop.f32.mrf.mxu0
        %v5181 = vadd.f32 %v5092, %v5180
        %v5182 = vpop.f32.mrf.mxu0
        %v5183 = vadd.f32 %v5094, %v5182
        %5184 = vmatmul.bf16.gmra.mxu0 %v4679
        %v5185 = vpop.f32.mrf.mxu0
        %v5186 = vadd.f32 %v5097, %v5185
        %v5187 = vpop.f32.mrf.mxu0
        %v5188 = vadd.f32 %v5099, %v5187
        %5189 = vmatmul.bf16.gmra.mxu0 %v4684
        %v5190 = vpop.f32.mrf.mxu0
        %v5191 = vadd.f32 %v5102, %v5190
        %v5192 = vpop.f32.mrf.mxu0
        %v5193 = vadd.f32 %v5104, %v5192
        %5194 = vmatmul.bf16.gmra.mxu0 %v4689
        %v5195 = vpop.f32.mrf.mxu0
        %v5196 = vadd.f32 %v5107, %v5195
        %v5197 = vpop.f32.mrf.mxu0
        %v5198 = vadd.f32 %v5109, %v5197
        %5199 = vmatmul.bf16.gmra.mxu0 %v4694
        %v5200 = vpop.f32.mrf.mxu0
        %v5201 = vadd.f32 %v5112, %v5200
        %v5202 = vpop.f32.mrf.mxu0
        %v5203 = vadd.f32 %v5114, %v5202
        %5204 = vmatmul.bf16.gmra.mxu0 %v4699
        %v5205 = vpop.f32.mrf.mxu0
        %v5206 = vadd.f32 %v5117, %v5205
        %v5207 = vpop.f32.mrf.mxu0
        %v5208 = vadd.f32 %v5119, %v5207
        %5209 = vmatmul.bf16.gmra.mxu0 %v4704
        %v5210 = vpop.f32.mrf.mxu0
        %v5211 = vadd.f32 %v5122, %v5210
        %v5212 = vpop.f32.mrf.mxu0
        %v5213 = vadd.f32 %v5124, %v5212
        %5214 = vmatmul.bf16.gmra.mxu0 %v4709
        %v5215 = vpop.f32.mrf.mxu0
        %v5216 = vadd.f32 %v5127, %v5215
        %v5217 = vpop.f32.mrf.mxu0
        %v5218 = vadd.f32 %v5129, %v5217
        %5219 = vmatmul.bf16.gmra.mxu0 %v4714
        %v5220 = vpop.f32.mrf.mxu0
        %v5221 = vadd.f32 %v5132, %v5220
        %v5222 = vpop.f32.mrf.mxu0
        %v5223 = vadd.f32 %v5134, %v5222
        %5224 = vmatmul.bf16.gmra.mxu0 %v4719
        %v5225 = vpop.f32.mrf.mxu0
        %v5226 = vadd.f32 %v5137, %v5225
        %v5227 = vpop.f32.mrf.mxu0
        %v5228 = vadd.f32 %v5139, %v5227
        %5229 = vdwg.mxu0
        %5230 = vmatpush.bf16.msra.mxu0 %v4954
        %5231 = vmatpush.bf16.msra.mxu0 %v4953
        %5232 = vmatpush.bf16.msra.mxu0 %v4952
        %5233 = vmatpush.bf16.msra.mxu0 %v4951
        %5234 = vmatpush.bf16.msra.mxu0 %v4950
        %5235 = vmatpush.bf16.msra.mxu0 %v4949
        %5236 = vmatpush.bf16.msra.mxu0 %v4948
        %5237 = vmatpush.bf16.msra.mxu0 %v4947
        %5238 = vmatmul.bf16.gmra.mxu0 %v4645
        %v5239 = vpop.f32.mrf.mxu0
        %v5240 = vadd.f32 %v5151, %v5239
        %v5241 = vpop.f32.mrf.mxu0
        %v5242 = vadd.f32 %v5153, %v5241
        %5243 = vmatmul.bf16.gmra.mxu0 %v4650
        %v5244 = vpop.f32.mrf.mxu0
        %v5245 = vadd.f32 %v5156, %v5244
        %v5246 = vpop.f32.mrf.mxu0
        %v5247 = vadd.f32 %v5158, %v5246
        %5248 = vmatmul.bf16.gmra.mxu0 %v4655
        %v5249 = vpop.f32.mrf.mxu0
        %v5250 = vadd.f32 %v5161, %v5249
        %v5251 = vpop.f32.mrf.mxu0
        %v5252 = vadd.f32 %v5163, %v5251
        %5253 = vmatmul.bf16.gmra.mxu0 %v4660
        %v5254 = vpop.f32.mrf.mxu0
        %v5255 = vadd.f32 %v5166, %v5254
        %v5256 = vpop.f32.mrf.mxu0
        %v5257 = vadd.f32 %v5168, %v5256
        %5258 = vmatmul.bf16.gmra.mxu0 %v4665
        %v5259 = vpop.f32.mrf.mxu0
        %v5260 = vadd.f32 %v5171, %v5259
        %v5261 = vpop.f32.mrf.mxu0
        %v5262 = vadd.f32 %v5173, %v5261
        %5263 = vmatmul.bf16.gmra.mxu0 %v4670
        %v5264 = vpop.f32.mrf.mxu0
        %v5265 = vadd.f32 %v5176, %v5264
        %v5266 = vpop.f32.mrf.mxu0
        %v5267 = vadd.f32 %v5178, %v5266
        %5268 = vmatmul.bf16.gmra.mxu0 %v4675
        %v5269 = vpop.f32.mrf.mxu0
        %v5270 = vadd.f32 %v5181, %v5269
        %v5271 = vpop.f32.mrf.mxu0
        %v5272 = vadd.f32 %v5183, %v5271
        %5273 = vmatmul.bf16.gmra.mxu0 %v4680
        %v5274 = vpop.f32.mrf.mxu0
        %v5275 = vadd.f32 %v5186, %v5274
        %v5276 = vpop.f32.mrf.mxu0
        %v5277 = vadd.f32 %v5188, %v5276
        %5278 = vmatmul.bf16.gmra.mxu0 %v4685
        %v5279 = vpop.f32.mrf.mxu0
        %v5280 = vadd.f32 %v5191, %v5279
        %v5281 = vpop.f32.mrf.mxu0
        %v5282 = vadd.f32 %v5193, %v5281
        %5283 = vmatmul.bf16.gmra.mxu0 %v4690
        %v5284 = vpop.f32.mrf.mxu0
        %v5285 = vadd.f32 %v5196, %v5284
        %v5286 = vpop.f32.mrf.mxu0
        %v5287 = vadd.f32 %v5198, %v5286
        %5288 = vmatmul.bf16.gmra.mxu0 %v4695
        %v5289 = vpop.f32.mrf.mxu0
        %v5290 = vadd.f32 %v5201, %v5289
        %v5291 = vpop.f32.mrf.mxu0
        %v5292 = vadd.f32 %v5203, %v5291
        %5293 = vmatmul.bf16.gmra.mxu0 %v4700
        %v5294 = vpop.f32.mrf.mxu0
        %v5295 = vadd.f32 %v5206, %v5294
        %v5296 = vpop.f32.mrf.mxu0
        %v5297 = vadd.f32 %v5208, %v5296
        %5298 = vmatmul.bf16.gmra.mxu0 %v4705
        %v5299 = vpop.f32.mrf.mxu0
        %v5300 = vadd.f32 %v5211, %v5299
        %v5301 = vpop.f32.mrf.mxu0
        %v5302 = vadd.f32 %v5213, %v5301
        %5303 = vmatmul.bf16.gmra.mxu0 %v4710
        %v5304 = vpop.f32.mrf.mxu0
        %v5305 = vadd.f32 %v5216, %v5304
        %v5306 = vpop.f32.mrf.mxu0
        %v5307 = vadd.f32 %v5218, %v5306
        %5308 = vmatmul.bf16.gmra.mxu0 %v4715
        %v5309 = vpop.f32.mrf.mxu0
        %v5310 = vadd.f32 %v5221, %v5309
        %v5311 = vpop.f32.mrf.mxu0
        %v5312 = vadd.f32 %v5223, %v5311
        %5313 = vmatmul.bf16.gmra.mxu0 %v4720
        %v5314 = vpop.f32.mrf.mxu0
        %v5315 = vadd.f32 %v5226, %v5314
        %v5316 = vpop.f32.mrf.mxu0
        %v5317 = vadd.f32 %v5228, %v5316
        %5318 = vdwg.mxu0
        %5319 = vmatpush.bf16.msra.mxu0 %v4962
        %5320 = vmatpush.bf16.msra.mxu0 %v4961
        %5321 = vmatpush.bf16.msra.mxu0 %v4960
        %5322 = vmatpush.bf16.msra.mxu0 %v4959
        %5323 = vmatpush.bf16.msra.mxu0 %v4958
        %5324 = vmatpush.bf16.msra.mxu0 %v4957
        %5325 = vmatpush.bf16.msra.mxu0 %v4956
        %5326 = vmatpush.bf16.msra.mxu0 %v4955
        %5327 = vmatmul.bf16.gmra.mxu0 %v4646
        %v5328 = vpop.f32.mrf.mxu0
        %v5329 = vadd.f32 %v5240, %v5328
        %v5330 = vpop.f32.mrf.mxu0
        %v5331 = vadd.f32 %v5242, %v5330
        %5332 = vmatmul.bf16.gmra.mxu0 %v4651
        %v5333 = vpop.f32.mrf.mxu0
        %v5334 = vadd.f32 %v5245, %v5333
        %v5335 = vpop.f32.mrf.mxu0
        %v5336 = vadd.f32 %v5247, %v5335
        %5337 = vmatmul.bf16.gmra.mxu0 %v4656
        %v5338 = vpop.f32.mrf.mxu0
        %v5339 = vadd.f32 %v5250, %v5338
        %v5340 = vpop.f32.mrf.mxu0
        %v5341 = vadd.f32 %v5252, %v5340
        %5342 = vmatmul.bf16.gmra.mxu0 %v4661
        %v5343 = vpop.f32.mrf.mxu0
        %v5344 = vadd.f32 %v5255, %v5343
        %v5345 = vpop.f32.mrf.mxu0
        %v5346 = vadd.f32 %v5257, %v5345
        %5347 = vmatmul.bf16.gmra.mxu0 %v4666
        %v5348 = vpop.f32.mrf.mxu0
        %v5349 = vadd.f32 %v5260, %v5348
        %v5350 = vpop.f32.mrf.mxu0
        %v5351 = vadd.f32 %v5262, %v5350
        %5352 = vmatmul.bf16.gmra.mxu0 %v4671
        %v5353 = vpop.f32.mrf.mxu0
        %v5354 = vadd.f32 %v5265, %v5353
        %v5355 = vpop.f32.mrf.mxu0
        %v5356 = vadd.f32 %v5267, %v5355
        %5357 = vmatmul.bf16.gmra.mxu0 %v4676
        %v5358 = vpop.f32.mrf.mxu0
        %v5359 = vadd.f32 %v5270, %v5358
        %v5360 = vpop.f32.mrf.mxu0
        %v5361 = vadd.f32 %v5272, %v5360
        %5362 = vmatmul.bf16.gmra.mxu0 %v4681
        %v5363 = vpop.f32.mrf.mxu0
        %v5364 = vadd.f32 %v5275, %v5363
        %v5365 = vpop.f32.mrf.mxu0
        %v5366 = vadd.f32 %v5277, %v5365
        %5367 = vmatmul.bf16.gmra.mxu0 %v4686
        %v5368 = vpop.f32.mrf.mxu0
        %v5369 = vadd.f32 %v5280, %v5368
        %v5370 = vpop.f32.mrf.mxu0
        %v5371 = vadd.f32 %v5282, %v5370
        %5372 = vmatmul.bf16.gmra.mxu0 %v4691
        %v5373 = vpop.f32.mrf.mxu0
        %v5374 = vadd.f32 %v5285, %v5373
        %v5375 = vpop.f32.mrf.mxu0
        %v5376 = vadd.f32 %v5287, %v5375
        %5377 = vmatmul.bf16.gmra.mxu0 %v4696
        %v5378 = vpop.f32.mrf.mxu0
        %v5379 = vadd.f32 %v5290, %v5378
        %v5380 = vpop.f32.mrf.mxu0
        %v5381 = vadd.f32 %v5292, %v5380
        %5382 = vmatmul.bf16.gmra.mxu0 %v4701
        %v5383 = vpop.f32.mrf.mxu0
        %v5384 = vadd.f32 %v5295, %v5383
        %v5385 = vpop.f32.mrf.mxu0
        %v5386 = vadd.f32 %v5297, %v5385
        %5387 = vmatmul.bf16.gmra.mxu0 %v4706
        %v5388 = vpop.f32.mrf.mxu0
        %v5389 = vadd.f32 %v5300, %v5388
        %v5390 = vpop.f32.mrf.mxu0
        %v5391 = vadd.f32 %v5302, %v5390
        %5392 = vmatmul.bf16.gmra.mxu0 %v4711
        %v5393 = vpop.f32.mrf.mxu0
        %v5394 = vadd.f32 %v5305, %v5393
        %v5395 = vpop.f32.mrf.mxu0
        %v5396 = vadd.f32 %v5307, %v5395
        %5397 = vmatmul.bf16.gmra.mxu0 %v4716
        %v5398 = vpop.f32.mrf.mxu0
        %v5399 = vadd.f32 %v5310, %v5398
        %v5400 = vpop.f32.mrf.mxu0
        %v5401 = vadd.f32 %v5312, %v5400
        %5402 = vmatmul.bf16.gmra.mxu0 %v4721
        %v5403 = vpop.f32.mrf.mxu0
        %v5404 = vadd.f32 %v5315, %v5403
        %v5405 = vpop.f32.mrf.mxu0
        %v5406 = vadd.f32 %v5317, %v5405
        %5407 = vdwg.mxu0
        %5408 = vmatpush.bf16.msra.mxu0 0
        %5409 = vmatpush.bf16.msra.mxu0 0
        %5410 = vmatpush.bf16.msra.mxu0 0
        %5411 = vmatpush.bf16.msra.mxu0 0
        %5412 = vmatpush.bf16.msra.mxu0 %v4966
        %5413 = vmatpush.bf16.msra.mxu0 %v4965
        %5414 = vmatpush.bf16.msra.mxu0 %v4964
        %5415 = vmatpush.bf16.msra.mxu0 %v4963
        %5416 = vmatmul.bf16.gmra.mxu0 %v5005
        %v5417 = vpop.f32.mrf.mxu0
        %v5418 = vadd.f32 %v5329, %v5417
        %v5419 = vpop.f32.mrf.mxu0
        %v5420 = vadd.f32 %v5331, %v5419
        %5421 = vmatmul.bf16.gmra.mxu0 %v5008
        %v5422 = vpop.f32.mrf.mxu0
        %v5423 = vadd.f32 %v5334, %v5422
        %v5424 = vpop.f32.mrf.mxu0
        %v5425 = vadd.f32 %v5336, %v5424
        %5426 = vmatmul.bf16.gmra.mxu0 %v5011
        %v5427 = vpop.f32.mrf.mxu0
        %v5428 = vadd.f32 %v5339, %v5427
        %v5429 = vpop.f32.mrf.mxu0
        %v5430 = vadd.f32 %v5341, %v5429
        %5431 = vmatmul.bf16.gmra.mxu0 %v5014
        %v5432 = vpop.f32.mrf.mxu0
        %v5433 = vadd.f32 %v5344, %v5432
        %v5434 = vpop.f32.mrf.mxu0
        %v5435 = vadd.f32 %v5346, %v5434
        %5436 = vmatmul.bf16.gmra.mxu0 %v5017
        %v5437 = vpop.f32.mrf.mxu0
        %v5438 = vadd.f32 %v5349, %v5437
        %v5439 = vpop.f32.mrf.mxu0
        %v5440 = vadd.f32 %v5351, %v5439
        %5441 = vmatmul.bf16.gmra.mxu0 %v5020
        %v5442 = vpop.f32.mrf.mxu0
        %v5443 = vadd.f32 %v5354, %v5442
        %v5444 = vpop.f32.mrf.mxu0
        %v5445 = vadd.f32 %v5356, %v5444
        %5446 = vmatmul.bf16.gmra.mxu0 %v5023
        %v5447 = vpop.f32.mrf.mxu0
        %v5448 = vadd.f32 %v5359, %v5447
        %v5449 = vpop.f32.mrf.mxu0
        %v5450 = vadd.f32 %v5361, %v5449
        %5451 = vmatmul.bf16.gmra.mxu0 %v5026
        %v5452 = vpop.f32.mrf.mxu0
        %v5453 = vadd.f32 %v5364, %v5452
        %v5454 = vpop.f32.mrf.mxu0
        %v5455 = vadd.f32 %v5366, %v5454
        %5456 = vmatmul.bf16.gmra.mxu0 %v5029
        %v5457 = vpop.f32.mrf.mxu0
        %v5458 = vadd.f32 %v5369, %v5457
        %v5459 = vpop.f32.mrf.mxu0
        %v5460 = vadd.f32 %v5371, %v5459
        %5461 = vmatmul.bf16.gmra.mxu0 %v5032
        %v5462 = vpop.f32.mrf.mxu0
        %v5463 = vadd.f32 %v5374, %v5462
        %v5464 = vpop.f32.mrf.mxu0
        %v5465 = vadd.f32 %v5376, %v5464
        %5466 = vmatmul.bf16.gmra.mxu0 %v5035
        %v5467 = vpop.f32.mrf.mxu0
        %v5468 = vadd.f32 %v5379, %v5467
        %v5469 = vpop.f32.mrf.mxu0
        %v5470 = vadd.f32 %v5381, %v5469
        %5471 = vmatmul.bf16.gmra.mxu0 %v5038
        %v5472 = vpop.f32.mrf.mxu0
        %v5473 = vadd.f32 %v5384, %v5472
        %v5474 = vpop.f32.mrf.mxu0
        %v5475 = vadd.f32 %v5386, %v5474
        %5476 = vmatmul.bf16.gmra.mxu0 %v5041
        %v5477 = vpop.f32.mrf.mxu0
        %v5478 = vadd.f32 %v5389, %v5477
        %v5479 = vpop.f32.mrf.mxu0
        %v5480 = vadd.f32 %v5391, %v5479
        %5481 = vmatmul.bf16.gmra.mxu0 %v5044
        %v5482 = vpop.f32.mrf.mxu0
        %v5483 = vadd.f32 %v5394, %v5482
        %v5484 = vpop.f32.mrf.mxu0
        %v5485 = vadd.f32 %v5396, %v5484
        %5486 = vmatmul.bf16.gmra.mxu0 %v5047
        %v5487 = vpop.f32.mrf.mxu0
        %v5488 = vadd.f32 %v5399, %v5487
        %v5489 = vpop.f32.mrf.mxu0
        %v5490 = vadd.f32 %v5401, %v5489
        %5491 = vmatmul.bf16.gmra.mxu0 %v5050
        %v5492 = vpop.f32.mrf.mxu0
        %v5493 = vadd.f32 %v5404, %v5492
        %v5494 = vpop.f32.mrf.mxu0
        %v5495 = vadd.f32 %v5406, %v5494
        %5496 = vdwg.mxu0
        %v5497 = vmax.f32 %v5418, 0.0
        %v5498 = vmax.f32 %v5420, 0.0
        %v5499 = vmax.f32 %v5423, 0.0
        %v5500 = vmax.f32 %v5425, 0.0
        %v5501 = vmax.f32 %v5428, 0.0
        %v5502 = vmax.f32 %v5430, 0.0
        %v5503 = vmax.f32 %v5433, 0.0
        %v5504 = vmax.f32 %v5435, 0.0
        %v5505 = vmax.f32 %v5438, 0.0
        %v5506 = vmax.f32 %v5440, 0.0
        %v5507 = vmax.f32 %v5443, 0.0
        %v5508 = vmax.f32 %v5445, 0.0
        %v5509 = vmax.f32 %v5448, 0.0
        %v5510 = vmax.f32 %v5450, 0.0
        %v5511 = vmax.f32 %v5453, 0.0
        %v5512 = vmax.f32 %v5455, 0.0
        %v5513 = vmax.f32 %v5458, 0.0
        %v5514 = vmax.f32 %v5460, 0.0
        %v5515 = vmax.f32 %v5463, 0.0
        %v5516 = vmax.f32 %v5465, 0.0
        %v5517 = vmax.f32 %v5468, 0.0
        %v5518 = vmax.f32 %v5470, 0.0
        %v5519 = vmax.f32 %v5473, 0.0
        %v5520 = vmax.f32 %v5475, 0.0
        %v5521 = vmax.f32 %v5478, 0.0
        %v5522 = vmax.f32 %v5480, 0.0
        %v5523 = vmax.f32 %v5483, 0.0
        %v5524 = vmax.f32 %v5485, 0.0
        %v5525 = vmax.f32 %v5488, 0.0
        %v5526 = vmax.f32 %v5490, 0.0
        %v5527 = vmax.f32 %v5493, 0.0
        %v5528 = vmax.f32 %v5495, 0.0
        %v5529 = vpack.c.bf16 %v5498, %v5497
        %v5530 = vpack.c.bf16 %v5500, %v5499
        %v5531 = vpack.c.bf16 %v5502, %v5501
        %v5532 = vpack.c.bf16 %v5504, %v5503
        %v5533 = vpack.c.bf16 %v5506, %v5505
        %v5534 = vpack.c.bf16 %v5508, %v5507
        %v5535 = vpack.c.bf16 %v5510, %v5509
        %v5536 = vpack.c.bf16 %v5512, %v5511
        %v5537 = vpack.c.bf16 %v5514, %v5513
        %v5538 = vpack.c.bf16 %v5516, %v5515
        %v5539 = vpack.c.bf16 %v5518, %v5517
        %v5540 = vpack.c.bf16 %v5520, %v5519
        %v5541 = vpack.c.bf16 %v5522, %v5521
        %v5542 = vpack.c.bf16 %v5524, %v5523
        %v5543 = vpack.c.bf16 %v5526, %v5525
        %v5544 = vpack.c.bf16 %v5528, %v5527
        %v5545 = vld [vmem:[%s5] sm:$0xff]
        %v5546 = vld [vmem:[%s5 + $0x8] sm:$0xff]
        %v5547 = vld [vmem:[%s5 + $0x10] sm:$0xff]
        %v5548 = vld [vmem:[%s5 + $0x18] sm:$0xff]
        %v5549 = vld [vmem:[%s5 + $0x20] sm:$0xff]
        %v5550 = vld [vmem:[%s5 + $0x28] sm:$0xff]
        %v5551 = vld [vmem:[%s5 + $0x30] sm:$0xff]
        %v5552 = vld [vmem:[%s5 + $0x38] sm:$0xff]
        %v5553 = vld [vmem:[%s6] sm:$0x3]
        %v5555 = vperm.slane %v5553, 0
        %v5556 = vperm.slane %v5553, 1
        %v5567 = vunpack.c.l.b16 %v5545
        %v5568 = vunpack.c.h.b16 %v5545
        %v5569 = vunpack.c.l.b16 %v5546
        %v5570 = vunpack.c.h.b16 %v5546
        %v5571 = vunpack.c.l.b16 %v5547
        %v5572 = vunpack.c.h.b16 %v5547
        %v5573 = vunpack.c.l.b16 %v5548
        %v5574 = vunpack.c.h.b16 %v5548
        %v5575 = vunpack.c.l.b16 %v5549
        %v5576 = vunpack.c.h.b16 %v5549
        %v5577 = vunpack.c.l.b16 %v5550
        %v5578 = vunpack.c.h.b16 %v5550
        %v5579 = vunpack.c.l.b16 %v5551
        %v5580 = vunpack.c.h.b16 %v5551
        %v5581 = vunpack.c.l.b16 %v5552
        %v5582 = vunpack.c.h.b16 %v5552
        %v5583 = vpack.c.b16 %v5569, %v5567
        %v5584 = vpack.c.b16 %v5570, %v5568
        %v5585 = vpack.c.b16 %v5573, %v5571
        %v5586 = vpack.c.b16 %v5574, %v5572
        %v5587 = vpack.c.b16 %v5577, %v5575
        %v5588 = vpack.c.b16 %v5578, %v5576
        %v5589 = vpack.c.b16 %v5581, %v5579
        %v5590 = vpack.c.b16 %v5582, %v5580
        %v5600 = vsel %vm5003, %v5529, 0
        %v5603 = vsel %vm5003, %v5530, 0
        %v5606 = vsel %vm5003, %v5531, 0
        %v5609 = vsel %vm5003, %v5532, 0
        %v5612 = vsel %vm5003, %v5533, 0
        %v5615 = vsel %vm5003, %v5534, 0
        %v5618 = vsel %vm5003, %v5535, 0
        %v5621 = vsel %vm5003, %v5536, 0
        %v5624 = vsel %vm5003, %v5537, 0
        %v5627 = vsel %vm5003, %v5538, 0
        %v5630 = vsel %vm5003, %v5539, 0
        %v5633 = vsel %vm5003, %v5540, 0
        %v5636 = vsel %vm5003, %v5541, 0
        %v5639 = vsel %vm5003, %v5542, 0
        %v5642 = vsel %vm5003, %v5543, 0
        %v5645 = vsel %vm5003, %v5544, 0
        %5647 = vmatpush.bf16.msra.mxu0 0
        %5648 = vmatpush.bf16.msra.mxu0 0
        %5649 = vmatpush.bf16.msra.mxu0 0
        %5650 = vmatpush.bf16.msra.mxu0 0
        %5651 = vmatpush.bf16.msra.mxu0 %v5589
        %5652 = vmatpush.bf16.msra.mxu0 %v5587
        %5653 = vmatpush.bf16.msra.mxu0 %v5585
        %5654 = vmatpush.bf16.msra.mxu0 %v5583
        %5655 = vmatmul.bf16.gmra.mxu0 %v5600
        %v5656 = vpop.f32.mrf.mxu0
        %v5657 = vadd.f32 %v5555, %v5656
        %v5658 = vpop.f32.mrf.mxu0
        %v5659 = vadd.f32 %v5555, %v5658
        %5660 = vmatmul.bf16.gmra.mxu0 %v5603
        %v5661 = vpop.f32.mrf.mxu0
        %v5662 = vadd.f32 %v5555, %v5661
        %v5663 = vpop.f32.mrf.mxu0
        %v5664 = vadd.f32 %v5555, %v5663
        %5665 = vmatmul.bf16.gmra.mxu0 %v5606
        %v5666 = vpop.f32.mrf.mxu0
        %v5667 = vadd.f32 %v5555, %v5666
        %v5668 = vpop.f32.mrf.mxu0
        %v5669 = vadd.f32 %v5555, %v5668
        %5670 = vmatmul.bf16.gmra.mxu0 %v5609
        %v5671 = vpop.f32.mrf.mxu0
        %v5672 = vadd.f32 %v5555, %v5671
        %v5673 = vpop.f32.mrf.mxu0
        %v5674 = vadd.f32 %v5555, %v5673
        %5675 = vmatmul.bf16.gmra.mxu0 %v5612
        %v5676 = vpop.f32.mrf.mxu0
        %v5677 = vadd.f32 %v5555, %v5676
        %v5678 = vpop.f32.mrf.mxu0
        %v5679 = vadd.f32 %v5555, %v5678
        %5680 = vmatmul.bf16.gmra.mxu0 %v5615
        %v5681 = vpop.f32.mrf.mxu0
        %v5682 = vadd.f32 %v5555, %v5681
        %v5683 = vpop.f32.mrf.mxu0
        %v5684 = vadd.f32 %v5555, %v5683
        %5685 = vmatmul.bf16.gmra.mxu0 %v5618
        %v5686 = vpop.f32.mrf.mxu0
        %v5687 = vadd.f32 %v5555, %v5686
        %v5688 = vpop.f32.mrf.mxu0
        %v5689 = vadd.f32 %v5555, %v5688
        %5690 = vmatmul.bf16.gmra.mxu0 %v5621
        %v5691 = vpop.f32.mrf.mxu0
        %v5692 = vadd.f32 %v5555, %v5691
        %v5693 = vpop.f32.mrf.mxu0
        %v5694 = vadd.f32 %v5555, %v5693
        %5695 = vmatmul.bf16.gmra.mxu0 %v5624
        %v5696 = vpop.f32.mrf.mxu0
        %v5697 = vadd.f32 %v5555, %v5696
        %v5698 = vpop.f32.mrf.mxu0
        %v5699 = vadd.f32 %v5555, %v5698
        %5700 = vmatmul.bf16.gmra.mxu0 %v5627
        %v5701 = vpop.f32.mrf.mxu0
        %v5702 = vadd.f32 %v5555, %v5701
        %v5703 = vpop.f32.mrf.mxu0
        %v5704 = vadd.f32 %v5555, %v5703
        %5705 = vmatmul.bf16.gmra.mxu0 %v5630
        %v5706 = vpop.f32.mrf.mxu0
        %v5707 = vadd.f32 %v5555, %v5706
        %v5708 = vpop.f32.mrf.mxu0
        %v5709 = vadd.f32 %v5555, %v5708
        %5710 = vmatmul.bf16.gmra.mxu0 %v5633
        %v5711 = vpop.f32.mrf.mxu0
        %v5712 = vadd.f32 %v5555, %v5711
        %v5713 = vpop.f32.mrf.mxu0
        %v5714 = vadd.f32 %v5555, %v5713
        %5715 = vmatmul.bf16.gmra.mxu0 %v5636
        %v5716 = vpop.f32.mrf.mxu0
        %v5717 = vadd.f32 %v5555, %v5716
        %v5718 = vpop.f32.mrf.mxu0
        %v5719 = vadd.f32 %v5555, %v5718
        %5720 = vmatmul.bf16.gmra.mxu0 %v5639
        %v5721 = vpop.f32.mrf.mxu0
        %v5722 = vadd.f32 %v5555, %v5721
        %v5723 = vpop.f32.mrf.mxu0
        %v5724 = vadd.f32 %v5555, %v5723
        %5725 = vmatmul.bf16.gmra.mxu0 %v5642
        %v5726 = vpop.f32.mrf.mxu0
        %v5727 = vadd.f32 %v5555, %v5726
        %v5728 = vpop.f32.mrf.mxu0
        %v5729 = vadd.f32 %v5555, %v5728
        %5730 = vmatmul.bf16.gmra.mxu0 %v5645
        %v5731 = vpop.f32.mrf.mxu0
        %v5732 = vadd.f32 %v5555, %v5731
        %v5733 = vpop.f32.mrf.mxu0
        %v5734 = vadd.f32 %v5555, %v5733
        %5735 = vdwg.mxu0
        %5736 = vmatpush.bf16.msra.mxu0 0
        %5737 = vmatpush.bf16.msra.mxu0 0
        %5738 = vmatpush.bf16.msra.mxu0 0
        %5739 = vmatpush.bf16.msra.mxu0 0
        %5740 = vmatpush.bf16.msra.mxu0 %v5590
        %5741 = vmatpush.bf16.msra.mxu0 %v5588
        %5742 = vmatpush.bf16.msra.mxu0 %v5586
        %5743 = vmatpush.bf16.msra.mxu0 %v5584
        %5744 = vmatmul.bf16.gmra.mxu0 %v5600
        %v5745 = vpop.f32.mrf.mxu0
        %v5746 = vadd.f32 %v5556, %v5745
        %v5747 = vpop.f32.mrf.mxu0
        %v5748 = vadd.f32 %v5556, %v5747
        %5749 = vmatmul.bf16.gmra.mxu0 %v5603
        %v5750 = vpop.f32.mrf.mxu0
        %v5751 = vadd.f32 %v5556, %v5750
        %v5752 = vpop.f32.mrf.mxu0
        %v5753 = vadd.f32 %v5556, %v5752
        %5754 = vmatmul.bf16.gmra.mxu0 %v5606
        %v5755 = vpop.f32.mrf.mxu0
        %v5756 = vadd.f32 %v5556, %v5755
        %v5757 = vpop.f32.mrf.mxu0
        %v5758 = vadd.f32 %v5556, %v5757
        %5759 = vmatmul.bf16.gmra.mxu0 %v5609
        %v5760 = vpop.f32.mrf.mxu0
        %v5761 = vadd.f32 %v5556, %v5760
        %v5762 = vpop.f32.mrf.mxu0
        %v5763 = vadd.f32 %v5556, %v5762
        %5764 = vmatmul.bf16.gmra.mxu0 %v5612
        %v5765 = vpop.f32.mrf.mxu0
        %v5766 = vadd.f32 %v5556, %v5765
        %v5767 = vpop.f32.mrf.mxu0
        %v5768 = vadd.f32 %v5556, %v5767
        %5769 = vmatmul.bf16.gmra.mxu0 %v5615
        %v5770 = vpop.f32.mrf.mxu0
        %v5771 = vadd.f32 %v5556, %v5770
        %v5772 = vpop.f32.mrf.mxu0
        %v5773 = vadd.f32 %v5556, %v5772
        %5774 = vmatmul.bf16.gmra.mxu0 %v5618
        %v5775 = vpop.f32.mrf.mxu0
        %v5776 = vadd.f32 %v5556, %v5775
        %v5777 = vpop.f32.mrf.mxu0
        %v5778 = vadd.f32 %v5556, %v5777
        %5779 = vmatmul.bf16.gmra.mxu0 %v5621
        %v5780 = vpop.f32.mrf.mxu0
        %v5781 = vadd.f32 %v5556, %v5780
        %v5782 = vpop.f32.mrf.mxu0
        %v5783 = vadd.f32 %v5556, %v5782
        %5784 = vmatmul.bf16.gmra.mxu0 %v5624
        %v5785 = vpop.f32.mrf.mxu0
        %v5786 = vadd.f32 %v5556, %v5785
        %v5787 = vpop.f32.mrf.mxu0
        %v5788 = vadd.f32 %v5556, %v5787
        %5789 = vmatmul.bf16.gmra.mxu0 %v5627
        %v5790 = vpop.f32.mrf.mxu0
        %v5791 = vadd.f32 %v5556, %v5790
        %v5792 = vpop.f32.mrf.mxu0
        %v5793 = vadd.f32 %v5556, %v5792
        %5794 = vmatmul.bf16.gmra.mxu0 %v5630
        %v5795 = vpop.f32.mrf.mxu0
        %v5796 = vadd.f32 %v5556, %v5795
        %v5797 = vpop.f32.mrf.mxu0
        %v5798 = vadd.f32 %v5556, %v5797
        %5799 = vmatmul.bf16.gmra.mxu0 %v5633
        %v5800 = vpop.f32.mrf.mxu0
        %v5801 = vadd.f32 %v5556, %v5800
        %v5802 = vpop.f32.mrf.mxu0
        %v5803 = vadd.f32 %v5556, %v5802
        %5804 = vmatmul.bf16.gmra.mxu0 %v5636
        %v5805 = vpop.f32.mrf.mxu0
        %v5806 = vadd.f32 %v5556, %v5805
        %v5807 = vpop.f32.mrf.mxu0
        %v5808 = vadd.f32 %v5556, %v5807
        %5809 = vmatmul.bf16.gmra.mxu0 %v5639
        %v5810 = vpop.f32.mrf.mxu0
        %v5811 = vadd.f32 %v5556, %v5810
        %v5812 = vpop.f32.mrf.mxu0
        %v5813 = vadd.f32 %v5556, %v5812
        %5814 = vmatmul.bf16.gmra.mxu0 %v5642
        %v5815 = vpop.f32.mrf.mxu0
        %v5816 = vadd.f32 %v5556, %v5815
        %v5817 = vpop.f32.mrf.mxu0
        %v5818 = vadd.f32 %v5556, %v5817
        %5819 = vmatmul.bf16.gmra.mxu0 %v5645
        %v5820 = vpop.f32.mrf.mxu0
        %v5821 = vadd.f32 %v5556, %v5820
        %v5822 = vpop.f32.mrf.mxu0
        %v5823 = vadd.f32 %v5556, %v5822
        %5824 = vdwg.mxu0
        %v5825 = vunpack.c.l.bf16 %v278
        %v5826 = vunpack.c.h.bf16 %v278
        %v5827 = vunpack.c.l.bf16 %v279
        %v5828 = vunpack.c.h.bf16 %v279
        %v5829 = vunpack.c.l.bf16 %v280
        %v5830 = vunpack.c.h.bf16 %v280
        %v5831 = vunpack.c.l.bf16 %v281
        %v5832 = vunpack.c.h.bf16 %v281
        %v5833 = vunpack.c.l.bf16 %v282
        %v5834 = vunpack.c.h.bf16 %v282
        %v5835 = vunpack.c.l.bf16 %v283
        %v5836 = vunpack.c.h.bf16 %v283
        %v5837 = vunpack.c.l.bf16 %v284
        %v5838 = vunpack.c.h.bf16 %v284
        %v5839 = vunpack.c.l.bf16 %v285
        %v5840 = vunpack.c.h.bf16 %v285
        %v5841 = vunpack.c.l.bf16 %v286
        %v5842 = vunpack.c.h.bf16 %v286
        %v5843 = vunpack.c.l.bf16 %v287
        %v5844 = vunpack.c.h.bf16 %v287
        %v5845 = vunpack.c.l.bf16 %v288
        %v5846 = vunpack.c.h.bf16 %v288
        %v5847 = vunpack.c.l.bf16 %v289
        %v5848 = vunpack.c.h.bf16 %v289
        %v5849 = vunpack.c.l.bf16 %v290
        %v5850 = vunpack.c.h.bf16 %v290
        %v5851 = vunpack.c.l.bf16 %v291
        %v5852 = vunpack.c.h.bf16 %v291
        %v5853 = vunpack.c.l.bf16 %v292
        %v5854 = vunpack.c.h.bf16 %v292
        %v5855 = vunpack.c.l.bf16 %v293
        %v5856 = vunpack.c.h.bf16 %v293
        %v5857 = vunpack.c.l.bf16 %v294
        %v5858 = vunpack.c.h.bf16 %v294
        %v5859 = vunpack.c.l.bf16 %v295
        %v5860 = vunpack.c.h.bf16 %v295
        %v5861 = vunpack.c.l.bf16 %v296
        %v5862 = vunpack.c.h.bf16 %v296
        %v5863 = vunpack.c.l.bf16 %v297
        %v5864 = vunpack.c.h.bf16 %v297
        %v5865 = vunpack.c.l.bf16 %v298
        %v5866 = vunpack.c.h.bf16 %v298
        %v5867 = vunpack.c.l.bf16 %v299
        %v5868 = vunpack.c.h.bf16 %v299
        %v5869 = vunpack.c.l.bf16 %v300
        %v5870 = vunpack.c.h.bf16 %v300
        %v5871 = vunpack.c.l.bf16 %v301
        %v5872 = vunpack.c.h.bf16 %v301
        %v5873 = vunpack.c.l.bf16 %v302
        %v5874 = vunpack.c.h.bf16 %v302
        %v5875 = vunpack.c.l.bf16 %v303
        %v5876 = vunpack.c.h.bf16 %v303
        %v5877 = vunpack.c.l.bf16 %v304
        %v5878 = vunpack.c.h.bf16 %v304
        %v5879 = vunpack.c.l.bf16 %v305
        %v5880 = vunpack.c.h.bf16 %v305
        %v5881 = vunpack.c.l.bf16 %v306
        %v5882 = vunpack.c.h.bf16 %v306
        %v5883 = vunpack.c.l.bf16 %v307
        %v5884 = vunpack.c.h.bf16 %v307
        %v5885 = vunpack.c.l.bf16 %v308
        %v5886 = vunpack.c.h.bf16 %v308
        %v5887 = vunpack.c.l.bf16 %v309
        %v5888 = vunpack.c.h.bf16 %v309
        %v5889 = vadd.f32 %v5657, %v5825
        %v5890 = vadd.f32 %v5746, %v5826
        %v5891 = vadd.f32 %v5659, %v5827
        %v5892 = vadd.f32 %v5748, %v5828
        %v5893 = vadd.f32 %v5662, %v5829
        %v5894 = vadd.f32 %v5751, %v5830
        %v5895 = vadd.f32 %v5664, %v5831
        %v5896 = vadd.f32 %v5753, %v5832
        %v5897 = vadd.f32 %v5667, %v5833
        %v5898 = vadd.f32 %v5756, %v5834
        %v5899 = vadd.f32 %v5669, %v5835
        %v5900 = vadd.f32 %v5758, %v5836
        %v5901 = vadd.f32 %v5672, %v5837
        %v5902 = vadd.f32 %v5761, %v5838
        %v5903 = vadd.f32 %v5674, %v5839
        %v5904 = vadd.f32 %v5763, %v5840
        %v5905 = vadd.f32 %v5677, %v5841
        %v5906 = vadd.f32 %v5766, %v5842
        %v5907 = vadd.f32 %v5679, %v5843
        %v5908 = vadd.f32 %v5768, %v5844
        %v5909 = vadd.f32 %v5682, %v5845
        %v5910 = vadd.f32 %v5771, %v5846
        %v5911 = vadd.f32 %v5684, %v5847
        %v5912 = vadd.f32 %v5773, %v5848
        %v5913 = vadd.f32 %v5687, %v5849
        %v5914 = vadd.f32 %v5776, %v5850
        %v5915 = vadd.f32 %v5689, %v5851
        %v5916 = vadd.f32 %v5778, %v5852
        %v5917 = vadd.f32 %v5692, %v5853
        %v5918 = vadd.f32 %v5781, %v5854
        %v5919 = vadd.f32 %v5694, %v5855
        %v5920 = vadd.f32 %v5783, %v5856
        %v5921 = vadd.f32 %v5697, %v5857
        %v5922 = vadd.f32 %v5786, %v5858
        %v5923 = vadd.f32 %v5699, %v5859
        %v5924 = vadd.f32 %v5788, %v5860
        %v5925 = vadd.f32 %v5702, %v5861
        %v5926 = vadd.f32 %v5791, %v5862
        %v5927 = vadd.f32 %v5704, %v5863
        %v5928 = vadd.f32 %v5793, %v5864
        %v5929 = vadd.f32 %v5707, %v5865
        %v5930 = vadd.f32 %v5796, %v5866
        %v5931 = vadd.f32 %v5709, %v5867
        %v5932 = vadd.f32 %v5798, %v5868
        %v5933 = vadd.f32 %v5712, %v5869
        %v5934 = vadd.f32 %v5801, %v5870
        %v5935 = vadd.f32 %v5714, %v5871
        %v5936 = vadd.f32 %v5803, %v5872
        %v5937 = vadd.f32 %v5717, %v5873
        %v5938 = vadd.f32 %v5806, %v5874
        %v5939 = vadd.f32 %v5719, %v5875
        %v5940 = vadd.f32 %v5808, %v5876
        %v5941 = vadd.f32 %v5722, %v5877
        %v5942 = vadd.f32 %v5811, %v5878
        %v5943 = vadd.f32 %v5724, %v5879
        %v5944 = vadd.f32 %v5813, %v5880
        %v5945 = vadd.f32 %v5727, %v5881
        %v5946 = vadd.f32 %v5816, %v5882
        %v5947 = vadd.f32 %v5729, %v5883
        %v5948 = vadd.f32 %v5818, %v5884
        %v5949 = vadd.f32 %v5732, %v5885
        %v5950 = vadd.f32 %v5821, %v5886
        %v5951 = vadd.f32 %v5734, %v5887
        %v5952 = vadd.f32 %v5823, %v5888
        %v5953 = vmax.f32 %v5889, 0.0
        %v5954 = vmax.f32 %v5890, 0.0
        %v5955 = vmax.f32 %v5891, 0.0
        %v5956 = vmax.f32 %v5892, 0.0
        %v5957 = vmax.f32 %v5893, 0.0
        %v5958 = vmax.f32 %v5894, 0.0
        %v5959 = vmax.f32 %v5895, 0.0
        %v5960 = vmax.f32 %v5896, 0.0
        %v5961 = vmax.f32 %v5897, 0.0
        %v5962 = vmax.f32 %v5898, 0.0
        %v5963 = vmax.f32 %v5899, 0.0
        %v5964 = vmax.f32 %v5900, 0.0
        %v5965 = vmax.f32 %v5901, 0.0
        %v5966 = vmax.f32 %v5902, 0.0
        %v5967 = vmax.f32 %v5903, 0.0
        %v5968 = vmax.f32 %v5904, 0.0
        %v5969 = vmax.f32 %v5905, 0.0
        %v5970 = vmax.f32 %v5906, 0.0
        %v5971 = vmax.f32 %v5907, 0.0
        %v5972 = vmax.f32 %v5908, 0.0
        %v5973 = vmax.f32 %v5909, 0.0
        %v5974 = vmax.f32 %v5910, 0.0
        %v5975 = vmax.f32 %v5911, 0.0
        %v5976 = vmax.f32 %v5912, 0.0
        %v5977 = vmax.f32 %v5913, 0.0
        %v5978 = vmax.f32 %v5914, 0.0
        %v5979 = vmax.f32 %v5915, 0.0
        %v5980 = vmax.f32 %v5916, 0.0
        %v5981 = vmax.f32 %v5917, 0.0
        %v5982 = vmax.f32 %v5918, 0.0
        %v5983 = vmax.f32 %v5919, 0.0
        %v5984 = vmax.f32 %v5920, 0.0
        %v5985 = vmax.f32 %v5921, 0.0
        %v5986 = vmax.f32 %v5922, 0.0
        %v5987 = vmax.f32 %v5923, 0.0
        %v5988 = vmax.f32 %v5924, 0.0
        %v5989 = vmax.f32 %v5925, 0.0
        %v5990 = vmax.f32 %v5926, 0.0
        %v5991 = vmax.f32 %v5927, 0.0
        %v5992 = vmax.f32 %v5928, 0.0
        %v5993 = vmax.f32 %v5929, 0.0
        %v5994 = vmax.f32 %v5930, 0.0
        %v5995 = vmax.f32 %v5931, 0.0
        %v5996 = vmax.f32 %v5932, 0.0
        %v5997 = vmax.f32 %v5933, 0.0
        %v5998 = vmax.f32 %v5934, 0.0
        %v5999 = vmax.f32 %v5935, 0.0
        %v6000 = vmax.f32 %v5936, 0.0
        %v6001 = vmax.f32 %v5937, 0.0
        %v6002 = vmax.f32 %v5938, 0.0
        %v6003 = vmax.f32 %v5939, 0.0
        %v6004 = vmax.f32 %v5940, 0.0
        %v6005 = vmax.f32 %v5941, 0.0
        %v6006 = vmax.f32 %v5942, 0.0
        %v6007 = vmax.f32 %v5943, 0.0
        %v6008 = vmax.f32 %v5944, 0.0
        %v6009 = vmax.f32 %v5945, 0.0
        %v6010 = vmax.f32 %v5946, 0.0
        %v6011 = vmax.f32 %v5947, 0.0
        %v6012 = vmax.f32 %v5948, 0.0
        %v6013 = vmax.f32 %v5949, 0.0
        %v6014 = vmax.f32 %v5950, 0.0
        %v6015 = vmax.f32 %v5951, 0.0
        %v6016 = vmax.f32 %v5952, 0.0
        %v6017 = vpack.c.bf16 %v5954, %v5953
        %v6018 = vpack.c.bf16 %v5956, %v5955
        %v6019 = vpack.c.bf16 %v5958, %v5957
        %v6020 = vpack.c.bf16 %v5960, %v5959
        %v6021 = vpack.c.bf16 %v5962, %v5961
        %v6022 = vpack.c.bf16 %v5964, %v5963
        %v6023 = vpack.c.bf16 %v5966, %v5965
        %v6024 = vpack.c.bf16 %v5968, %v5967
        %v6025 = vpack.c.bf16 %v5970, %v5969
        %v6026 = vpack.c.bf16 %v5972, %v5971
        %v6027 = vpack.c.bf16 %v5974, %v5973
        %v6028 = vpack.c.bf16 %v5976, %v5975
        %v6029 = vpack.c.bf16 %v5978, %v5977
        %v6030 = vpack.c.bf16 %v5980, %v5979
        %v6031 = vpack.c.bf16 %v5982, %v5981
        %v6032 = vpack.c.bf16 %v5984, %v5983
        %v6033 = vpack.c.bf16 %v5986, %v5985
        %v6034 = vpack.c.bf16 %v5988, %v5987
        %v6035 = vpack.c.bf16 %v5990, %v5989
        %v6036 = vpack.c.bf16 %v5992, %v5991
        %v6037 = vpack.c.bf16 %v5994, %v5993
        %v6038 = vpack.c.bf16 %v5996, %v5995
        %v6039 = vpack.c.bf16 %v5998, %v5997
        %v6040 = vpack.c.bf16 %v6000, %v5999
        %v6041 = vpack.c.bf16 %v6002, %v6001
        %v6042 = vpack.c.bf16 %v6004, %v6003
        %v6043 = vpack.c.bf16 %v6006, %v6005
        %v6044 = vpack.c.bf16 %v6008, %v6007
        %v6045 = vpack.c.bf16 %v6010, %v6009
        %v6046 = vpack.c.bf16 %v6012, %v6011
        %v6047 = vpack.c.bf16 %v6014, %v6013
        %v6048 = vpack.c.bf16 %v6016, %v6015
        %6049 = vst [vmem:[%s271] sm:$0xff] %v6017
        %6050 = vst [vmem:[%s271 + $0x8] sm:$0xff] %v6018
        %6051 = vst [vmem:[%s271 + $0x10] sm:$0xff] %v6019
        %6052 = vst [vmem:[%s271 + $0x18] sm:$0xff] %v6020
        %6053 = vst [vmem:[%s271 + $0x20] sm:$0xff] %v6021
        %6054 = vst [vmem:[%s271 + $0x28] sm:$0xff] %v6022
        %6055 = vst [vmem:[%s271 + $0x30] sm:$0xff] %v6023
        %6056 = vst [vmem:[%s271 + $0x38] sm:$0xff] %v6024
        %6057 = vst [vmem:[%s271 + $0x40] sm:$0xff] %v6025
        %6058 = vst [vmem:[%s271 + $0x48] sm:$0xff] %v6026
        %6059 = vst [vmem:[%s271 + $0x50] sm:$0xff] %v6027
        %6060 = vst [vmem:[%s271 + $0x58] sm:$0xff] %v6028
        %6061 = vst [vmem:[%s271 + $0x60] sm:$0xff] %v6029
        %6062 = vst [vmem:[%s271 + $0x68] sm:$0xff] %v6030
        %6063 = vst [vmem:[%s271 + $0x70] sm:$0xff] %v6031
        %6064 = vst [vmem:[%s271 + $0x78] sm:$0xff] %v6032
        %6065 = vst [vmem:[%s271 + $0x80] sm:$0xff] %v6033
        %6066 = vst [vmem:[%s271 + $0x88] sm:$0xff] %v6034
        %6067 = vst [vmem:[%s271 + $0x90] sm:$0xff] %v6035
        %6068 = vst [vmem:[%s271 + $0x98] sm:$0xff] %v6036
        %6069 = vst [vmem:[%s271 + $0xa0] sm:$0xff] %v6037
        %6070 = vst [vmem:[%s271 + $0xa8] sm:$0xff] %v6038
        %6071 = vst [vmem:[%s271 + $0xb0] sm:$0xff] %v6039
        %6072 = vst [vmem:[%s271 + $0xb8] sm:$0xff] %v6040
        %6073 = vst [vmem:[%s271 + $0xc0] sm:$0xff] %v6041
        %6074 = vst [vmem:[%s271 + $0xc8] sm:$0xff] %v6042
        %6075 = vst [vmem:[%s271 + $0xd0] sm:$0xff] %v6043
        %6076 = vst [vmem:[%s271 + $0xd8] sm:$0xff] %v6044
        %6077 = vst [vmem:[%s271 + $0xe0] sm:$0xff] %v6045
        %6078 = vst [vmem:[%s271 + $0xe8] sm:$0xff] %v6046
        %6079 = vst [vmem:[%s271 + $0xf0] sm:$0xff] %v6047
        %6080 = vst [vmem:[%s271 + $0xf8] sm:$0xff] %v6048
        %s6081 = sand.u32 %s181, 1
        %s6082 = scalar_lea.sflag [#allocation5], %s6081
        %s6083 = sand.u32 %s181, 1
        %s6084 = smul.addr %s6083, 256
        %s6085 = scalar_lea.vmem [#allocation4], %s6084
        // Predicated region
        $region49: #{tpu_custom_call.1} parent=47 // pred_check
          %p6086 = pneg %p191
        $region50: #{tpu_custom_call.1} parent=47 // pred_check_branch
          %6088 = sbr.rel (%p6086) target = $region52
        $region51: #{tpu_custom_call.1} parent=47 // pred_region
          %6090 = vsyncadd %s6082, 0
          %s6091 = smul.addr %s21, 64
          %s6092 = smul.addr %s6091, 4
          %s6093 = scalar_lea.hbm %s7, %s6092
          %s6094 = sshll.u32 %s6085, 4
          %s6095 = int_to_ptr.vmem [resolvable:$true] %s6094
          %s6096 = sshll.u32 %s6093, 4
          %s6097 = int_to_ptr.hbm [resolvable:$true] %s6096
          %6102 = dma.vmem_to_hbm [thread:$0]  %s6095, 4096, %s6097, %s6082, 128, 128, 8
        $region52: #{tpu_custom_call.1} parent=47 // pred_fallthru
          _
      $region48: #{tpu_custom_call.1} parent=5 // pred_fallthru
        _
      %p6103 = scmp.le.s32.totalorder 2, %s16
      // Predicated region
      $region53: #{tpu_custom_call.1} parent=5 // pred_check
        %p6104 = pneg %p6103
      $region54: #{tpu_custom_call.1} parent=5 // pred_check_branch
        %6106 = sbr.rel (%p6104) target = $region56
      $region55: #{tpu_custom_call.1} parent=5 // pred_region
        %s6107 = ssub.s32 %s16, 2
        // Predicated region
        $region57: #{tpu_custom_call.1} parent=55 // pred_check
          %p6108 = pneg %p197
        $region58: #{tpu_custom_call.1} parent=55 // pred_check_branch
          %6110 = sbr.rel (%p6108) target = $region60
        $region59: #{tpu_custom_call.1} parent=55 // pred_region
          %s6111 = sand.u32 %s182, 1
          %s6112 = scalar_lea.sflag [#allocation5], %s6111
          %s6113 = sand.u32 %s182, 1
          %s6114 = smul.addr %s6113, 256
          %s6115 = scalar_lea.vmem [#allocation4], %s6114
          %6117 = dma.done %s6112, 4096
        $region60: #{tpu_custom_call.1} parent=55 // pred_fallthru
          _
      $region56: #{tpu_custom_call.1} parent=5 // pred_fallthru
        _
    $region6: #{tpu_custom_call.1} parent=1 // loop_footer
      %s20 = sadd.s32 1, %s16
    $region7: #{tpu_custom_call.1} parent=1 // loop_footer_branch
      %15 = sbr.rel target = $region3
    $region8: #{tpu_custom_call.1} parent=1 // loop_exit
      _
    %6118 = vsyncpa [#allocation5], 1
    %s6119 = scalar_lea.sflag [#allocation5], 1
    %6120 = vsyncpa %s6119, 1

</llo_original>
